<compile_context>
chip_gen: v6e
topology: v6e:2x2x1
jax: 0.10.0
libtpu: 0.0.40
codegen_flags: <defaults>
</compile_context>

<pallas_src>
import functools

import jax
import jax.numpy as jnp
from jax.experimental import pallas as pl
from jax.experimental.pallas import tpu as pltpu


# ----------------------------------------------------------------------------- config
ACT_DTYPE = jnp.bfloat16                # inter-layer activation storage dtype
_VMEM_LIMIT = 48 * 1024 * 1024          # safe on v5e/v6e (128 MiB) and v7x (64 MiB)
_VMEM_TILE_BUDGET = 20 * 1024 * 1024    # per-step tile budget used when picking tm


# ----------------------------------------------------------------------------- helpers
def _round_up(x, m):
    return ((x + m - 1) // m) * m


def _gelu(x):
    # tanh-approximate GELU (see TODO above).
    c = 0.7978845608028654  # sqrt(2/pi)
    return 0.5 * x * (1.0 + jnp.tanh(c * (x + 0.044715 * x * x * x)))


def _apply_act(y, act):
    if act == "gelu":
        return _gelu(y)
    if act == "relu":
        return jnp.maximum(y, 0.0)
    return y


def _pick_tm(mp, k, nb, cap=1024):
    """Largest M tile that divides mp, is a multiple of 8 and fits the VMEM budget."""
    tm = min(cap, mp)
    tm -= tm % 8
    tm = max(tm, 8)
    while tm > 8 and (mp % tm != 0 or
                      4 * tm * (k + nb) + 4 * k * nb > _VMEM_TILE_BUDGET):
        tm -= 8
    return tm


def _cparams(semantics):
    return pltpu.CompilerParams(dimension_semantics=semantics,
                                vmem_limit_bytes=_VMEM_LIMIT)


# ----------------------------------------------------------------------------- kernels
def _mm_kernel(x_ref, w_ref, s_ref, t_ref, o_ref, *, act):
    """Fused (X @ W) * scale + shift -> act.  bf16 MXU operands, f32 epilogue."""
    y = jnp.dot(x_ref[...].astype(jnp.bfloat16), w_ref[...],
                preferred_element_type=jnp.float32)
    y = y * s_ref[...] + t_ref[...]
    o_ref[...] = _apply_act(y, act).astype(o_ref.dtype)


def matmul_bn_act(x, w, scale, shift, act=None, groups=1):
    """x: (M, K).  groups == 1: w (K, N).  groups > 1: w (groups*Kg, Ng) block stack,
    x columns are [group0 | group1 | ...] and output is (M, groups*Ng)."""
    M, K = x.shape
    Mp = _round_up(M, 8)
    if Mp != M:
        x = jnp.pad(x, ((0, Mp - M), (0, 0)))

    if groups == 1:
        _, N = w.shape
        tn = 256 if (N > 512 and N % 256 == 0) else N
        tm = _pick_tm(Mp, K, tn)
        grid = (Mp // tm, N // tn)
        in_specs = [
            pl.BlockSpec((tm, K), lambda i, j: (i, 0)),
            pl.BlockSpec((K, tn), lambda i, j: (0, j)),
            pl.BlockSpec((1, tn), lambda i, j: (0, j)),
            pl.BlockSpec((1, tn), lambda i, j: (0, j)),
        ]
        out_specs = pl.BlockSpec((tm, tn), lambda i, j: (i, j))
        out_cols = N
    else:
        gk, ng = w.shape
        kg = gk // groups
        assert K == groups * kg
        tm = _pick_tm(Mp, kg, ng)
        grid = (Mp // tm, groups)
        in_specs = [
            pl.BlockSpec((tm, kg), lambda i, g: (i, g)),
            pl.BlockSpec((kg, ng), lambda i, g: (g, 0)),
            pl.BlockSpec((1, ng), lambda i, g: (0, g)),
            pl.BlockSpec((1, ng), lambda i, g: (0, g)),
        ]
        out_specs = pl.BlockSpec((tm, ng), lambda i, g: (i, g))
        out_cols = groups * ng

    out = pl.pallas_call(
        functools.partial(_mm_kernel, act=act),
        out_shape=jax.ShapeDtypeStruct((Mp, out_cols), ACT_DTYPE),
        grid=grid,
        in_specs=in_specs,
        out_specs=out_specs,
        compiler_params=_cparams(("parallel", "parallel")),
    )(x, w, scale.reshape(1, -1), shift.reshape(1, -1))
    return out if Mp == M else out[:M]


def _conv_rows_kernel(*refs, k, act):
    """Dense k x k stride-1 conv for one output row: in-kernel tap gather, 9 MXU dots."""
    x_rows = refs[:k]
    w_ref, s_ref, t_ref, o_ref = refs[k:]
    wo = o_ref.shape[2]
    acc = None
    for dy in range(k):
        row = x_rows[dy][0, 0]                       # (W + k - 1, Cin) bf16
        for dx in range(k):
            xs = row[dx:dx + wo, :]
            contrib = jnp.dot(xs, w_ref[dy * k + dx],
                              preferred_element_type=jnp.float32)
            acc = contrib if acc is None else acc + contrib
    y = acc * s_ref[...] + t_ref[...]
    o_ref[0, 0] = _apply_act(y, act).astype(o_ref.dtype)


def _dw_rows_kernel(*refs, k, act):
    """Depthwise k x k stride-1 conv for one output row: unrolled VPU multiply-accumulate."""
    x_rows = refs[:k]
    w_ref, s_ref, t_ref, o_ref = refs[k:]
    wo = o_ref.shape[2]
    w = w_ref[...].astype(jnp.float32)               # (k*k, C)
    acc = None
    for dy in range(k):
        row = x_rows[dy][0, 0].astype(jnp.float32)   # (W + k - 1, C)
        for dx in range(k):
            t = dy * k + dx
            contrib = row[dx:dx + wo, :] * w[t:t + 1, :]
            acc = contrib if acc is None else acc + contrib
    y = acc * s_ref[...] + t_ref[...]
    o_ref[0, 0] = _apply_act(y, act).astype(o_ref.dtype)


def conv_rows(x, p, act, depthwise):
    """Stride-1 k x k conv (dense or depthwise) without JAX-level im2col.  x: NHWC."""
    B, H, W, C = x.shape
    k = p["k"]
    pad = k // 2
    xp = jnp.pad(x, ((0, 0), (pad, pad), (pad, pad), (0, 0)))
    Wp = W + 2 * pad
    if depthwise:
        cout = C
        w = p["w"]                                            # (k*k, C) f32
        w_spec = pl.BlockSpec((k * k, C), lambda b, i: (0, 0))
        kern = functools.partial(_dw_rows_kernel, k=k, act=act)
    else:
        cout = p["w"].shape[-1]
        w = p["w"].reshape(k * k, C, cout)                    # (k*k, Cin, Cout) bf16
        w_spec = pl.BlockSpec((k * k, C, cout), lambda b, i: (0, 0, 0))
        kern = functools.partial(_conv_rows_kernel, k=k, act=act)

    in_specs = [pl.BlockSpec((1, 1, Wp, C), (lambda b, i, dy=dy: (b, i + dy, 0, 0)))
                for dy in range(k)]
    in_specs += [w_spec,
                 pl.BlockSpec((1, cout), lambda b, i: (0, 0)),
                 pl.BlockSpec((1, cout), lambda b, i: (0, 0))]

    return pl.pallas_call(
        kern,
        out_shape=jax.ShapeDtypeStruct((B, H, W, cout), ACT_DTYPE),
        grid=(B, H),
        in_specs=in_specs,
        out_specs=pl.BlockSpec((1, 1, W, cout), lambda b, i: (b, i, 0, 0)),
        compiler_params=_cparams(("parallel", "parallel")),
    )(*([xp] * k), w, p["s"].reshape(1, cout), p["t"].reshape(1, cout))


def _dw_patch_kernel(x_ref, w_ref, s_ref, t_ref, o_ref, *, kk, act):
    """Depthwise conv on pre-extracted patches (stride-2 fallback), unrolled MAC."""
    x = x_ref[...]                                   # (tm, kk, C) bf16
    w = w_ref[...].astype(jnp.float32)               # (kk, C)
    acc = x[:, 0, :].astype(jnp.float32) * w[0:1, :]
    for t in range(1, kk):
        acc = acc + x[:, t, :].astype(jnp.float32) * w[t:t + 1, :]
    y = acc * s_ref[...] + t_ref[...]
    o_ref[...] = _apply_act(y, act).astype(o_ref.dtype)


def dwconv_patches(patches, w, scale, shift, act=None):
    """patches: (M, kk, C), w: (kk, C) -> (M, C).  Only used for stride-2 depthwise."""
    M, KK, C = patches.shape
    Mp = _round_up(M, 8)
    if Mp != M:
        patches = jnp.pad(patches, ((0, Mp - M), (0, 0), (0, 0)))
    tm = _pick_tm(Mp, KK * C, C, cap=128)
    out = pl.pallas_call(
        functools.partial(_dw_patch_kernel, kk=KK, act=act),
        out_shape=jax.ShapeDtypeStruct((Mp, C), ACT_DTYPE),
        grid=(Mp // tm,),
        in_specs=[
            pl.BlockSpec((tm, KK, C), lambda i: (i, 0, 0)),
            pl.BlockSpec((KK, C), lambda i: (0, 0)),
            pl.BlockSpec((1, C), lambda i: (0, 0)),
            pl.BlockSpec((1, C), lambda i: (0, 0)),
        ],
        out_specs=pl.BlockSpec((tm, C), lambda i: (i, 0)),
        compiler_params=_cparams(("parallel",)),
    )(patches, w, scale.reshape(1, C), shift.reshape(1, C))
    return out if Mp == M else out[:M]


def _att_kernel(x_ref, o_ref, *, dim, groups, eps):
    """LiteMLA relu-linear attention: all heads of one batch element per grid step.
    Denominator comes out of the same MXU matmul (ones column appended to v)."""
    x = x_ref[0]                                     # (Npad, groups*3*dim) bf16
    npad = x.shape[0]
    outs = []
    for g in range(groups):
        base = g * 3 * dim
        q = jnp.maximum(x[:, base:base + dim], 0)
        k = jnp.maximum(x[:, base + dim:base + 2 * dim], 0)
        v = x[:, base + 2 * dim:base + 3 * dim]
        ones = jnp.ones((npad, 1), v.dtype)
        v_aug = jnp.concatenate([v, ones], axis=1)                         # (Npad, dim+1)
        kv = jax.lax.dot_general(k, v_aug, (((0,), (0,)), ((), ())),
                                 preferred_element_type=jnp.float32)       # (dim, dim+1)
        num = jnp.dot(q, kv.astype(jnp.bfloat16),
                      preferred_element_type=jnp.float32)                  # (Npad, dim+1)
        den = num[:, dim:dim + 1]
        outs.append(num[:, :dim] * pl.reciprocal(den + eps, approx=True))
    # lane-dense single store of all heads (matches PyTorch group-major channel order).
    o_ref[0] = jnp.concatenate(outs, axis=-1).astype(o_ref.dtype)


def linear_attention(ms, dim, groups, eps=1e-15):
    """ms: (B, Npad, groups*3*dim) -> (B, Npad, groups*dim)."""
    B, Npad, Ctot = ms.shape
    return pl.pallas_call(
        functools.partial(_att_kernel, dim=dim, groups=groups, eps=eps),
        out_shape=jax.ShapeDtypeStruct((B, Npad, groups * dim), ACT_DTYPE),
        grid=(B,),
        in_specs=[pl.BlockSpec((1, Npad, Ctot), lambda b: (b, 0, 0))],
        out_specs=pl.BlockSpec((1, Npad, groups * dim), lambda b: (b, 0, 0)),
        compiler_params=_cparams(("parallel",)),
    )(ms)


# ----------------------------------------------------------------------------- conv glue
def extract_patches(x, k, stride):
    """im2col fallback for stride-2 convs only (inflation bounded by k*k/stride^2)."""
    B, H, W, C = x.shape
    pad = k // 2
    xp = jnp.pad(x, ((0, 0), (pad, pad), (pad, pad), (0, 0)))
    Ho = (H + 2 * pad - k) // stride + 1
    Wo = (W + 2 * pad - k) // stride + 1
    cols = []
    for dy in range(k):
        for dx in range(k):
            cols.append(xp[:, dy:dy + stride * Ho:stride, dx:dx + stride * Wo:stride, :])
    p = jnp.stack(cols, axis=3)                       # (B, Ho, Wo, k*k, C)
    return p.reshape(B * Ho * Wo, k * k, C), Ho, Wo


def conv_layer(x, p, stride, act):
    """Dense conv (k x k, grouped-or-not 1x1) + folded BN + act.  x NHWC."""
    B, H, W, C = x.shape
    k = p["k"]
    if k == 1:
        y = matmul_bn_act(x.reshape(B * H * W, C), p["w"], p["s"], p["t"], act,
                          groups=p.get("groups", 1))
        return y.reshape(B, H, W, y.shape[-1])
    if stride == 1:
        return conv_rows(x, p, act, depthwise=False)
    # TODO(synk): stride-2 dense convs still use a (bounded, 2.25x) im2col fallback.
    patches, Ho, Wo = extract_patches(x, k, stride)
    y = matmul_bn_act(patches.reshape(-1, k * k * C), p["w"], p["s"], p["t"], act)
    return y.reshape(B, Ho, Wo, p["w"].shape[-1])


def dw_layer(x, p, stride, act):
    """Depthwise conv (groups == channels) + folded bias/BN + act.  x NHWC."""
    B, H, W, C = x.shape
    k = p["k"]
    if stride == 1:
        return conv_rows(x, p, act, depthwise=True)
    patches, Ho, Wo = extract_patches(x, k, stride)
    y = dwconv_patches(patches, p["w"], p["s"], p["t"], act)
    return y.reshape(B, Ho, Wo, C)


# ----------------------------------------------------------------------------- parameters
class ParamGen:
    """Deterministic parameter initialization (no checkpoint loading)."""

    def __init__(self, seed):
        self._key = jax.random.PRNGKey(seed)

    def key(self):
        self._key, sub = jax.random.split(self._key)
        return sub

    def _bn(self, cout, bias):
        gamma = 1.0 + 0.1 * jax.random.normal(self.key(), (cout,), jnp.float32)
        beta = 0.1 * jax.random.normal(self.key(), (cout,), jnp.float32)
        mean = 0.1 * jax.random.normal(self.key(), (cout,), jnp.float32)
        var = jnp.abs(1.0 + 0.1 * jax.random.normal(self.key(), (cout,), jnp.float32))
        s = gamma / jnp.sqrt(var + 1e-5)
        t = beta - mean * s + bias * s
        return s, t

    def conv(self, k, cin, cout, bias=False, norm=True):
        fan_in = float(k * k * cin)
        w = (jax.random.normal(self.key(), (k * k * cin, cout), jnp.float32)
             / jnp.sqrt(fan_in)).astype(jnp.bfloat16)
        b = (0.05 * jax.random.normal(self.key(), (cout,), jnp.float32)
             if bias else jnp.zeros((cout,), jnp.float32))
        if norm:
            s, t = self._bn(cout, b)
        else:
            s, t = jnp.ones((cout,), jnp.float32), b
        return {"w": w, "s": s, "t": t, "k": k}

    def dwconv(self, k, c, bias=False, norm=False):
        w = jax.random.normal(self.key(), (k * k, c), jnp.float32) / float(k)
        b = (0.05 * jax.random.normal(self.key(), (c,), jnp.float32)
             if bias else jnp.zeros((c,), jnp.float32))
        if norm:
            s, t = self._bn(c, b)
        else:
            s, t = jnp.ones((c,), jnp.float32), b
        return {"w": w, "s": s, "t": t, "k": k}

    def grouped_pw(self, channels, groups):
        """Grouped 1x1 conv (bias=False): block-diagonal weight packed into lane-dense
        supergroups (<=4 groups each) so each grid step is a dense (sgc x sgc) matmul."""
        gc = channels // groups
        gps = 4 if groups % 4 == 0 else groups
        n_super = groups // gps
        sgc = gps * gc
        blocks = []
        for _ in range(n_super):
            blk = jnp.zeros((sgc, sgc), jnp.float32)
            for j in range(gps):
                wg = jax.random.normal(self.key(), (gc, gc), jnp.float32) / jnp.sqrt(float(gc))
                blk = blk.at[j * gc:(j + 1) * gc, j * gc:(j + 1) * gc].set(wg)
            blocks.append(blk)
        w = jnp.concatenate(blocks, axis=0).astype(jnp.bfloat16)   # (n_super*sgc, sgc)
        return {"w": w, "s": jnp.ones((channels,), jnp.float32),
                "t": jnp.zeros((channels,), jnp.float32), "k": 1, "groups": n_super}


def make_local_block(pg, block, cin, cout, stride, expand, fewer_norm, residual):
    mid = round(cin * expand)
    if block == "res":
        return {"type": "res", "stride": stride, "residual": residual,
                "conv1": pg.conv(3, cin, mid, bias=fewer_norm, norm=not fewer_norm),
                "conv2": pg.conv(3, mid, cout, bias=False, norm=True)}
    if block == "fmb":
        return {"type": "fmb", "stride": stride, "residual": residual,
                "spatial": pg.conv(3, cin, mid, bias=fewer_norm, norm=not fewer_norm),
                "point": pg.conv(1, mid, cout, bias=False, norm=True)}
    if block == "mb":
        return {"type": "mb", "stride": stride, "residual": residual,
                "inverted": pg.conv(1, cin, mid, bias=fewer_norm, norm=not fewer_norm),
                "depth": pg.dwconv(3, mid, bias=fewer_norm, norm=not fewer_norm),
                "point": pg.conv(1, mid, cout, bias=False, norm=True)}
    raise ValueError(block)


def make_vit_block(pg, cin, qkv_dim, expand):
    heads = cin // qkv_dim
    total_dim = heads * qkv_dim
    scale = 5  # scales=(5,)
    mla = {"dim": qkv_dim,
           "qkv": pg.conv(1, cin, 3 * total_dim, bias=False, norm=False),
           "agg_dw": pg.dwconv(scale, 3 * total_dim, bias=False, norm=False),
           "agg_pw": pg.grouped_pw(3 * total_dim, 3 * heads),
           "proj": pg.conv(1, total_dim * 2, cin, bias=False, norm=True)}
    mid = round(cin * expand)
    local = {"inverted": pg.conv(1, cin, mid, bias=True, norm=False),
             "depth": pg.dwconv(3, mid, bias=True, norm=False),
             "point": pg.conv(1, mid, cin, bias=False, norm=True)}
    return {"type": "vit", "mla": mla, "local": local}


def build_backbone_params(pg, width_list, depth_list, qkv_dim=32):
    block_list = ["res", "fmb", "fmb", "mb", "att"]
    expand_list = [1, 4, 4, 4, 6]
    fewer_norm_list = [False, False, False, True, True]
    stages = []
    stage0 = [{"type": "conv", "stride": 2, "act": "gelu",
               "p": pg.conv(3, 3, width_list[0], bias=False, norm=True)}]
    for _ in range(depth_list[0]):
        stage0.append(make_local_block(pg, block_list[0], width_list[0], width_list[0],
                                       1, expand_list[0], fewer_norm_list[0], residual=True))
    stages.append(stage0)
    in_ch = width_list[0]
    for sid, (w, d) in enumerate(zip(width_list[1:], depth_list[1:]), start=1):
        stage = []
        blk = "mb" if block_list[sid] not in ["mb", "fmb"] else block_list[sid]
        stage.append(make_local_block(pg, blk, in_ch, w, 2, expand_list[sid] * 4,
                                      fewer_norm_list[sid], residual=False))
        in_ch = w
        for _ in range(d):
            if block_list[sid].startswith("att"):
                stage.append(make_vit_block(pg, in_ch, qkv_dim, expand_list[sid]))
            else:
                stage.append(make_local_block(pg, block_list[sid], in_ch, in_ch, 1,
                                              expand_list[sid], fewer_norm_list[sid],
                                              residual=True))
        stages.append(stage)
    return stages


# ----------------------------------------------------------------------------- forward
def lite_mla(x, p):
    B, H, W, _ = x.shape
    dim = p["dim"]
    qkv = conv_layer(x, p["qkv"], 1, None)                   # (B,H,W,3*total_dim)
    agg = dw_layer(qkv, p["agg_dw"], 1, None)                # 5x5 depthwise (in-kernel taps)
    agg = conv_layer(agg, p["agg_pw"], 1, None)              # grouped 1x1 (supergroup matmul)
    ms = jnp.concatenate([qkv, agg], axis=-1)                # (B,H,W,Ctot)
    ctot = ms.shape[-1]
    groups = ctot // (3 * dim)
    n = H * W
    npad = _round_up(max(n, 8), 8)
    ms = ms.reshape(B, n, ctot)
    if npad != n:
        ms = jnp.pad(ms, ((0, 0), (0, npad - n), (0, 0)))
    att = linear_attention(ms, dim, groups)                  # (B, npad, groups*dim)
    att = att[:, :n, :].reshape(B, H, W, groups * dim)
    return conv_layer(att, p["proj"], 1, None)


def run_op(x, op):
    t = op["type"]
    if t == "conv":
        return conv_layer(x, op["p"], op["stride"], op["act"])
    if t == "res":
        y = conv_layer(x, op["conv1"], op["stride"], "gelu")
        y = conv_layer(y, op["conv2"], 1, None)
        return x + y if op["residual"] else y
    if t == "fmb":
        y = conv_layer(x, op["spatial"], op["stride"], "gelu")
        y = conv_layer(y, op["point"], 1, None)
        return x + y if op["residual"] else y
    if t == "mb":
        y = conv_layer(x, op["inverted"], 1, "gelu")
        y = dw_layer(y, op["depth"], op["stride"], "gelu")
        y = conv_layer(y, op["point"], 1, None)
        return x + y if op["residual"] else y
    if t == "vit":
        x = x + lite_mla(x, op["mla"])                       # context module (residual)
        loc = op["local"]
        y = conv_layer(x, loc["inverted"], 1, "gelu")
        y = dw_layer(y, loc["depth"], 1, "gelu")
        y = conv_layer(y, loc["point"], 1, None)
        return x + y                                          # local module (residual)
    raise ValueError(t)


class D2EfficientViTPallas:
    """Pallas re-implementation of the D2EfficientViT forward (synthetic weights)."""

    MAP = {"res2": "stage1", "res3": "stage2", "res4": "stage3", "res5": "stage4"}

    def __init__(self, width_list, depth_list, out_features, seed=1):
        pg = ParamGen(seed)
        self.stages = build_backbone_params(pg, width_list, depth_list)
        self.out_features = out_features
        self.size_divisibility = 32

    def __call__(self, x_nchw):
        assert x_nchw.ndim == 4, "expects (N, C, H, W)"
        _, _, H, W = x_nchw.shape
        assert H % self.size_divisibility == 0 and W % self.size_divisibility == 0
        x = jnp.transpose(x_nchw, (0, 2, 3, 1)).astype(ACT_DTYPE)   # NCHW -> NHWC bf16
        stage_out = {}
        for sid, stage in enumerate(self.stages):
            for op in stage:
                x = run_op(x, op)
            stage_out["stage%d" % sid] = x
        # back to NCHW f32, select requested features
        return {k: jnp.transpose(stage_out[self.MAP[k]], (0, 3, 1, 2)).astype(jnp.float32)
                for k in self.out_features}


# ----------------------------------------------------------------------------- main
if __name__ == "__main__":
    # Small config consistent with the module structure:
    #   width_list[-1] must be a multiple of qkv_dim(=32) for the attention stage.
    width_list = [8, 16, 16, 32, 32]
    depth_list = [1, 1, 1, 1, 1]
    out_features = ["res2", "res3", "res4", "res5"]

    model = D2EfficientViTPallas(width_list, depth_list, out_features, seed=1)

    key = jax.random.PRNGKey(0)
    x = jax.random.normal(key, (2, 3, 64, 64), jnp.float32)   # NCHW, H/W divisible by 32

    outs = model(x)
    outs = jax.block_until_ready(outs)

    expected = {"res2": (2, 16, 16, 16), "res3": (2, 16, 8, 8),
                "res4": (2, 32, 4, 4), "res5": (2, 32, 2, 2)}
    ok = True
    for name in out_features:
        v = outs[name]
        if tuple(v.shape) != expected[name] or not bool(jnp.all(jnp.isfinite(v))):
            ok = False
    if ok:
        print("KERNEL_OK")
</pallas_src>

<mosaic_0001>
module attributes {stable_mosaic.version = 11 : i64} {
  func.func @_mm_kernel(%arg0: i32, %arg1: i32, %arg2: memref<1024x27xbf16, #tpu.memory_space<vmem>>, %arg3: memref<27x8xbf16, #tpu.memory_space<vmem>>, %arg4: memref<1x8xf32, #tpu.memory_space<vmem>>, %arg5: memref<1x8xf32, #tpu.memory_space<vmem>>, %arg6: memref<1024x8xbf16, #tpu.memory_space<vmem>>) attributes {dimension_semantics = [#tpu.dimension_semantics<parallel>, #tpu.dimension_semantics<parallel>], iteration_bounds = array<i64: 2, 1>, scalar_prefetch = 0 : i64, scratch_operands = 0 : i64, tpu.core_type = #tpu.core_type<tc>, window_params = [{transform_indices = @transform_0, window_bounds = array<i64: 1024, 27>}, {transform_indices = @transform_1, window_bounds = array<i64: 27, 8>}, {transform_indices = @transform_2, window_bounds = array<i64: 1, 8>}, {transform_indices = @transform_3, window_bounds = array<i64: 1, 8>}, {transform_indices = @transform_4, window_bounds = array<i64: 1024, 8>}]} {
    %c0 = arith.constant 0 : index
    %c0_0 = arith.constant 0 : index
    %0 = vector.load %arg2[%c0, %c0_0] : memref<1024x27xbf16, #tpu.memory_space<vmem>>, vector<1024x27xbf16>
    %c0_1 = arith.constant 0 : index
    %c0_2 = arith.constant 0 : index
    %1 = vector.load %arg3[%c0_1, %c0_2] : memref<27x8xbf16, #tpu.memory_space<vmem>>, vector<27x8xbf16>
    %cst = arith.constant dense<0.000000e+00> : vector<1024x8xf32>
    %2 = tpu.matmul %0, %1, %cst {dimension_numbers = #tpu.dot_dimension_numbers<[1], [0], [0], [1], [0, 0, 1, 1], [], []>} : vector<1024x27xbf16>, vector<27x8xbf16>, vector<1024x8xf32> -> vector<1024x8xf32>
    %c0_3 = arith.constant 0 : index
    %c0_4 = arith.constant 0 : index
    %3 = vector.load %arg4[%c0_3, %c0_4] : memref<1x8xf32, #tpu.memory_space<vmem>>, vector<1x8xf32>
    %4 = vector.broadcast %3 : vector<1x8xf32> to vector<1024x8xf32>
    %5 = arith.mulf %2, %4 : vector<1024x8xf32>
    %c0_5 = arith.constant 0 : index
    %c0_6 = arith.constant 0 : index
    %6 = vector.load %arg5[%c0_5, %c0_6] : memref<1x8xf32, #tpu.memory_space<vmem>>, vector<1x8xf32>
    %7 = vector.broadcast %6 : vector<1x8xf32> to vector<1024x8xf32>
    %8 = arith.addf %5, %7 : vector<1024x8xf32>
    %cst_7 = arith.constant 5.000000e-01 : f32
    %9 = vector.broadcast %cst_7 : f32 to vector<1024x8xf32>
    %10 = arith.mulf %9, %8 : vector<1024x8xf32>
    %cst_8 = arith.constant 4.471500e-02 : f32
    %11 = vector.broadcast %cst_8 : f32 to vector<1024x8xf32>
    %12 = arith.mulf %11, %8 : vector<1024x8xf32>
    %13 = arith.mulf %12, %8 : vector<1024x8xf32>
    %14 = arith.mulf %13, %8 : vector<1024x8xf32>
    %15 = arith.addf %8, %14 : vector<1024x8xf32>
    %cst_9 = arith.constant 0.797884583 : f32
    %16 = vector.broadcast %cst_9 : f32 to vector<1024x8xf32>
    %17 = arith.mulf %16, %15 : vector<1024x8xf32>
    %18 = math.tanh %17 : vector<1024x8xf32>
    %cst_10 = arith.constant 1.000000e+00 : f32
    %19 = vector.broadcast %cst_10 : f32 to vector<1024x8xf32>
    %20 = arith.addf %19, %18 : vector<1024x8xf32>
    %21 = arith.mulf %10, %20 : vector<1024x8xf32>
    %22 = arith.truncf %21 : vector<1024x8xf32> to vector<1024x8xbf16>
    %c0_11 = arith.constant 0 : index
    %c0_12 = arith.constant 0 : index
    %23 = vector.load %arg6[%c0_11, %c0_12] : memref<1024x8xbf16, #tpu.memory_space<vmem>>, vector<1024x8xbf16>
    tpu.vector_store %arg6[%c0_11, %c0_12], %22 {strides = array<i32>} : memref<1024x8xbf16, #tpu.memory_space<vmem>>, vector<1024x8xbf16>,
    return
  }
  func.func @transform_0(%arg0: i32, %arg1: i32) -> (i32, i32) {
    %c0_i32 = arith.constant 0 : i32
    %c0_i32_0 = arith.constant 0 : i32
    return %arg0, %c0_i32 : i32, i32
  }
  func.func @transform_1(%arg0: i32, %arg1: i32) -> (i32, i32) {
    %c0_i32 = arith.constant 0 : i32
    %c0_i32_0 = arith.constant 0 : i32
    return %c0_i32, %arg1 : i32, i32
  }
  func.func @transform_2(%arg0: i32, %arg1: i32) -> (i32, i32) {
    %c0_i32 = arith.constant 0 : i32
    %c0_i32_0 = arith.constant 0 : i32
    return %c0_i32, %arg1 : i32, i32
  }
  func.func @transform_3(%arg0: i32, %arg1: i32) -> (i32, i32) {
    %c0_i32 = arith.constant 0 : i32
    %c0_i32_0 = arith.constant 0 : i32
    return %c0_i32, %arg1 : i32, i32
  }
  func.func @transform_4(%arg0: i32, %arg1: i32) -> (i32, i32) {
    %c0_i32 = arith.constant 0 : i32
    return %arg0, %arg1 : i32, i32
  }
}

</mosaic_0001>

<llo_original>
// kernel: tpu_custom_call.1
$region0: #{tpu_custom_call.1}
  #allocation0 [shape = 'u32[]', space=smem, size = 0x4, offset = 0x4, fixed_abs, tag = 'smem constant byte address 0x4 - core index']
  #allocation1 [shape = 'u32[144,128]{1,0:T(1,128)}', space=vmem, size = 0x12000, scoped, tag = 'internal scratch']
  %s0 = inlined_call_operand.vmem [shape: bf16[2048,27], index: 0, kind: input, shape index: {}]
  %s1 = inlined_call_operand.vmem [shape: bf16[27,8], index: 1, kind: input, shape index: {}]
  %s2 = inlined_call_operand.vmem [shape: f32[1,8], index: 2, kind: input, shape index: {}]
  %s3 = inlined_call_operand.vmem [shape: f32[1,8], index: 3, kind: input, shape index: {}]
  %s4 = inlined_call_operand.vmem [shape: bf16[2048,8], index: 4, kind: output, shape index: {}]
  %s5 = sld [smem:[#allocation0]]
  $region49: #{tpu_custom_call.1} parent=0
    _
  %s7 = ssub.s32 1, %s5
  %s8 = scalar_select 0, %s7, %s5
  loop: start=0, step=1, limit=4
  $region2: #{tpu_custom_call.1} parent=0 // loop_pre_header
    _
  $region3: #{tpu_custom_call.1} parent=0 // loop_header
    %s10 = sphi 0, %s14
    %p11 = scmp.ge.s32.totalorder %s10, 4
    %s17 = sphi 0, %s29
    %s18 = sphi 0, %s25
    %s19 = sphi 0, %s17
    %s20 = sphi 0, %s18
    %s21 = sphi 0, %s19
    %s22 = sphi 0, %s20
    %s32 = sphi 0, %s34
    %s35 = sphi 0, %s32
    %s36 = sphi 0, %s35
    %s52 = sphi 0, %s36
    %s58 = sphi 0, %s60
    %s61 = sphi 0, %s58
    %s62 = sphi 0, %s61
    %s78 = sphi 0, %s62
    %s84 = sphi 0, %s86
    %s87 = sphi 0, %s84
    %s88 = sphi 0, %s87
    %s104 = sphi 0, %s88
    %s110 = sphi 0, %s112
    %s113 = sphi 0, %s110
    %s114 = sphi 0, %s113
    %s130 = sphi 0, %s114
    %s138 = sphi 0, %s140
    %s141 = sphi 0, %s138
    %s142 = sphi 0, %s141
    %s158 = sphi 0, %s142
  $region4: #{tpu_custom_call.1} parent=0 // loop_header_branch
    %13 = sbr.rel (%p11) target = $region8
  $region5: #{tpu_custom_call.1} parent=0 // loop_body
    %s15 = ssub.s32 %s10, 1
    %s16 = ssub.s32 %s10, 2
    %s23 = sadd.s32 1, %s18
    %p24 = scmp.ge.s32.totalorder %s23, 1
    %s25 = scalar_select %p24, 0, %s23
    %s26 = sadd.s32 1, %s17
    %s27 = scalar_select %p24, %s26, %s17
    %p28 = scmp.ge.s32.totalorder %s27, 2
    %s29 = scalar_select %p28, 0, %s27
    %s30 = ssub.s32 %s17, %s29
    %p31 = scmp.eq.s32.totalorder %s30, 0
    %s33 = sadd.s32 %s32, 1
    %s34 = scalar_select %p31, %s32, %s33
    %p37 = pneg %p31
    %p38 = scmp.eq.s32.totalorder %s10, 1
    %p39 = por %p37, %p38
    %p40 = scmp.ne.s32.totalorder %s32, %s35
    %p41 = scmp.eq.s32.totalorder %s10, 0
    %p42 = por %p40, %p41
    %p43 = scmp.ne.s32.totalorder %s32, %s35
    %p44 = scmp.eq.s32.totalorder %s15, 1
    %p45 = por %p43, %p44
    %p46 = scmp.ne.s32.totalorder %s35, %s36
    %p47 = scmp.eq.s32.totalorder %s15, 0
    %p48 = por %p46, %p47
    %p49 = scmp.ne.s32.totalorder %s35, %s36
    %p50 = scmp.eq.s32.totalorder %s16, 1
    %p51 = por %p49, %p50
    %p53 = scmp.ne.s32.totalorder %s36, %s52
    %p54 = scmp.eq.s32.totalorder %s16, 0
    %p55 = por %p53, %p54
    %s56 = ssub.s32 %s18, %s25
    %p57 = scmp.eq.s32.totalorder %s56, 0
    %s59 = sadd.s32 %s58, 1
    %s60 = scalar_select %p57, %s58, %s59
    %p63 = pneg %p57
    %p64 = scmp.eq.s32.totalorder %s10, 1
    %p65 = por %p63, %p64
    %p66 = scmp.ne.s32.totalorder %s58, %s61
    %p67 = scmp.eq.s32.totalorder %s10, 0
    %p68 = por %p66, %p67
    %p69 = scmp.ne.s32.totalorder %s58, %s61
    %p70 = scmp.eq.s32.totalorder %s15, 1
    %p71 = por %p69, %p70
    %p72 = scmp.ne.s32.totalorder %s61, %s62
    %p73 = scmp.eq.s32.totalorder %s15, 0
    %p74 = por %p72, %p73
    %p75 = scmp.ne.s32.totalorder %s61, %s62
    %p76 = scmp.eq.s32.totalorder %s16, 1
    %p77 = por %p75, %p76
    %p79 = scmp.ne.s32.totalorder %s62, %s78
    %p80 = scmp.eq.s32.totalorder %s16, 0
    %p81 = por %p79, %p80
    %s82 = ssub.s32 %s18, %s25
    %p83 = scmp.eq.s32.totalorder %s82, 0
    %s85 = sadd.s32 %s84, 1
    %s86 = scalar_select %p83, %s84, %s85
    %p89 = pneg %p83
    %p90 = scmp.eq.s32.totalorder %s10, 1
    %p91 = por %p89, %p90
    %p92 = scmp.ne.s32.totalorder %s84, %s87
    %p93 = scmp.eq.s32.totalorder %s10, 0
    %p94 = por %p92, %p93
    %p95 = scmp.ne.s32.totalorder %s84, %s87
    %p96 = scmp.eq.s32.totalorder %s15, 1
    %p97 = por %p95, %p96
    %p98 = scmp.ne.s32.totalorder %s87, %s88
    %p99 = scmp.eq.s32.totalorder %s15, 0
    %p100 = por %p98, %p99
    %p101 = scmp.ne.s32.totalorder %s87, %s88
    %p102 = scmp.eq.s32.totalorder %s16, 1
    %p103 = por %p101, %p102
    %p105 = scmp.ne.s32.totalorder %s88, %s104
    %p106 = scmp.eq.s32.totalorder %s16, 0
    %p107 = por %p105, %p106
    %s108 = ssub.s32 %s18, %s25
    %p109 = scmp.eq.s32.totalorder %s108, 0
    %s111 = sadd.s32 %s110, 1
    %s112 = scalar_select %p109, %s110, %s111
    %p115 = pneg %p109
    %p116 = scmp.eq.s32.totalorder %s10, 1
    %p117 = por %p115, %p116
    %p118 = scmp.ne.s32.totalorder %s110, %s113
    %p119 = scmp.eq.s32.totalorder %s10, 0
    %p120 = por %p118, %p119
    %p121 = scmp.ne.s32.totalorder %s110, %s113
    %p122 = scmp.eq.s32.totalorder %s15, 1
    %p123 = por %p121, %p122
    %p124 = scmp.ne.s32.totalorder %s113, %s114
    %p125 = scmp.eq.s32.totalorder %s15, 0
    %p126 = por %p124, %p125
    %p127 = scmp.ne.s32.totalorder %s113, %s114
    %p128 = scmp.eq.s32.totalorder %s16, 1
    %p129 = por %p127, %p128
    %p131 = scmp.ne.s32.totalorder %s114, %s130
    %p132 = scmp.eq.s32.totalorder %s16, 0
    %p133 = por %p131, %p132
    %s134 = ssub.s32 %s17, %s29
    %s135 = ssub.s32 %s18, %s25
    %s136 = sor.u32 %s134, %s135
    %p137 = scmp.eq.s32.totalorder %s136, 0
    %s139 = sadd.s32 %s138, 1
    %s140 = scalar_select %p137, %s138, %s139
    %p143 = pneg %p137
    %p144 = scmp.eq.s32.totalorder %s10, 1
    %p145 = por %p143, %p144
    %p146 = scmp.ne.s32.totalorder %s138, %s141
    %p147 = scmp.eq.s32.totalorder %s10, 0
    %p148 = por %p146, %p147
    %p149 = scmp.ne.s32.totalorder %s138, %s141
    %p150 = scmp.eq.s32.totalorder %s15, 1
    %p151 = por %p149, %p150
    %p152 = scmp.ne.s32.totalorder %s141, %s142
    %p153 = scmp.eq.s32.totalorder %s15, 0
    %p154 = por %p152, %p153
    %p155 = scmp.ne.s32.totalorder %s141, %s142
    %p156 = scmp.eq.s32.totalorder %s16, 1
    %p157 = por %p155, %p156
    %p159 = scmp.ne.s32.totalorder %s142, %s158
    %p160 = scmp.eq.s32.totalorder %s16, 0
    %p161 = por %p159, %p160
    %p162 = scmp.le.s32.totalorder 1, %s10
    %p163 = scmp.lt.s32.totalorder %s10, 3
    %p164 = pnand %p162, %p163
    %p165 = pneg %p164
    // Predicated region
    $region9: #{tpu_custom_call.1} parent=5 // pred_check
      _
    $region10: #{tpu_custom_call.1} parent=5 // pred_check_branch
      %167 = sbr.rel (%p164) target = $region12
    $region11: #{tpu_custom_call.1} parent=5 // pred_region
      %s168 = ssub.s32 %s10, 1
      // Predicated region
      $region13: #{tpu_custom_call.1} parent=11 // pred_check
        %p169 = pneg %p74
      $region14: #{tpu_custom_call.1} parent=11 // pred_check_branch
        %171 = sbr.rel (%p169) target = $region16
      $region15: #{tpu_custom_call.1} parent=11 // pred_region
        %p172 = scmp.lt.s32.totalorder %s20, 0
        %s173 = scalar_select %p172, %s20, 0
        %s174 = smul.addr %s173, 4
        %s175 = scalar_lea.vmem %s1, %s174
      $region16: #{tpu_custom_call.1} parent=11 // pred_fallthru
        _
      // Predicated region
      $region17: #{tpu_custom_call.1} parent=11 // pred_check
        %p176 = pneg %p100
      $region18: #{tpu_custom_call.1} parent=11 // pred_check_branch
        %178 = sbr.rel (%p176) target = $region20
      $region19: #{tpu_custom_call.1} parent=11 // pred_region
        %p179 = scmp.lt.s32.totalorder %s20, 0
        %s180 = scalar_select %p179, %s20, 0
        %s181 = scalar_lea.vmem %s2, %s180
      $region20: #{tpu_custom_call.1} parent=11 // pred_fallthru
        _
      // Predicated region
      $region21: #{tpu_custom_call.1} parent=11 // pred_check
        %p182 = pneg %p126
      $region22: #{tpu_custom_call.1} parent=11 // pred_check_branch
        %184 = sbr.rel (%p182) target = $region24
      $region23: #{tpu_custom_call.1} parent=11 // pred_region
        %p185 = scmp.lt.s32.totalorder %s20, 0
        %s186 = scalar_select %p185, %s20, 0
        %s187 = scalar_lea.vmem %s3, %s186
      $region24: #{tpu_custom_call.1} parent=11 // pred_fallthru
        _
    $region12: #{tpu_custom_call.1} parent=5 // pred_fallthru
      _
    %p188 = scmp.lt.s32.totalorder %s10, 2
    // Predicated region
    $region25: #{tpu_custom_call.1} parent=5 // pred_check
      %p189 = pneg %p188
    $region26: #{tpu_custom_call.1} parent=5 // pred_check_branch
      %191 = sbr.rel (%p189) target = $region28
    $region27: #{tpu_custom_call.1} parent=5 // pred_region
      // Predicated region
      $region29: #{tpu_custom_call.1} parent=27 // pred_check
        %p192 = pneg %p42
      $region30: #{tpu_custom_call.1} parent=27 // pred_check_branch
        %194 = sbr.rel (%p192) target = $region32
      $region31: #{tpu_custom_call.1} parent=27 // pred_region
        %s195 = smul.u32 128, %s17
        %p196 = scmp.lt.s32.totalorder %s195, 255
        %s197 = scalar_select %p196, %s195, 255
        %s198 = smul.addr %s197, 4
        %s199 = scalar_lea.vmem %s0, %s198
        %s200 = smul.u32 128, %s17
      $region32: #{tpu_custom_call.1} parent=27 // pred_fallthru
        _
    $region28: #{tpu_custom_call.1} parent=5 // pred_fallthru
      _
    %p201 = scmp.le.s32.totalorder 1, %s10
    %p202 = scmp.lt.s32.totalorder %s10, 3
    %p203 = pnand %p201, %p202
    %p204 = pneg %p203
    // Predicated region
    $region33: #{tpu_custom_call.1} parent=5 // pred_check
      _
    $region34: #{tpu_custom_call.1} parent=5 // pred_check_branch
      %206 = sbr.rel (%p203) target = $region36
    $region35: #{tpu_custom_call.1} parent=5 // pred_region
      %s207 = ssub.s32 %s10, 1
      %s208 = smul.u32 128, %s19
      %p209 = scmp.lt.s32.totalorder %s208, 255
      %s210 = scalar_select %p209, %s208, 255
      %s211 = smul.addr %s210, 4
      %s212 = scalar_lea.vmem %s0, %s211
      %p213 = pneg %p48
      %p214 = pneg %p45
      %p215 = scmp.lt.s32.totalorder %s20, 0
      %s216 = scalar_select %p215, %s20, 0
      %s217 = smul.addr %s216, 4
      %s218 = scalar_lea.vmem %s1, %s217
      %p219 = pneg %p74
      %p220 = pneg %p71
      %p221 = scmp.lt.s32.totalorder %s20, 0
      %s222 = scalar_select %p221, %s20, 0
      %s223 = scalar_lea.vmem %s2, %s222
      %p224 = pneg %p100
      %p225 = pneg %p97
      %p226 = scmp.lt.s32.totalorder %s20, 0
      %s227 = scalar_select %p226, %s20, 0
      %s228 = scalar_lea.vmem %s3, %s227
      %p229 = pneg %p126
      %p230 = pneg %p123
      %p231 = pneg %p154
      %p232 = pneg %p151
      %s233 = smul.u32 128, %s19
      %p234 = scmp.lt.s32.totalorder %s233, 255
      %s235 = scalar_select %p234, %s233, 255
      %p236 = scmp.lt.s32.totalorder %s20, 0
      %s237 = scalar_select %p236, %s20, 0
      %s238 = sadd.s32 %s237, %s235
      %s239 = smul.addr %s238, 4
      %s240 = scalar_lea.vmem %s4, %s239
      %s241 = smul.u32 128, %s19
      %p242 = scmp.lt.s32.totalorder %s241, 255
      %s243 = scalar_select %p242, %s241, 255
      %s244 = smul.addr %s243, 4
      %s245 = scalar_lea.vmem %s0, %s244
      %s246 = smul.u32 128, %s19
      %p247 = scmp.lt.s32.totalorder %s20, 0
      %s248 = scalar_select %p247, %s20, 0
      %s249 = smul.addr %s248, 4
      %s250 = scalar_lea.vmem %s1, %s249
      %p251 = scmp.lt.s32.totalorder %s20, 0
      %s252 = scalar_select %p251, %s20, 0
      %s253 = scalar_lea.vmem %s2, %s252
      %p254 = scmp.lt.s32.totalorder %s20, 0
      %s255 = scalar_select %p254, %s20, 0
      %s256 = scalar_lea.vmem %s3, %s255
      %s257 = smul.u32 128, %s19
      %p258 = scmp.lt.s32.totalorder %s257, 255
      %s259 = scalar_select %p258, %s257, 255
      %p260 = scmp.lt.s32.totalorder %s20, 0
      %s261 = scalar_select %p260, %s20, 0
      %s262 = sadd.s32 %s261, %s259
      %s263 = smul.addr %s262, 4
      %s264 = scalar_lea.vmem %s4, %s263
      %s265 = smul.u32 128, %s19
      %v267 = vld [vmem:[%s245] sm:$0xf]
      %v268 = vld [vmem:[%s245 + $0x4] sm:$0xf]
      %v269 = vld [vmem:[%s245 + $0x8] sm:$0xf]
      %v270 = vld [vmem:[%s245 + $0xc] sm:$0xf]
      %v271 = vld [vmem:[%s245 + $0x10] sm:$0xf]
      %v272 = vld [vmem:[%s245 + $0x14] sm:$0xf]
      %v273 = vld [vmem:[%s245 + $0x18] sm:$0xf]
      %v274 = vld [vmem:[%s245 + $0x1c] sm:$0xf]
      %v275 = vld [vmem:[%s245 + $0x20] sm:$0xf]
      %v276 = vld [vmem:[%s245 + $0x24] sm:$0xf]
      %v277 = vld [vmem:[%s245 + $0x28] sm:$0xf]
      %v278 = vld [vmem:[%s245 + $0x2c] sm:$0xf]
      %v279 = vld [vmem:[%s245 + $0x30] sm:$0xf]
      %v280 = vld [vmem:[%s245 + $0x34] sm:$0xf]
      %v281 = vld [vmem:[%s245 + $0x38] sm:$0xf]
      %v282 = vld [vmem:[%s245 + $0x3c] sm:$0xf]
      %v283 = vld [vmem:[%s245 + $0x40] sm:$0xf]
      %v284 = vld [vmem:[%s245 + $0x44] sm:$0xf]
      %v285 = vld [vmem:[%s245 + $0x48] sm:$0xf]
      %v286 = vld [vmem:[%s245 + $0x4c] sm:$0xf]
      %v287 = vld [vmem:[%s245 + $0x50] sm:$0xf]
      %v288 = vld [vmem:[%s245 + $0x54] sm:$0xf]
      %v289 = vld [vmem:[%s245 + $0x58] sm:$0xf]
      %v290 = vld [vmem:[%s245 + $0x5c] sm:$0xf]
      %v291 = vld [vmem:[%s245 + $0x60] sm:$0xf]
      %v292 = vld [vmem:[%s245 + $0x64] sm:$0xf]
      %v293 = vld [vmem:[%s245 + $0x68] sm:$0xf]
      %v294 = vld [vmem:[%s245 + $0x6c] sm:$0xf]
      %v295 = vld [vmem:[%s245 + $0x70] sm:$0xf]
      %v296 = vld [vmem:[%s245 + $0x74] sm:$0xf]
      %v297 = vld [vmem:[%s245 + $0x78] sm:$0xf]
      %v298 = vld [vmem:[%s245 + $0x7c] sm:$0xf]
      %v299 = vld [vmem:[%s245 + $0x80] sm:$0xf]
      %v300 = vld [vmem:[%s245 + $0x84] sm:$0xf]
      %v301 = vld [vmem:[%s245 + $0x88] sm:$0xf]
      %v302 = vld [vmem:[%s245 + $0x8c] sm:$0xf]
      %v303 = vld [vmem:[%s245 + $0x90] sm:$0xf]
      %v304 = vld [vmem:[%s245 + $0x94] sm:$0xf]
      %v305 = vld [vmem:[%s245 + $0x98] sm:$0xf]
      %v306 = vld [vmem:[%s245 + $0x9c] sm:$0xf]
      %v307 = vld [vmem:[%s245 + $0xa0] sm:$0xf]
      %v308 = vld [vmem:[%s245 + $0xa4] sm:$0xf]
      %v309 = vld [vmem:[%s245 + $0xa8] sm:$0xf]
      %v310 = vld [vmem:[%s245 + $0xac] sm:$0xf]
      %v311 = vld [vmem:[%s245 + $0xb0] sm:$0xf]
      %v312 = vld [vmem:[%s245 + $0xb4] sm:$0xf]
      %v313 = vld [vmem:[%s245 + $0xb8] sm:$0xf]
      %v314 = vld [vmem:[%s245 + $0xbc] sm:$0xf]
      %v315 = vld [vmem:[%s245 + $0xc0] sm:$0xf]
      %v316 = vld [vmem:[%s245 + $0xc4] sm:$0xf]
      %v317 = vld [vmem:[%s245 + $0xc8] sm:$0xf]
      %v318 = vld [vmem:[%s245 + $0xcc] sm:$0xf]
      %v319 = vld [vmem:[%s245 + $0xd0] sm:$0xf]
      %v320 = vld [vmem:[%s245 + $0xd4] sm:$0xf]
      %v321 = vld [vmem:[%s245 + $0xd8] sm:$0xf]
      %v322 = vld [vmem:[%s245 + $0xdc] sm:$0xf]
      %v323 = vld [vmem:[%s245 + $0xe0] sm:$0xf]
      %v324 = vld [vmem:[%s245 + $0xe4] sm:$0xf]
      %v325 = vld [vmem:[%s245 + $0xe8] sm:$0xf]
      %v326 = vld [vmem:[%s245 + $0xec] sm:$0xf]
      %v327 = vld [vmem:[%s245 + $0xf0] sm:$0xf]
      %v328 = vld [vmem:[%s245 + $0xf4] sm:$0xf]
      %v329 = vld [vmem:[%s245 + $0xf8] sm:$0xf]
      %v330 = vld [vmem:[%s245 + $0xfc] sm:$0xf]
      %v331 = vld [vmem:[%s245 + $0x100] sm:$0xf]
      %v332 = vld [vmem:[%s245 + $0x104] sm:$0xf]
      %v333 = vld [vmem:[%s245 + $0x108] sm:$0xf]
      %v334 = vld [vmem:[%s245 + $0x10c] sm:$0xf]
      %v335 = vld [vmem:[%s245 + $0x110] sm:$0xf]
      %v336 = vld [vmem:[%s245 + $0x114] sm:$0xf]
      %v337 = vld [vmem:[%s245 + $0x118] sm:$0xf]
      %v338 = vld [vmem:[%s245 + $0x11c] sm:$0xf]
      %v339 = vld [vmem:[%s245 + $0x120] sm:$0xf]
      %v340 = vld [vmem:[%s245 + $0x124] sm:$0xf]
      %v341 = vld [vmem:[%s245 + $0x128] sm:$0xf]
      %v342 = vld [vmem:[%s245 + $0x12c] sm:$0xf]
      %v343 = vld [vmem:[%s245 + $0x130] sm:$0xf]
      %v344 = vld [vmem:[%s245 + $0x134] sm:$0xf]
      %v345 = vld [vmem:[%s245 + $0x138] sm:$0xf]
      %v346 = vld [vmem:[%s245 + $0x13c] sm:$0xf]
      %v347 = vld [vmem:[%s245 + $0x140] sm:$0xf]
      %v348 = vld [vmem:[%s245 + $0x144] sm:$0xf]
      %v349 = vld [vmem:[%s245 + $0x148] sm:$0xf]
      %v350 = vld [vmem:[%s245 + $0x14c] sm:$0xf]
      %v351 = vld [vmem:[%s245 + $0x150] sm:$0xf]
      %v352 = vld [vmem:[%s245 + $0x154] sm:$0xf]
      %v353 = vld [vmem:[%s245 + $0x158] sm:$0xf]
      %v354 = vld [vmem:[%s245 + $0x15c] sm:$0xf]
      %v355 = vld [vmem:[%s245 + $0x160] sm:$0xf]
      %v356 = vld [vmem:[%s245 + $0x164] sm:$0xf]
      %v357 = vld [vmem:[%s245 + $0x168] sm:$0xf]
      %v358 = vld [vmem:[%s245 + $0x16c] sm:$0xf]
      %v359 = vld [vmem:[%s245 + $0x170] sm:$0xf]
      %v360 = vld [vmem:[%s245 + $0x174] sm:$0xf]
      %v361 = vld [vmem:[%s245 + $0x178] sm:$0xf]
      %v362 = vld [vmem:[%s245 + $0x17c] sm:$0xf]
      %v363 = vld [vmem:[%s245 + $0x180] sm:$0xf]
      %v364 = vld [vmem:[%s245 + $0x184] sm:$0xf]
      %v365 = vld [vmem:[%s245 + $0x188] sm:$0xf]
      %v366 = vld [vmem:[%s245 + $0x18c] sm:$0xf]
      %v367 = vld [vmem:[%s245 + $0x190] sm:$0xf]
      %v368 = vld [vmem:[%s245 + $0x194] sm:$0xf]
      %v369 = vld [vmem:[%s245 + $0x198] sm:$0xf]
      %v370 = vld [vmem:[%s245 + $0x19c] sm:$0xf]
      %v371 = vld [vmem:[%s245 + $0x1a0] sm:$0xf]
      %v372 = vld [vmem:[%s245 + $0x1a4] sm:$0xf]
      %v373 = vld [vmem:[%s245 + $0x1a8] sm:$0xf]
      %v374 = vld [vmem:[%s245 + $0x1ac] sm:$0xf]
      %v375 = vld [vmem:[%s245 + $0x1b0] sm:$0xf]
      %v376 = vld [vmem:[%s245 + $0x1b4] sm:$0xf]
      %v377 = vld [vmem:[%s245 + $0x1b8] sm:$0xf]
      %v378 = vld [vmem:[%s245 + $0x1bc] sm:$0xf]
      %v379 = vld [vmem:[%s245 + $0x1c0] sm:$0xf]
      %v380 = vld [vmem:[%s245 + $0x1c4] sm:$0xf]
      %v381 = vld [vmem:[%s245 + $0x1c8] sm:$0xf]
      %v382 = vld [vmem:[%s245 + $0x1cc] sm:$0xf]
      %v383 = vld [vmem:[%s245 + $0x1d0] sm:$0xf]
      %v384 = vld [vmem:[%s245 + $0x1d4] sm:$0xf]
      %v385 = vld [vmem:[%s245 + $0x1d8] sm:$0xf]
      %v386 = vld [vmem:[%s245 + $0x1dc] sm:$0xf]
      %v387 = vld [vmem:[%s245 + $0x1e0] sm:$0xf]
      %v388 = vld [vmem:[%s245 + $0x1e4] sm:$0xf]
      %v389 = vld [vmem:[%s245 + $0x1e8] sm:$0xf]
      %v390 = vld [vmem:[%s245 + $0x1ec] sm:$0xf]
      %v391 = vld [vmem:[%s245 + $0x1f0] sm:$0xf]
      %v392 = vld [vmem:[%s245 + $0x1f4] sm:$0xf]
      %v393 = vld [vmem:[%s245 + $0x1f8] sm:$0xf]
      %v394 = vld [vmem:[%s245 + $0x1fc] sm:$0xf]
      %v395 = vld [vmem:[%s250] sm:$0xf]
      %v396 = vld [vmem:[%s250 + $0x4] sm:$0xf]
      %v397 = vld [vmem:[%s250 + $0x8] sm:$0xf]
      %v398 = vld [vmem:[%s250 + $0xc] sm:$0x3]
      %v527 = vunpack.c.l.b16 %v267
      %v528 = vunpack.c.l.b16 %v268
      %v529 = vunpack.c.l.b16 %v269
      %v530 = vunpack.c.l.b16 %v270
      %v531 = vunpack.c.l.b16 %v271
      %v532 = vunpack.c.l.b16 %v272
      %v533 = vunpack.c.l.b16 %v273
      %v534 = vunpack.c.l.b16 %v274
      %v535 = vunpack.c.l.b16 %v275
      %v536 = vunpack.c.l.b16 %v276
      %v537 = vunpack.c.l.b16 %v277
      %v538 = vunpack.c.l.b16 %v278
      %v539 = vunpack.c.l.b16 %v279
      %v540 = vunpack.c.l.b16 %v280
      %v541 = vunpack.c.l.b16 %v281
      %v542 = vunpack.c.l.b16 %v282
      %v543 = vunpack.c.l.b16 %v283
      %v544 = vunpack.c.l.b16 %v284
      %v545 = vunpack.c.l.b16 %v285
      %v546 = vunpack.c.l.b16 %v286
      %v547 = vunpack.c.l.b16 %v287
      %v548 = vunpack.c.l.b16 %v288
      %v549 = vunpack.c.l.b16 %v289
      %v550 = vunpack.c.l.b16 %v290
      %v551 = vunpack.c.l.b16 %v291
      %v552 = vunpack.c.l.b16 %v292
      %v553 = vunpack.c.l.b16 %v293
      %v554 = vunpack.c.l.b16 %v294
      %v555 = vunpack.c.l.b16 %v295
      %v556 = vunpack.c.l.b16 %v296
      %v557 = vunpack.c.l.b16 %v297
      %v558 = vunpack.c.l.b16 %v298
      %v559 = vunpack.c.l.b16 %v299
      %v560 = vunpack.c.l.b16 %v300
      %v561 = vunpack.c.l.b16 %v301
      %v562 = vunpack.c.l.b16 %v302
      %v563 = vunpack.c.l.b16 %v303
      %v564 = vunpack.c.l.b16 %v304
      %v565 = vunpack.c.l.b16 %v305
      %v566 = vunpack.c.l.b16 %v306
      %v567 = vunpack.c.l.b16 %v307
      %v568 = vunpack.c.l.b16 %v308
      %v569 = vunpack.c.l.b16 %v309
      %v570 = vunpack.c.l.b16 %v310
      %v571 = vunpack.c.l.b16 %v311
      %v572 = vunpack.c.l.b16 %v312
      %v573 = vunpack.c.l.b16 %v313
      %v574 = vunpack.c.l.b16 %v314
      %v575 = vunpack.c.l.b16 %v315
      %v576 = vunpack.c.l.b16 %v316
      %v577 = vunpack.c.l.b16 %v317
      %v578 = vunpack.c.l.b16 %v318
      %v579 = vunpack.c.l.b16 %v319
      %v580 = vunpack.c.l.b16 %v320
      %v581 = vunpack.c.l.b16 %v321
      %v582 = vunpack.c.l.b16 %v322
      %v583 = vunpack.c.l.b16 %v323
      %v584 = vunpack.c.l.b16 %v324
      %v585 = vunpack.c.l.b16 %v325
      %v586 = vunpack.c.l.b16 %v326
      %v587 = vunpack.c.l.b16 %v327
      %v588 = vunpack.c.l.b16 %v328
      %v589 = vunpack.c.l.b16 %v329
      %v590 = vunpack.c.l.b16 %v330
      %v591 = vunpack.c.l.b16 %v331
      %v592 = vunpack.c.l.b16 %v332
      %v593 = vunpack.c.l.b16 %v333
      %v594 = vunpack.c.l.b16 %v334
      %v595 = vunpack.c.l.b16 %v335
      %v596 = vunpack.c.l.b16 %v336
      %v597 = vunpack.c.l.b16 %v337
      %v598 = vunpack.c.l.b16 %v338
      %v599 = vunpack.c.l.b16 %v339
      %v600 = vunpack.c.l.b16 %v340
      %v601 = vunpack.c.l.b16 %v341
      %v602 = vunpack.c.l.b16 %v342
      %v603 = vunpack.c.l.b16 %v343
      %v604 = vunpack.c.l.b16 %v344
      %v605 = vunpack.c.l.b16 %v345
      %v606 = vunpack.c.l.b16 %v346
      %v607 = vunpack.c.l.b16 %v347
      %v608 = vunpack.c.l.b16 %v348
      %v609 = vunpack.c.l.b16 %v349
      %v610 = vunpack.c.l.b16 %v350
      %v611 = vunpack.c.l.b16 %v351
      %v612 = vunpack.c.l.b16 %v352
      %v613 = vunpack.c.l.b16 %v353
      %v614 = vunpack.c.l.b16 %v354
      %v615 = vunpack.c.l.b16 %v355
      %v616 = vunpack.c.l.b16 %v356
      %v617 = vunpack.c.l.b16 %v357
      %v618 = vunpack.c.l.b16 %v358
      %v619 = vunpack.c.l.b16 %v359
      %v620 = vunpack.c.l.b16 %v360
      %v621 = vunpack.c.l.b16 %v361
      %v622 = vunpack.c.l.b16 %v362
      %v623 = vunpack.c.l.b16 %v363
      %v624 = vunpack.c.l.b16 %v364
      %v625 = vunpack.c.l.b16 %v365
      %v626 = vunpack.c.l.b16 %v366
      %v627 = vunpack.c.l.b16 %v367
      %v628 = vunpack.c.l.b16 %v368
      %v629 = vunpack.c.l.b16 %v369
      %v630 = vunpack.c.l.b16 %v370
      %v631 = vunpack.c.l.b16 %v371
      %v632 = vunpack.c.l.b16 %v372
      %v633 = vunpack.c.l.b16 %v373
      %v634 = vunpack.c.l.b16 %v374
      %v635 = vunpack.c.l.b16 %v375
      %v636 = vunpack.c.l.b16 %v376
      %v637 = vunpack.c.l.b16 %v377
      %v638 = vunpack.c.l.b16 %v378
      %v639 = vunpack.c.l.b16 %v379
      %v640 = vunpack.c.l.b16 %v380
      %v641 = vunpack.c.l.b16 %v381
      %v642 = vunpack.c.l.b16 %v382
      %v643 = vunpack.c.l.b16 %v383
      %v644 = vunpack.c.l.b16 %v384
      %v645 = vunpack.c.l.b16 %v385
      %v646 = vunpack.c.l.b16 %v386
      %v647 = vunpack.c.l.b16 %v387
      %v648 = vunpack.c.l.b16 %v388
      %v649 = vunpack.c.l.b16 %v389
      %v650 = vunpack.c.l.b16 %v390
      %v651 = vunpack.c.l.b16 %v391
      %v652 = vunpack.c.l.b16 %v392
      %v653 = vunpack.c.l.b16 %v393
      %v654 = vunpack.c.l.b16 %v394
      %v655 = vpack.c.b16 %v528, %v527
      %v656 = vpack.c.b16 %v530, %v529
      %v657 = vpack.c.b16 %v532, %v531
      %v658 = vpack.c.b16 %v534, %v533
      %v659 = vpack.c.b16 %v536, %v535
      %v660 = vpack.c.b16 %v538, %v537
      %v661 = vpack.c.b16 %v540, %v539
      %v662 = vpack.c.b16 %v542, %v541
      %v663 = vpack.c.b16 %v544, %v543
      %v664 = vpack.c.b16 %v546, %v545
      %v665 = vpack.c.b16 %v548, %v547
      %v666 = vpack.c.b16 %v550, %v549
      %v667 = vpack.c.b16 %v552, %v551
      %v668 = vpack.c.b16 %v554, %v553
      %v669 = vpack.c.b16 %v556, %v555
      %v670 = vpack.c.b16 %v558, %v557
      %v671 = vpack.c.b16 %v560, %v559
      %v672 = vpack.c.b16 %v562, %v561
      %v673 = vpack.c.b16 %v564, %v563
      %v674 = vpack.c.b16 %v566, %v565
      %v675 = vpack.c.b16 %v568, %v567
      %v676 = vpack.c.b16 %v570, %v569
      %v677 = vpack.c.b16 %v572, %v571
      %v678 = vpack.c.b16 %v574, %v573
      %v679 = vpack.c.b16 %v576, %v575
      %v680 = vpack.c.b16 %v578, %v577
      %v681 = vpack.c.b16 %v580, %v579
      %v682 = vpack.c.b16 %v582, %v581
      %v683 = vpack.c.b16 %v584, %v583
      %v684 = vpack.c.b16 %v586, %v585
      %v685 = vpack.c.b16 %v588, %v587
      %v686 = vpack.c.b16 %v590, %v589
      %v687 = vpack.c.b16 %v592, %v591
      %v688 = vpack.c.b16 %v594, %v593
      %v689 = vpack.c.b16 %v596, %v595
      %v690 = vpack.c.b16 %v598, %v597
      %v691 = vpack.c.b16 %v600, %v599
      %v692 = vpack.c.b16 %v602, %v601
      %v693 = vpack.c.b16 %v604, %v603
      %v694 = vpack.c.b16 %v606, %v605
      %v695 = vpack.c.b16 %v608, %v607
      %v696 = vpack.c.b16 %v610, %v609
      %v697 = vpack.c.b16 %v612, %v611
      %v698 = vpack.c.b16 %v614, %v613
      %v699 = vpack.c.b16 %v616, %v615
      %v700 = vpack.c.b16 %v618, %v617
      %v701 = vpack.c.b16 %v620, %v619
      %v702 = vpack.c.b16 %v622, %v621
      %v703 = vpack.c.b16 %v624, %v623
      %v704 = vpack.c.b16 %v626, %v625
      %v705 = vpack.c.b16 %v628, %v627
      %v706 = vpack.c.b16 %v630, %v629
      %v707 = vpack.c.b16 %v632, %v631
      %v708 = vpack.c.b16 %v634, %v633
      %v709 = vpack.c.b16 %v636, %v635
      %v710 = vpack.c.b16 %v638, %v637
      %v711 = vpack.c.b16 %v640, %v639
      %v712 = vpack.c.b16 %v642, %v641
      %v713 = vpack.c.b16 %v644, %v643
      %v714 = vpack.c.b16 %v646, %v645
      %v715 = vpack.c.b16 %v648, %v647
      %v716 = vpack.c.b16 %v650, %v649
      %v717 = vpack.c.b16 %v652, %v651
      %v718 = vpack.c.b16 %v654, %v653
      %v723 = vunpack.c.l.b16 %v395
      %v724 = vunpack.c.l.b16 %v396
      %v725 = vunpack.c.l.b16 %v397
      %v726 = vunpack.c.l.b16 %v398
      %v727 = vpack.c.b16 %v724, %v723
      %v728 = vpack.c.b16 %v726, %v725
      %vm730 = vcmask 220160
      %v732 = vsel %vm730, %v655, 0
      %v735 = vsel %vm730, %v656, 0
      %v738 = vsel %vm730, %v657, 0
      %v741 = vsel %vm730, %v658, 0
      %v744 = vsel %vm730, %v659, 0
      %v747 = vsel %vm730, %v660, 0
      %v750 = vsel %vm730, %v661, 0
      %v753 = vsel %vm730, %v662, 0
      %v756 = vsel %vm730, %v663, 0
      %v759 = vsel %vm730, %v664, 0
      %v762 = vsel %vm730, %v665, 0
      %v765 = vsel %vm730, %v666, 0
      %v768 = vsel %vm730, %v667, 0
      %v771 = vsel %vm730, %v668, 0
      %v774 = vsel %vm730, %v669, 0
      %v777 = vsel %vm730, %v670, 0
      %v780 = vsel %vm730, %v671, 0
      %v783 = vsel %vm730, %v672, 0
      %v786 = vsel %vm730, %v673, 0
      %v789 = vsel %vm730, %v674, 0
      %v792 = vsel %vm730, %v675, 0
      %v795 = vsel %vm730, %v676, 0
      %v798 = vsel %vm730, %v677, 0
      %v801 = vsel %vm730, %v678, 0
      %v804 = vsel %vm730, %v679, 0
      %v807 = vsel %vm730, %v680, 0
      %v810 = vsel %vm730, %v681, 0
      %v813 = vsel %vm730, %v682, 0
      %v816 = vsel %vm730, %v683, 0
      %v819 = vsel %vm730, %v684, 0
      %v822 = vsel %vm730, %v685, 0
      %v825 = vsel %vm730, %v686, 0
      %v828 = vsel %vm730, %v687, 0
      %v831 = vsel %vm730, %v688, 0
      %v834 = vsel %vm730, %v689, 0
      %v837 = vsel %vm730, %v690, 0
      %v840 = vsel %vm730, %v691, 0
      %v843 = vsel %vm730, %v692, 0
      %v846 = vsel %vm730, %v693, 0
      %v849 = vsel %vm730, %v694, 0
      %v852 = vsel %vm730, %v695, 0
      %v855 = vsel %vm730, %v696, 0
      %v858 = vsel %vm730, %v697, 0
      %v861 = vsel %vm730, %v698, 0
      %v864 = vsel %vm730, %v699, 0
      %v867 = vsel %vm730, %v700, 0
      %v870 = vsel %vm730, %v701, 0
      %v873 = vsel %vm730, %v702, 0
      %v876 = vsel %vm730, %v703, 0
      %v879 = vsel %vm730, %v704, 0
      %v882 = vsel %vm730, %v705, 0
      %v885 = vsel %vm730, %v706, 0
      %v888 = vsel %vm730, %v707, 0
      %v891 = vsel %vm730, %v708, 0
      %v894 = vsel %vm730, %v709, 0
      %v897 = vsel %vm730, %v710, 0
      %v900 = vsel %vm730, %v711, 0
      %v903 = vsel %vm730, %v712, 0
      %v906 = vsel %vm730, %v713, 0
      %v909 = vsel %vm730, %v714, 0
      %v912 = vsel %vm730, %v715, 0
      %v915 = vsel %vm730, %v716, 0
      %v918 = vsel %vm730, %v717, 0
      %v921 = vsel %vm730, %v718, 0
      %vm923 = vcmask 1044480
      %vm924 = vcmask 1045504
      %v925 = vsel %vm923, 4294967295, 65535
      %v926 = vsel %vm924, %v925, 0
      %v928 = vand.u32 %v728, %v926
      %930 = vmatprep.subr.bf16.mxu0 0
      %931 = vmatpush1.bf16.msra.mxu0 0
      %932 = vmatprep.subr.bf16.mxu0 0
      %933 = vmatpush1.bf16.msra.mxu0 0
      %934 = vmatprep.subr.bf16.mxu0 0
      %935 = vmatpush1.bf16.msra.mxu0 0
      %936 = vmatprep.subr.bf16.mxu0 0
      %937 = vmatpush1.bf16.msra.mxu0 0
      %938 = vmatprep.subr.bf16.mxu0 0
      %939 = vmatpush1.bf16.msra.mxu0 0
      %940 = vmatprep.subr.bf16.mxu0 0
      %941 = vmatpush1.bf16.msra.mxu0 0
      %942 = vmatprep.subr.bf16.mxu0 0
      %943 = vmatpush1.bf16.msra.mxu0 %v928
      %944 = vmatprep.subr.bf16.mxu0 0
      %945 = vmatpush1.bf16.msra.mxu0 %v727
      %946 = vmatprep.subr.bf16.mxu0 0
      %947 = vmatpush2.bf16.msra.mxu0 0
      %948 = vmatprep.subr.bf16.mxu0 0
      %949 = vmatpush2.bf16.msra.mxu0 0
      %950 = vmatprep.subr.bf16.mxu0 0
      %951 = vmatpush2.bf16.msra.mxu0 0
      %952 = vmatprep.subr.bf16.mxu0 0
      %953 = vmatpush2.bf16.msra.mxu0 0
      %954 = vmatprep.subr.bf16.mxu0 0
      %955 = vmatpush2.bf16.msra.mxu0 0
      %956 = vmatprep.subr.bf16.mxu0 0
      %957 = vmatpush2.bf16.msra.mxu0 0
      %958 = vmatprep.subr.bf16.mxu0 0
      %959 = vmatpush2.bf16.msra.mxu0 0
      %960 = vmatprep.subr.bf16.mxu0 0
      %961 = vmatpush2.bf16.msra.mxu0 0
      %962 = vmatprep.mubr.bf16.mxu0 0
      %963 = vmatmul.mubr.bf16.gmra.mxu0 %v732
      %v964 = vpop.f32.mrf.mxu0
      %v965 = vadd.f32 0.0, %v964
      %v966 = vpop.f32.mrf.mxu0
      %v967 = vpop.f32.mrf.mxu0
      %v968 = vadd.f32 0.0, %v967
      %v969 = vpop.f32.mrf.mxu0
      %970 = vmatprep.mubr.bf16.mxu0 0
      %971 = vmatmul.mubr.bf16.gmra.mxu0 %v735
      %v972 = vpop.f32.mrf.mxu0
      %v973 = vadd.f32 0.0, %v972
      %v974 = vpop.f32.mrf.mxu0
      %v975 = vpop.f32.mrf.mxu0
      %v976 = vadd.f32 0.0, %v975
      %v977 = vpop.f32.mrf.mxu0
      %978 = vmatprep.mubr.bf16.mxu0 0
      %979 = vmatmul.mubr.bf16.gmra.mxu0 %v738
      %v980 = vpop.f32.mrf.mxu0
      %v981 = vadd.f32 0.0, %v980
      %v982 = vpop.f32.mrf.mxu0
      %v983 = vpop.f32.mrf.mxu0
      %v984 = vadd.f32 0.0, %v983
      %v985 = vpop.f32.mrf.mxu0
      %986 = vmatprep.mubr.bf16.mxu0 0
      %987 = vmatmul.mubr.bf16.gmra.mxu0 %v741
      %v988 = vpop.f32.mrf.mxu0
      %v989 = vadd.f32 0.0, %v988
      %v990 = vpop.f32.mrf.mxu0
      %v991 = vpop.f32.mrf.mxu0
      %v992 = vadd.f32 0.0, %v991
      %v993 = vpop.f32.mrf.mxu0
      %994 = vmatprep.mubr.bf16.mxu0 0
      %995 = vmatmul.mubr.bf16.gmra.mxu0 %v744
      %v996 = vpop.f32.mrf.mxu0
      %v997 = vadd.f32 0.0, %v996
      %v998 = vpop.f32.mrf.mxu0
      %v999 = vpop.f32.mrf.mxu0
      %v1000 = vadd.f32 0.0, %v999
      %v1001 = vpop.f32.mrf.mxu0
      %1002 = vmatprep.mubr.bf16.mxu0 0
      %1003 = vmatmul.mubr.bf16.gmra.mxu0 %v747
      %v1004 = vpop.f32.mrf.mxu0
      %v1005 = vadd.f32 0.0, %v1004
      %v1006 = vpop.f32.mrf.mxu0
      %v1007 = vpop.f32.mrf.mxu0
      %v1008 = vadd.f32 0.0, %v1007
      %v1009 = vpop.f32.mrf.mxu0
      %1010 = vmatprep.mubr.bf16.mxu0 0
      %1011 = vmatmul.mubr.bf16.gmra.mxu0 %v750
      %v1012 = vpop.f32.mrf.mxu0
      %v1013 = vadd.f32 0.0, %v1012
      %v1014 = vpop.f32.mrf.mxu0
      %v1015 = vpop.f32.mrf.mxu0
      %v1016 = vadd.f32 0.0, %v1015
      %v1017 = vpop.f32.mrf.mxu0
      %1018 = vmatprep.mubr.bf16.mxu0 0
      %1019 = vmatmul.mubr.bf16.gmra.mxu0 %v753
      %v1020 = vpop.f32.mrf.mxu0
      %v1021 = vadd.f32 0.0, %v1020
      %v1022 = vpop.f32.mrf.mxu0
      %v1023 = vpop.f32.mrf.mxu0
      %v1024 = vadd.f32 0.0, %v1023
      %v1025 = vpop.f32.mrf.mxu0
      %1026 = vmatprep.mubr.bf16.mxu0 0
      %1027 = vmatmul.mubr.bf16.gmra.mxu0 %v756
      %v1028 = vpop.f32.mrf.mxu0
      %v1029 = vadd.f32 0.0, %v1028
      %v1030 = vpop.f32.mrf.mxu0
      %v1031 = vpop.f32.mrf.mxu0
      %v1032 = vadd.f32 0.0, %v1031
      %v1033 = vpop.f32.mrf.mxu0
      %1034 = vmatprep.mubr.bf16.mxu0 0
      %1035 = vmatmul.mubr.bf16.gmra.mxu0 %v759
      %v1036 = vpop.f32.mrf.mxu0
      %v1037 = vadd.f32 0.0, %v1036
      %v1038 = vpop.f32.mrf.mxu0
      %v1039 = vpop.f32.mrf.mxu0
      %v1040 = vadd.f32 0.0, %v1039
      %v1041 = vpop.f32.mrf.mxu0
      %1042 = vmatprep.mubr.bf16.mxu0 0
      %1043 = vmatmul.mubr.bf16.gmra.mxu0 %v762
      %v1044 = vpop.f32.mrf.mxu0
      %v1045 = vadd.f32 0.0, %v1044
      %v1046 = vpop.f32.mrf.mxu0
      %v1047 = vpop.f32.mrf.mxu0
      %v1048 = vadd.f32 0.0, %v1047
      %v1049 = vpop.f32.mrf.mxu0
      %1050 = vmatprep.mubr.bf16.mxu0 0
      %1051 = vmatmul.mubr.bf16.gmra.mxu0 %v765
      %v1052 = vpop.f32.mrf.mxu0
      %v1053 = vadd.f32 0.0, %v1052
      %v1054 = vpop.f32.mrf.mxu0
      %v1055 = vpop.f32.mrf.mxu0
      %v1056 = vadd.f32 0.0, %v1055
      %v1057 = vpop.f32.mrf.mxu0
      %1058 = vmatprep.mubr.bf16.mxu0 0
      %1059 = vmatmul.mubr.bf16.gmra.mxu0 %v768
      %v1060 = vpop.f32.mrf.mxu0
      %v1061 = vadd.f32 0.0, %v1060
      %v1062 = vpop.f32.mrf.mxu0
      %v1063 = vpop.f32.mrf.mxu0
      %v1064 = vadd.f32 0.0, %v1063
      %v1065 = vpop.f32.mrf.mxu0
      %1066 = vmatprep.mubr.bf16.mxu0 0
      %1067 = vmatmul.mubr.bf16.gmra.mxu0 %v771
      %v1068 = vpop.f32.mrf.mxu0
      %v1069 = vadd.f32 0.0, %v1068
      %v1070 = vpop.f32.mrf.mxu0
      %v1071 = vpop.f32.mrf.mxu0
      %v1072 = vadd.f32 0.0, %v1071
      %v1073 = vpop.f32.mrf.mxu0
      %1074 = vmatprep.mubr.bf16.mxu0 0
      %1075 = vmatmul.mubr.bf16.gmra.mxu0 %v774
      %v1076 = vpop.f32.mrf.mxu0
      %v1077 = vadd.f32 0.0, %v1076
      %v1078 = vpop.f32.mrf.mxu0
      %v1079 = vpop.f32.mrf.mxu0
      %v1080 = vadd.f32 0.0, %v1079
      %v1081 = vpop.f32.mrf.mxu0
      %1082 = vmatprep.mubr.bf16.mxu0 0
      %1083 = vmatmul.mubr.bf16.gmra.mxu0 %v777
      %v1084 = vpop.f32.mrf.mxu0
      %v1085 = vadd.f32 0.0, %v1084
      %v1086 = vpop.f32.mrf.mxu0
      %v1087 = vpop.f32.mrf.mxu0
      %v1088 = vadd.f32 0.0, %v1087
      %v1089 = vpop.f32.mrf.mxu0
      %1090 = vmatprep.mubr.bf16.mxu0 0
      %1091 = vmatmul.mubr.bf16.gmra.mxu0 %v780
      %v1092 = vpop.f32.mrf.mxu0
      %v1093 = vadd.f32 0.0, %v1092
      %v1094 = vpop.f32.mrf.mxu0
      %v1095 = vpop.f32.mrf.mxu0
      %v1096 = vadd.f32 0.0, %v1095
      %v1097 = vpop.f32.mrf.mxu0
      %1098 = vmatprep.mubr.bf16.mxu0 0
      %1099 = vmatmul.mubr.bf16.gmra.mxu0 %v783
      %v1100 = vpop.f32.mrf.mxu0
      %v1101 = vadd.f32 0.0, %v1100
      %v1102 = vpop.f32.mrf.mxu0
      %v1103 = vpop.f32.mrf.mxu0
      %v1104 = vadd.f32 0.0, %v1103
      %v1105 = vpop.f32.mrf.mxu0
      %1106 = vmatprep.mubr.bf16.mxu0 0
      %1107 = vmatmul.mubr.bf16.gmra.mxu0 %v786
      %v1108 = vpop.f32.mrf.mxu0
      %v1109 = vadd.f32 0.0, %v1108
      %v1110 = vpop.f32.mrf.mxu0
      %v1111 = vpop.f32.mrf.mxu0
      %v1112 = vadd.f32 0.0, %v1111
      %v1113 = vpop.f32.mrf.mxu0
      %1114 = vmatprep.mubr.bf16.mxu0 0
      %1115 = vmatmul.mubr.bf16.gmra.mxu0 %v789
      %v1116 = vpop.f32.mrf.mxu0
      %v1117 = vadd.f32 0.0, %v1116
      %v1118 = vpop.f32.mrf.mxu0
      %v1119 = vpop.f32.mrf.mxu0
      %v1120 = vadd.f32 0.0, %v1119
      %v1121 = vpop.f32.mrf.mxu0
      %1122 = vmatprep.mubr.bf16.mxu0 0
      %1123 = vmatmul.mubr.bf16.gmra.mxu0 %v792
      %v1124 = vpop.f32.mrf.mxu0
      %v1125 = vadd.f32 0.0, %v1124
      %v1126 = vpop.f32.mrf.mxu0
      %v1127 = vpop.f32.mrf.mxu0
      %v1128 = vadd.f32 0.0, %v1127
      %v1129 = vpop.f32.mrf.mxu0
      %1130 = vmatprep.mubr.bf16.mxu0 0
      %1131 = vmatmul.mubr.bf16.gmra.mxu0 %v795
      %v1132 = vpop.f32.mrf.mxu0
      %v1133 = vadd.f32 0.0, %v1132
      %v1134 = vpop.f32.mrf.mxu0
      %v1135 = vpop.f32.mrf.mxu0
      %v1136 = vadd.f32 0.0, %v1135
      %v1137 = vpop.f32.mrf.mxu0
      %1138 = vmatprep.mubr.bf16.mxu0 0
      %1139 = vmatmul.mubr.bf16.gmra.mxu0 %v798
      %v1140 = vpop.f32.mrf.mxu0
      %v1141 = vadd.f32 0.0, %v1140
      %v1142 = vpop.f32.mrf.mxu0
      %v1143 = vpop.f32.mrf.mxu0
      %v1144 = vadd.f32 0.0, %v1143
      %v1145 = vpop.f32.mrf.mxu0
      %1146 = vmatprep.mubr.bf16.mxu0 0
      %1147 = vmatmul.mubr.bf16.gmra.mxu0 %v801
      %v1148 = vpop.f32.mrf.mxu0
      %v1149 = vadd.f32 0.0, %v1148
      %v1150 = vpop.f32.mrf.mxu0
      %v1151 = vpop.f32.mrf.mxu0
      %v1152 = vadd.f32 0.0, %v1151
      %v1153 = vpop.f32.mrf.mxu0
      %1154 = vmatprep.mubr.bf16.mxu0 0
      %1155 = vmatmul.mubr.bf16.gmra.mxu0 %v804
      %v1156 = vpop.f32.mrf.mxu0
      %v1157 = vadd.f32 0.0, %v1156
      %v1158 = vpop.f32.mrf.mxu0
      %v1159 = vpop.f32.mrf.mxu0
      %v1160 = vadd.f32 0.0, %v1159
      %v1161 = vpop.f32.mrf.mxu0
      %1162 = vmatprep.mubr.bf16.mxu0 0
      %1163 = vmatmul.mubr.bf16.gmra.mxu0 %v807
      %v1164 = vpop.f32.mrf.mxu0
      %v1165 = vadd.f32 0.0, %v1164
      %v1166 = vpop.f32.mrf.mxu0
      %v1167 = vpop.f32.mrf.mxu0
      %v1168 = vadd.f32 0.0, %v1167
      %v1169 = vpop.f32.mrf.mxu0
      %1170 = vmatprep.mubr.bf16.mxu0 0
      %1171 = vmatmul.mubr.bf16.gmra.mxu0 %v810
      %v1172 = vpop.f32.mrf.mxu0
      %v1173 = vadd.f32 0.0, %v1172
      %v1174 = vpop.f32.mrf.mxu0
      %v1175 = vpop.f32.mrf.mxu0
      %v1176 = vadd.f32 0.0, %v1175
      %v1177 = vpop.f32.mrf.mxu0
      %1178 = vmatprep.mubr.bf16.mxu0 0
      %1179 = vmatmul.mubr.bf16.gmra.mxu0 %v813
      %v1180 = vpop.f32.mrf.mxu0
      %v1181 = vadd.f32 0.0, %v1180
      %v1182 = vpop.f32.mrf.mxu0
      %v1183 = vpop.f32.mrf.mxu0
      %v1184 = vadd.f32 0.0, %v1183
      %v1185 = vpop.f32.mrf.mxu0
      %1186 = vmatprep.mubr.bf16.mxu0 0
      %1187 = vmatmul.mubr.bf16.gmra.mxu0 %v816
      %v1188 = vpop.f32.mrf.mxu0
      %v1189 = vadd.f32 0.0, %v1188
      %v1190 = vpop.f32.mrf.mxu0
      %v1191 = vpop.f32.mrf.mxu0
      %v1192 = vadd.f32 0.0, %v1191
      %v1193 = vpop.f32.mrf.mxu0
      %1194 = vmatprep.mubr.bf16.mxu0 0
      %1195 = vmatmul.mubr.bf16.gmra.mxu0 %v819
      %v1196 = vpop.f32.mrf.mxu0
      %v1197 = vadd.f32 0.0, %v1196
      %v1198 = vpop.f32.mrf.mxu0
      %v1199 = vpop.f32.mrf.mxu0
      %v1200 = vadd.f32 0.0, %v1199
      %v1201 = vpop.f32.mrf.mxu0
      %1202 = vmatprep.mubr.bf16.mxu0 0
      %1203 = vmatmul.mubr.bf16.gmra.mxu0 %v822
      %v1204 = vpop.f32.mrf.mxu0
      %v1205 = vadd.f32 0.0, %v1204
      %v1206 = vpop.f32.mrf.mxu0
      %v1207 = vpop.f32.mrf.mxu0
      %v1208 = vadd.f32 0.0, %v1207
      %v1209 = vpop.f32.mrf.mxu0
      %1210 = vmatprep.mubr.bf16.mxu0 0
      %1211 = vmatmul.mubr.bf16.gmra.mxu0 %v825
      %v1212 = vpop.f32.mrf.mxu0
      %v1213 = vadd.f32 0.0, %v1212
      %v1214 = vpop.f32.mrf.mxu0
      %v1215 = vpop.f32.mrf.mxu0
      %v1216 = vadd.f32 0.0, %v1215
      %v1217 = vpop.f32.mrf.mxu0
      %1218 = vmatprep.mubr.bf16.mxu0 0
      %1219 = vmatmul.mubr.bf16.gmra.mxu0 %v828
      %v1220 = vpop.f32.mrf.mxu0
      %v1221 = vadd.f32 0.0, %v1220
      %v1222 = vpop.f32.mrf.mxu0
      %v1223 = vpop.f32.mrf.mxu0
      %v1224 = vadd.f32 0.0, %v1223
      %v1225 = vpop.f32.mrf.mxu0
      %1226 = vmatprep.mubr.bf16.mxu0 0
      %1227 = vmatmul.mubr.bf16.gmra.mxu0 %v831
      %v1228 = vpop.f32.mrf.mxu0
      %v1229 = vadd.f32 0.0, %v1228
      %v1230 = vpop.f32.mrf.mxu0
      %v1231 = vpop.f32.mrf.mxu0
      %v1232 = vadd.f32 0.0, %v1231
      %v1233 = vpop.f32.mrf.mxu0
      %1234 = vmatprep.mubr.bf16.mxu0 0
      %1235 = vmatmul.mubr.bf16.gmra.mxu0 %v834
      %v1236 = vpop.f32.mrf.mxu0
      %v1237 = vadd.f32 0.0, %v1236
      %v1238 = vpop.f32.mrf.mxu0
      %v1239 = vpop.f32.mrf.mxu0
      %v1240 = vadd.f32 0.0, %v1239
      %v1241 = vpop.f32.mrf.mxu0
      %1242 = vmatprep.mubr.bf16.mxu0 0
      %1243 = vmatmul.mubr.bf16.gmra.mxu0 %v837
      %v1244 = vpop.f32.mrf.mxu0
      %v1245 = vadd.f32 0.0, %v1244
      %v1246 = vpop.f32.mrf.mxu0
      %v1247 = vpop.f32.mrf.mxu0
      %v1248 = vadd.f32 0.0, %v1247
      %v1249 = vpop.f32.mrf.mxu0
      %1250 = vmatprep.mubr.bf16.mxu0 0
      %1251 = vmatmul.mubr.bf16.gmra.mxu0 %v840
      %v1252 = vpop.f32.mrf.mxu0
      %v1253 = vadd.f32 0.0, %v1252
      %v1254 = vpop.f32.mrf.mxu0
      %v1255 = vpop.f32.mrf.mxu0
      %v1256 = vadd.f32 0.0, %v1255
      %v1257 = vpop.f32.mrf.mxu0
      %1258 = vmatprep.mubr.bf16.mxu0 0
      %1259 = vmatmul.mubr.bf16.gmra.mxu0 %v843
      %v1260 = vpop.f32.mrf.mxu0
      %v1261 = vadd.f32 0.0, %v1260
      %v1262 = vpop.f32.mrf.mxu0
      %v1263 = vpop.f32.mrf.mxu0
      %v1264 = vadd.f32 0.0, %v1263
      %v1265 = vpop.f32.mrf.mxu0
      %1266 = vmatprep.mubr.bf16.mxu0 0
      %1267 = vmatmul.mubr.bf16.gmra.mxu0 %v846
      %v1268 = vpop.f32.mrf.mxu0
      %v1269 = vadd.f32 0.0, %v1268
      %v1270 = vpop.f32.mrf.mxu0
      %v1271 = vpop.f32.mrf.mxu0
      %v1272 = vadd.f32 0.0, %v1271
      %v1273 = vpop.f32.mrf.mxu0
      %1274 = vmatprep.mubr.bf16.mxu0 0
      %1275 = vmatmul.mubr.bf16.gmra.mxu0 %v849
      %v1276 = vpop.f32.mrf.mxu0
      %v1277 = vadd.f32 0.0, %v1276
      %v1278 = vpop.f32.mrf.mxu0
      %v1279 = vpop.f32.mrf.mxu0
      %v1280 = vadd.f32 0.0, %v1279
      %v1281 = vpop.f32.mrf.mxu0
      %1282 = vmatprep.mubr.bf16.mxu0 0
      %1283 = vmatmul.mubr.bf16.gmra.mxu0 %v852
      %v1284 = vpop.f32.mrf.mxu0
      %v1285 = vadd.f32 0.0, %v1284
      %v1286 = vpop.f32.mrf.mxu0
      %v1287 = vpop.f32.mrf.mxu0
      %v1288 = vadd.f32 0.0, %v1287
      %v1289 = vpop.f32.mrf.mxu0
      %1290 = vmatprep.mubr.bf16.mxu0 0
      %1291 = vmatmul.mubr.bf16.gmra.mxu0 %v855
      %v1292 = vpop.f32.mrf.mxu0
      %v1293 = vadd.f32 0.0, %v1292
      %v1294 = vpop.f32.mrf.mxu0
      %v1295 = vpop.f32.mrf.mxu0
      %v1296 = vadd.f32 0.0, %v1295
      %v1297 = vpop.f32.mrf.mxu0
      %1298 = vmatprep.mubr.bf16.mxu0 0
      %1299 = vmatmul.mubr.bf16.gmra.mxu0 %v858
      %v1300 = vpop.f32.mrf.mxu0
      %v1301 = vadd.f32 0.0, %v1300
      %v1302 = vpop.f32.mrf.mxu0
      %v1303 = vpop.f32.mrf.mxu0
      %v1304 = vadd.f32 0.0, %v1303
      %v1305 = vpop.f32.mrf.mxu0
      %1306 = vmatprep.mubr.bf16.mxu0 0
      %1307 = vmatmul.mubr.bf16.gmra.mxu0 %v861
      %v1308 = vpop.f32.mrf.mxu0
      %v1309 = vadd.f32 0.0, %v1308
      %v1310 = vpop.f32.mrf.mxu0
      %v1311 = vpop.f32.mrf.mxu0
      %v1312 = vadd.f32 0.0, %v1311
      %v1313 = vpop.f32.mrf.mxu0
      %1314 = vmatprep.mubr.bf16.mxu0 0
      %1315 = vmatmul.mubr.bf16.gmra.mxu0 %v864
      %v1316 = vpop.f32.mrf.mxu0
      %v1317 = vadd.f32 0.0, %v1316
      %v1318 = vpop.f32.mrf.mxu0
      %v1319 = vpop.f32.mrf.mxu0
      %v1320 = vadd.f32 0.0, %v1319
      %v1321 = vpop.f32.mrf.mxu0
      %1322 = vmatprep.mubr.bf16.mxu0 0
      %1323 = vmatmul.mubr.bf16.gmra.mxu0 %v867
      %v1324 = vpop.f32.mrf.mxu0
      %v1325 = vadd.f32 0.0, %v1324
      %v1326 = vpop.f32.mrf.mxu0
      %v1327 = vpop.f32.mrf.mxu0
      %v1328 = vadd.f32 0.0, %v1327
      %v1329 = vpop.f32.mrf.mxu0
      %1330 = vmatprep.mubr.bf16.mxu0 0
      %1331 = vmatmul.mubr.bf16.gmra.mxu0 %v870
      %v1332 = vpop.f32.mrf.mxu0
      %v1333 = vadd.f32 0.0, %v1332
      %v1334 = vpop.f32.mrf.mxu0
      %v1335 = vpop.f32.mrf.mxu0
      %v1336 = vadd.f32 0.0, %v1335
      %v1337 = vpop.f32.mrf.mxu0
      %1338 = vmatprep.mubr.bf16.mxu0 0
      %1339 = vmatmul.mubr.bf16.gmra.mxu0 %v873
      %v1340 = vpop.f32.mrf.mxu0
      %v1341 = vadd.f32 0.0, %v1340
      %v1342 = vpop.f32.mrf.mxu0
      %v1343 = vpop.f32.mrf.mxu0
      %v1344 = vadd.f32 0.0, %v1343
      %v1345 = vpop.f32.mrf.mxu0
      %1346 = vmatprep.mubr.bf16.mxu0 0
      %1347 = vmatmul.mubr.bf16.gmra.mxu0 %v876
      %v1348 = vpop.f32.mrf.mxu0
      %v1349 = vadd.f32 0.0, %v1348
      %v1350 = vpop.f32.mrf.mxu0
      %v1351 = vpop.f32.mrf.mxu0
      %v1352 = vadd.f32 0.0, %v1351
      %v1353 = vpop.f32.mrf.mxu0
      %1354 = vmatprep.mubr.bf16.mxu0 0
      %1355 = vmatmul.mubr.bf16.gmra.mxu0 %v879
      %v1356 = vpop.f32.mrf.mxu0
      %v1357 = vadd.f32 0.0, %v1356
      %v1358 = vpop.f32.mrf.mxu0
      %v1359 = vpop.f32.mrf.mxu0
      %v1360 = vadd.f32 0.0, %v1359
      %v1361 = vpop.f32.mrf.mxu0
      %1362 = vmatprep.mubr.bf16.mxu0 0
      %1363 = vmatmul.mubr.bf16.gmra.mxu0 %v882
      %v1364 = vpop.f32.mrf.mxu0
      %v1365 = vadd.f32 0.0, %v1364
      %v1366 = vpop.f32.mrf.mxu0
      %v1367 = vpop.f32.mrf.mxu0
      %v1368 = vadd.f32 0.0, %v1367
      %v1369 = vpop.f32.mrf.mxu0
      %1370 = vmatprep.mubr.bf16.mxu0 0
      %1371 = vmatmul.mubr.bf16.gmra.mxu0 %v885
      %v1372 = vpop.f32.mrf.mxu0
      %v1373 = vadd.f32 0.0, %v1372
      %v1374 = vpop.f32.mrf.mxu0
      %v1375 = vpop.f32.mrf.mxu0
      %v1376 = vadd.f32 0.0, %v1375
      %v1377 = vpop.f32.mrf.mxu0
      %1378 = vmatprep.mubr.bf16.mxu0 0
      %1379 = vmatmul.mubr.bf16.gmra.mxu0 %v888
      %v1380 = vpop.f32.mrf.mxu0
      %v1381 = vadd.f32 0.0, %v1380
      %v1382 = vpop.f32.mrf.mxu0
      %v1383 = vpop.f32.mrf.mxu0
      %v1384 = vadd.f32 0.0, %v1383
      %v1385 = vpop.f32.mrf.mxu0
      %1386 = vmatprep.mubr.bf16.mxu0 0
      %1387 = vmatmul.mubr.bf16.gmra.mxu0 %v891
      %v1388 = vpop.f32.mrf.mxu0
      %v1389 = vadd.f32 0.0, %v1388
      %v1390 = vpop.f32.mrf.mxu0
      %v1391 = vpop.f32.mrf.mxu0
      %v1392 = vadd.f32 0.0, %v1391
      %v1393 = vpop.f32.mrf.mxu0
      %1394 = vmatprep.mubr.bf16.mxu0 0
      %1395 = vmatmul.mubr.bf16.gmra.mxu0 %v894
      %v1396 = vpop.f32.mrf.mxu0
      %v1397 = vadd.f32 0.0, %v1396
      %v1398 = vpop.f32.mrf.mxu0
      %v1399 = vpop.f32.mrf.mxu0
      %v1400 = vadd.f32 0.0, %v1399
      %v1401 = vpop.f32.mrf.mxu0
      %1402 = vmatprep.mubr.bf16.mxu0 0
      %1403 = vmatmul.mubr.bf16.gmra.mxu0 %v897
      %v1404 = vpop.f32.mrf.mxu0
      %v1405 = vadd.f32 0.0, %v1404
      %v1406 = vpop.f32.mrf.mxu0
      %v1407 = vpop.f32.mrf.mxu0
      %v1408 = vadd.f32 0.0, %v1407
      %v1409 = vpop.f32.mrf.mxu0
      %1410 = vmatprep.mubr.bf16.mxu0 0
      %1411 = vmatmul.mubr.bf16.gmra.mxu0 %v900
      %v1412 = vpop.f32.mrf.mxu0
      %v1413 = vadd.f32 0.0, %v1412
      %v1414 = vpop.f32.mrf.mxu0
      %v1415 = vpop.f32.mrf.mxu0
      %v1416 = vadd.f32 0.0, %v1415
      %v1417 = vpop.f32.mrf.mxu0
      %1418 = vmatprep.mubr.bf16.mxu0 0
      %1419 = vmatmul.mubr.bf16.gmra.mxu0 %v903
      %v1420 = vpop.f32.mrf.mxu0
      %v1421 = vadd.f32 0.0, %v1420
      %v1422 = vpop.f32.mrf.mxu0
      %v1423 = vpop.f32.mrf.mxu0
      %v1424 = vadd.f32 0.0, %v1423
      %v1425 = vpop.f32.mrf.mxu0
      %1426 = vmatprep.mubr.bf16.mxu0 0
      %1427 = vmatmul.mubr.bf16.gmra.mxu0 %v906
      %v1428 = vpop.f32.mrf.mxu0
      %v1429 = vadd.f32 0.0, %v1428
      %v1430 = vpop.f32.mrf.mxu0
      %v1431 = vpop.f32.mrf.mxu0
      %v1432 = vadd.f32 0.0, %v1431
      %v1433 = vpop.f32.mrf.mxu0
      %1434 = vmatprep.mubr.bf16.mxu0 0
      %1435 = vmatmul.mubr.bf16.gmra.mxu0 %v909
      %v1436 = vpop.f32.mrf.mxu0
      %v1437 = vadd.f32 0.0, %v1436
      %v1438 = vpop.f32.mrf.mxu0
      %v1439 = vpop.f32.mrf.mxu0
      %v1440 = vadd.f32 0.0, %v1439
      %v1441 = vpop.f32.mrf.mxu0
      %1442 = vmatprep.mubr.bf16.mxu0 0
      %1443 = vmatmul.mubr.bf16.gmra.mxu0 %v912
      %v1444 = vpop.f32.mrf.mxu0
      %v1445 = vadd.f32 0.0, %v1444
      %v1446 = vpop.f32.mrf.mxu0
      %v1447 = vpop.f32.mrf.mxu0
      %v1448 = vadd.f32 0.0, %v1447
      %v1449 = vpop.f32.mrf.mxu0
      %1450 = vmatprep.mubr.bf16.mxu0 0
      %1451 = vmatmul.mubr.bf16.gmra.mxu0 %v915
      %v1452 = vpop.f32.mrf.mxu0
      %v1453 = vadd.f32 0.0, %v1452
      %v1454 = vpop.f32.mrf.mxu0
      %v1455 = vpop.f32.mrf.mxu0
      %v1456 = vadd.f32 0.0, %v1455
      %v1457 = vpop.f32.mrf.mxu0
      %1458 = vmatprep.mubr.bf16.mxu0 0
      %1459 = vmatmul.mubr.bf16.gmra.mxu0 %v918
      %v1460 = vpop.f32.mrf.mxu0
      %v1461 = vadd.f32 0.0, %v1460
      %v1462 = vpop.f32.mrf.mxu0
      %v1463 = vpop.f32.mrf.mxu0
      %v1464 = vadd.f32 0.0, %v1463
      %v1465 = vpop.f32.mrf.mxu0
      %1466 = vmatprep.mubr.bf16.mxu0 0
      %1467 = vmatmul.mubr.bf16.gmra.mxu0 %v921
      %v1468 = vpop.f32.mrf.mxu0
      %v1469 = vadd.f32 0.0, %v1468
      %v1470 = vpop.f32.mrf.mxu0
      %v1471 = vpop.f32.mrf.mxu0
      %v1472 = vadd.f32 0.0, %v1471
      %v1473 = vpop.f32.mrf.mxu0
      %1474 = vdwg.mxu0
      %v1475 = vld [vmem:[%s253] sm:$0x1]
      %v1477 = vlaneseq
      %v1478 = vshrl.u32 %v1477, 7
      %v1479 = vsub.s32 0, %v1478
      %v1480 = vrot.slane %v1475, %v1479
      %v1482 = vmul.f32 %v965, %v1480
      %v1483 = vmul.f32 %v968, %v1480
      %v1484 = vmul.f32 %v973, %v1480
      %v1485 = vmul.f32 %v976, %v1480
      %v1486 = vmul.f32 %v981, %v1480
      %v1487 = vmul.f32 %v984, %v1480
      %v1488 = vmul.f32 %v989, %v1480
      %v1489 = vmul.f32 %v992, %v1480
      %v1490 = vmul.f32 %v997, %v1480
      %v1491 = vmul.f32 %v1000, %v1480
      %v1492 = vmul.f32 %v1005, %v1480
      %v1493 = vmul.f32 %v1008, %v1480
      %v1494 = vmul.f32 %v1013, %v1480
      %v1495 = vmul.f32 %v1016, %v1480
      %v1496 = vmul.f32 %v1021, %v1480
      %v1497 = vmul.f32 %v1024, %v1480
      %v1498 = vmul.f32 %v1029, %v1480
      %v1499 = vmul.f32 %v1032, %v1480
      %v1500 = vmul.f32 %v1037, %v1480
      %v1501 = vmul.f32 %v1040, %v1480
      %v1502 = vmul.f32 %v1045, %v1480
      %v1503 = vmul.f32 %v1048, %v1480
      %v1504 = vmul.f32 %v1053, %v1480
      %v1505 = vmul.f32 %v1056, %v1480
      %v1506 = vmul.f32 %v1061, %v1480
      %v1507 = vmul.f32 %v1064, %v1480
      %v1508 = vmul.f32 %v1069, %v1480
      %v1509 = vmul.f32 %v1072, %v1480
      %v1510 = vmul.f32 %v1077, %v1480
      %v1511 = vmul.f32 %v1080, %v1480
      %v1512 = vmul.f32 %v1085, %v1480
      %v1513 = vmul.f32 %v1088, %v1480
      %v1514 = vmul.f32 %v1093, %v1480
      %v1515 = vmul.f32 %v1096, %v1480
      %v1516 = vmul.f32 %v1101, %v1480
      %v1517 = vmul.f32 %v1104, %v1480
      %v1518 = vmul.f32 %v1109, %v1480
      %v1519 = vmul.f32 %v1112, %v1480
      %v1520 = vmul.f32 %v1117, %v1480
      %v1521 = vmul.f32 %v1120, %v1480
      %v1522 = vmul.f32 %v1125, %v1480
      %v1523 = vmul.f32 %v1128, %v1480
      %v1524 = vmul.f32 %v1133, %v1480
      %v1525 = vmul.f32 %v1136, %v1480
      %v1526 = vmul.f32 %v1141, %v1480
      %v1527 = vmul.f32 %v1144, %v1480
      %v1528 = vmul.f32 %v1149, %v1480
      %v1529 = vmul.f32 %v1152, %v1480
      %v1530 = vmul.f32 %v1157, %v1480
      %v1531 = vmul.f32 %v1160, %v1480
      %v1532 = vmul.f32 %v1165, %v1480
      %v1533 = vmul.f32 %v1168, %v1480
      %v1534 = vmul.f32 %v1173, %v1480
      %v1535 = vmul.f32 %v1176, %v1480
      %v1536 = vmul.f32 %v1181, %v1480
      %v1537 = vmul.f32 %v1184, %v1480
      %v1538 = vmul.f32 %v1189, %v1480
      %v1539 = vmul.f32 %v1192, %v1480
      %v1540 = vmul.f32 %v1197, %v1480
      %v1541 = vmul.f32 %v1200, %v1480
      %v1542 = vmul.f32 %v1205, %v1480
      %v1543 = vmul.f32 %v1208, %v1480
      %v1544 = vmul.f32 %v1213, %v1480
      %v1545 = vmul.f32 %v1216, %v1480
      %v1546 = vmul.f32 %v1221, %v1480
      %v1547 = vmul.f32 %v1224, %v1480
      %v1548 = vmul.f32 %v1229, %v1480
      %v1549 = vmul.f32 %v1232, %v1480
      %v1550 = vmul.f32 %v1237, %v1480
      %v1551 = vmul.f32 %v1240, %v1480
      %v1552 = vmul.f32 %v1245, %v1480
      %v1553 = vmul.f32 %v1248, %v1480
      %v1554 = vmul.f32 %v1253, %v1480
      %v1555 = vmul.f32 %v1256, %v1480
      %v1556 = vmul.f32 %v1261, %v1480
      %v1557 = vmul.f32 %v1264, %v1480
      %v1558 = vmul.f32 %v1269, %v1480
      %v1559 = vmul.f32 %v1272, %v1480
      %v1560 = vmul.f32 %v1277, %v1480
      %v1561 = vmul.f32 %v1280, %v1480
      %v1562 = vmul.f32 %v1285, %v1480
      %v1563 = vmul.f32 %v1288, %v1480
      %v1564 = vmul.f32 %v1293, %v1480
      %v1565 = vmul.f32 %v1296, %v1480
      %v1566 = vmul.f32 %v1301, %v1480
      %v1567 = vmul.f32 %v1304, %v1480
      %v1568 = vmul.f32 %v1309, %v1480
      %v1569 = vmul.f32 %v1312, %v1480
      %v1570 = vmul.f32 %v1317, %v1480
      %v1571 = vmul.f32 %v1320, %v1480
      %v1572 = vmul.f32 %v1325, %v1480
      %v1573 = vmul.f32 %v1328, %v1480
      %v1574 = vmul.f32 %v1333, %v1480
      %v1575 = vmul.f32 %v1336, %v1480
      %v1576 = vmul.f32 %v1341, %v1480
      %v1577 = vmul.f32 %v1344, %v1480
      %v1578 = vmul.f32 %v1349, %v1480
      %v1579 = vmul.f32 %v1352, %v1480
      %v1580 = vmul.f32 %v1357, %v1480
      %v1581 = vmul.f32 %v1360, %v1480
      %v1582 = vmul.f32 %v1365, %v1480
      %v1583 = vmul.f32 %v1368, %v1480
      %v1584 = vmul.f32 %v1373, %v1480
      %v1585 = vmul.f32 %v1376, %v1480
      %v1586 = vmul.f32 %v1381, %v1480
      %v1587 = vmul.f32 %v1384, %v1480
      %v1588 = vmul.f32 %v1389, %v1480
      %v1589 = vmul.f32 %v1392, %v1480
      %v1590 = vmul.f32 %v1397, %v1480
      %v1591 = vmul.f32 %v1400, %v1480
      %v1592 = vmul.f32 %v1405, %v1480
      %v1593 = vmul.f32 %v1408, %v1480
      %v1594 = vmul.f32 %v1413, %v1480
      %v1595 = vmul.f32 %v1416, %v1480
      %v1596 = vmul.f32 %v1421, %v1480
      %v1597 = vmul.f32 %v1424, %v1480
      %v1598 = vmul.f32 %v1429, %v1480
      %v1599 = vmul.f32 %v1432, %v1480
      %v1600 = vmul.f32 %v1437, %v1480
      %v1601 = vmul.f32 %v1440, %v1480
      %v1602 = vmul.f32 %v1445, %v1480
      %v1603 = vmul.f32 %v1448, %v1480
      %v1604 = vmul.f32 %v1453, %v1480
      %v1605 = vmul.f32 %v1456, %v1480
      %v1606 = vmul.f32 %v1461, %v1480
      %v1607 = vmul.f32 %v1464, %v1480
      %v1608 = vmul.f32 %v1469, %v1480
      %v1609 = vmul.f32 %v1472, %v1480
      %v1610 = vld [vmem:[%s256] sm:$0x1]
      %v1612 = vlaneseq
      %v1613 = vshrl.u32 %v1612, 7
      %v1614 = vsub.s32 0, %v1613
      %v1615 = vrot.slane %v1610, %v1614
      %v1617 = vadd.f32 %v1482, %v1615
      %v1618 = vadd.f32 %v1483, %v1615
      %v1619 = vadd.f32 %v1484, %v1615
      %v1620 = vadd.f32 %v1485, %v1615
      %v1621 = vadd.f32 %v1486, %v1615
      %v1622 = vadd.f32 %v1487, %v1615
      %v1623 = vadd.f32 %v1488, %v1615
      %v1624 = vadd.f32 %v1489, %v1615
      %v1625 = vadd.f32 %v1490, %v1615
      %v1626 = vadd.f32 %v1491, %v1615
      %v1627 = vadd.f32 %v1492, %v1615
      %v1628 = vadd.f32 %v1493, %v1615
      %v1629 = vadd.f32 %v1494, %v1615
      %v1630 = vadd.f32 %v1495, %v1615
      %v1631 = vadd.f32 %v1496, %v1615
      %v1632 = vadd.f32 %v1497, %v1615
      %v1633 = vadd.f32 %v1498, %v1615
      %v1634 = vadd.f32 %v1499, %v1615
      %v1635 = vadd.f32 %v1500, %v1615
      %v1636 = vadd.f32 %v1501, %v1615
      %v1637 = vadd.f32 %v1502, %v1615
      %v1638 = vadd.f32 %v1503, %v1615
      %v1639 = vadd.f32 %v1504, %v1615
      %v1640 = vadd.f32 %v1505, %v1615
      %v1641 = vadd.f32 %v1506, %v1615
      %v1642 = vadd.f32 %v1507, %v1615
      %v1643 = vadd.f32 %v1508, %v1615
      %v1644 = vadd.f32 %v1509, %v1615
      %v1645 = vadd.f32 %v1510, %v1615
      %v1646 = vadd.f32 %v1511, %v1615
      %v1647 = vadd.f32 %v1512, %v1615
      %v1648 = vadd.f32 %v1513, %v1615
      %v1649 = vadd.f32 %v1514, %v1615
      %v1650 = vadd.f32 %v1515, %v1615
      %v1651 = vadd.f32 %v1516, %v1615
      %v1652 = vadd.f32 %v1517, %v1615
      %v1653 = vadd.f32 %v1518, %v1615
      %v1654 = vadd.f32 %v1519, %v1615
      %v1655 = vadd.f32 %v1520, %v1615
      %v1656 = vadd.f32 %v1521, %v1615
      %v1657 = vadd.f32 %v1522, %v1615
      %v1658 = vadd.f32 %v1523, %v1615
      %v1659 = vadd.f32 %v1524, %v1615
      %v1660 = vadd.f32 %v1525, %v1615
      %v1661 = vadd.f32 %v1526, %v1615
      %v1662 = vadd.f32 %v1527, %v1615
      %v1663 = vadd.f32 %v1528, %v1615
      %v1664 = vadd.f32 %v1529, %v1615
      %v1665 = vadd.f32 %v1530, %v1615
      %v1666 = vadd.f32 %v1531, %v1615
      %v1667 = vadd.f32 %v1532, %v1615
      %v1668 = vadd.f32 %v1533, %v1615
      %v1669 = vadd.f32 %v1534, %v1615
      %v1670 = vadd.f32 %v1535, %v1615
      %v1671 = vadd.f32 %v1536, %v1615
      %v1672 = vadd.f32 %v1537, %v1615
      %v1673 = vadd.f32 %v1538, %v1615
      %v1674 = vadd.f32 %v1539, %v1615
      %v1675 = vadd.f32 %v1540, %v1615
      %v1676 = vadd.f32 %v1541, %v1615
      %v1677 = vadd.f32 %v1542, %v1615
      %v1678 = vadd.f32 %v1543, %v1615
      %v1679 = vadd.f32 %v1544, %v1615
      %v1680 = vadd.f32 %v1545, %v1615
      %v1681 = vadd.f32 %v1546, %v1615
      %v1682 = vadd.f32 %v1547, %v1615
      %v1683 = vadd.f32 %v1548, %v1615
      %v1684 = vadd.f32 %v1549, %v1615
      %v1685 = vadd.f32 %v1550, %v1615
      %v1686 = vadd.f32 %v1551, %v1615
      %v1687 = vadd.f32 %v1552, %v1615
      %v1688 = vadd.f32 %v1553, %v1615
      %v1689 = vadd.f32 %v1554, %v1615
      %v1690 = vadd.f32 %v1555, %v1615
      %v1691 = vadd.f32 %v1556, %v1615
      %v1692 = vadd.f32 %v1557, %v1615
      %v1693 = vadd.f32 %v1558, %v1615
      %v1694 = vadd.f32 %v1559, %v1615
      %v1695 = vadd.f32 %v1560, %v1615
      %v1696 = vadd.f32 %v1561, %v1615
      %v1697 = vadd.f32 %v1562, %v1615
      %v1698 = vadd.f32 %v1563, %v1615
      %v1699 = vadd.f32 %v1564, %v1615
      %v1700 = vadd.f32 %v1565, %v1615
      %v1701 = vadd.f32 %v1566, %v1615
      %v1702 = vadd.f32 %v1567, %v1615
      %v1703 = vadd.f32 %v1568, %v1615
      %v1704 = vadd.f32 %v1569, %v1615
      %v1705 = vadd.f32 %v1570, %v1615
      %v1706 = vadd.f32 %v1571, %v1615
      %v1707 = vadd.f32 %v1572, %v1615
      %v1708 = vadd.f32 %v1573, %v1615
      %v1709 = vadd.f32 %v1574, %v1615
      %v1710 = vadd.f32 %v1575, %v1615
      %v1711 = vadd.f32 %v1576, %v1615
      %v1712 = vadd.f32 %v1577, %v1615
      %v1713 = vadd.f32 %v1578, %v1615
      %v1714 = vadd.f32 %v1579, %v1615
      %v1715 = vadd.f32 %v1580, %v1615
      %v1716 = vadd.f32 %v1581, %v1615
      %v1717 = vadd.f32 %v1582, %v1615
      %v1718 = vadd.f32 %v1583, %v1615
      %v1719 = vadd.f32 %v1584, %v1615
      %v1720 = vadd.f32 %v1585, %v1615
      %v1721 = vadd.f32 %v1586, %v1615
      %v1722 = vadd.f32 %v1587, %v1615
      %v1723 = vadd.f32 %v1588, %v1615
      %v1724 = vadd.f32 %v1589, %v1615
      %v1725 = vadd.f32 %v1590, %v1615
      %v1726 = vadd.f32 %v1591, %v1615
      %v1727 = vadd.f32 %v1592, %v1615
      %v1728 = vadd.f32 %v1593, %v1615
      %v1729 = vadd.f32 %v1594, %v1615
      %v1730 = vadd.f32 %v1595, %v1615
      %v1731 = vadd.f32 %v1596, %v1615
      %v1732 = vadd.f32 %v1597, %v1615
      %v1733 = vadd.f32 %v1598, %v1615
      %v1734 = vadd.f32 %v1599, %v1615
      %v1735 = vadd.f32 %v1600, %v1615
      %v1736 = vadd.f32 %v1601, %v1615
      %v1737 = vadd.f32 %v1602, %v1615
      %v1738 = vadd.f32 %v1603, %v1615
      %v1739 = vadd.f32 %v1604, %v1615
      %v1740 = vadd.f32 %v1605, %v1615
      %v1741 = vadd.f32 %v1606, %v1615
      %v1742 = vadd.f32 %v1607, %v1615
      %v1743 = vadd.f32 %v1608, %v1615
      %v1744 = vadd.f32 %v1609, %v1615
      %v1745 = vmul.f32 %v1617, 0.5
      %v1746 = vmul.f32 %v1618, 0.5
      %v1747 = vmul.f32 %v1619, 0.5
      %v1748 = vmul.f32 %v1620, 0.5
      %v1749 = vmul.f32 %v1621, 0.5
      %v1750 = vmul.f32 %v1622, 0.5
      %v1751 = vmul.f32 %v1623, 0.5
      %v1752 = vmul.f32 %v1624, 0.5
      %v1753 = vmul.f32 %v1625, 0.5
      %v1754 = vmul.f32 %v1626, 0.5
      %v1755 = vmul.f32 %v1627, 0.5
      %v1756 = vmul.f32 %v1628, 0.5
      %v1757 = vmul.f32 %v1629, 0.5
      %v1758 = vmul.f32 %v1630, 0.5
      %v1759 = vmul.f32 %v1631, 0.5
      %v1760 = vmul.f32 %v1632, 0.5
      %v1761 = vmul.f32 %v1633, 0.5
      %v1762 = vmul.f32 %v1634, 0.5
      %v1763 = vmul.f32 %v1635, 0.5
      %v1764 = vmul.f32 %v1636, 0.5
      %v1765 = vmul.f32 %v1637, 0.5
      %v1766 = vmul.f32 %v1638, 0.5
      %v1767 = vmul.f32 %v1639, 0.5
      %v1768 = vmul.f32 %v1640, 0.5
      %v1769 = vmul.f32 %v1641, 0.5
      %v1770 = vmul.f32 %v1642, 0.5
      %v1771 = vmul.f32 %v1643, 0.5
      %v1772 = vmul.f32 %v1644, 0.5
      %v1773 = vmul.f32 %v1645, 0.5
      %v1774 = vmul.f32 %v1646, 0.5
      %v1775 = vmul.f32 %v1647, 0.5
      %v1776 = vmul.f32 %v1648, 0.5
      %v1777 = vmul.f32 %v1649, 0.5
      %v1778 = vmul.f32 %v1650, 0.5
      %v1779 = vmul.f32 %v1651, 0.5
      %v1780 = vmul.f32 %v1652, 0.5
      %v1781 = vmul.f32 %v1653, 0.5
      %v1782 = vmul.f32 %v1654, 0.5
      %v1783 = vmul.f32 %v1655, 0.5
      %v1784 = vmul.f32 %v1656, 0.5
      %v1785 = vmul.f32 %v1657, 0.5
      %v1786 = vmul.f32 %v1658, 0.5
      %v1787 = vmul.f32 %v1659, 0.5
      %v1788 = vmul.f32 %v1660, 0.5
      %v1789 = vmul.f32 %v1661, 0.5
      %v1790 = vmul.f32 %v1662, 0.5
      %v1791 = vmul.f32 %v1663, 0.5
      %v1792 = vmul.f32 %v1664, 0.5
      %v1793 = vmul.f32 %v1665, 0.5
      %v1794 = vmul.f32 %v1666, 0.5
      %v1795 = vmul.f32 %v1667, 0.5
      %v1796 = vmul.f32 %v1668, 0.5
      %v1797 = vmul.f32 %v1669, 0.5
      %v1798 = vmul.f32 %v1670, 0.5
      %v1799 = vmul.f32 %v1671, 0.5
      %v1800 = vmul.f32 %v1672, 0.5
      %v1801 = vmul.f32 %v1673, 0.5
      %v1802 = vmul.f32 %v1674, 0.5
      %v1803 = vmul.f32 %v1675, 0.5
      %v1804 = vmul.f32 %v1676, 0.5
      %v1805 = vmul.f32 %v1677, 0.5
      %v1806 = vmul.f32 %v1678, 0.5
      %v1807 = vmul.f32 %v1679, 0.5
      %v1808 = vmul.f32 %v1680, 0.5
      %v1809 = vmul.f32 %v1681, 0.5
      %v1810 = vmul.f32 %v1682, 0.5
      %v1811 = vmul.f32 %v1683, 0.5
      %v1812 = vmul.f32 %v1684, 0.5
      %v1813 = vmul.f32 %v1685, 0.5
      %v1814 = vmul.f32 %v1686, 0.5
      %v1815 = vmul.f32 %v1687, 0.5
      %v1816 = vmul.f32 %v1688, 0.5
      %v1817 = vmul.f32 %v1689, 0.5
      %v1818 = vmul.f32 %v1690, 0.5
      %v1819 = vmul.f32 %v1691, 0.5
      %v1820 = vmul.f32 %v1692, 0.5
      %v1821 = vmul.f32 %v1693, 0.5
      %v1822 = vmul.f32 %v1694, 0.5
      %v1823 = vmul.f32 %v1695, 0.5
      %v1824 = vmul.f32 %v1696, 0.5
      %v1825 = vmul.f32 %v1697, 0.5
      %v1826 = vmul.f32 %v1698, 0.5
      %v1827 = vmul.f32 %v1699, 0.5
      %v1828 = vmul.f32 %v1700, 0.5
      %v1829 = vmul.f32 %v1701, 0.5
      %v1830 = vmul.f32 %v1702, 0.5
      %v1831 = vmul.f32 %v1703, 0.5
      %v1832 = vmul.f32 %v1704, 0.5
      %v1833 = vmul.f32 %v1705, 0.5
      %v1834 = vmul.f32 %v1706, 0.5
      %v1835 = vmul.f32 %v1707, 0.5
      %v1836 = vmul.f32 %v1708, 0.5
      %v1837 = vmul.f32 %v1709, 0.5
      %v1838 = vmul.f32 %v1710, 0.5
      %v1839 = vmul.f32 %v1711, 0.5
      %v1840 = vmul.f32 %v1712, 0.5
      %v1841 = vmul.f32 %v1713, 0.5
      %v1842 = vmul.f32 %v1714, 0.5
      %v1843 = vmul.f32 %v1715, 0.5
      %v1844 = vmul.f32 %v1716, 0.5
      %v1845 = vmul.f32 %v1717, 0.5
      %v1846 = vmul.f32 %v1718, 0.5
      %v1847 = vmul.f32 %v1719, 0.5
      %v1848 = vmul.f32 %v1720, 0.5
      %v1849 = vmul.f32 %v1721, 0.5
      %v1850 = vmul.f32 %v1722, 0.5
      %v1851 = vmul.f32 %v1723, 0.5
      %v1852 = vmul.f32 %v1724, 0.5
      %v1853 = vmul.f32 %v1725, 0.5
      %v1854 = vmul.f32 %v1726, 0.5
      %v1855 = vmul.f32 %v1727, 0.5
      %v1856 = vmul.f32 %v1728, 0.5
      %v1857 = vmul.f32 %v1729, 0.5
      %v1858 = vmul.f32 %v1730, 0.5
      %v1859 = vmul.f32 %v1731, 0.5
      %v1860 = vmul.f32 %v1732, 0.5
      %v1861 = vmul.f32 %v1733, 0.5
      %v1862 = vmul.f32 %v1734, 0.5
      %v1863 = vmul.f32 %v1735, 0.5
      %v1864 = vmul.f32 %v1736, 0.5
      %v1865 = vmul.f32 %v1737, 0.5
      %v1866 = vmul.f32 %v1738, 0.5
      %v1867 = vmul.f32 %v1739, 0.5
      %v1868 = vmul.f32 %v1740, 0.5
      %v1869 = vmul.f32 %v1741, 0.5
      %v1870 = vmul.f32 %v1742, 0.5
      %v1871 = vmul.f32 %v1743, 0.5
      %v1872 = vmul.f32 %v1744, 0.5
      %v1873 = vmul.f32 %v1617, 0.044715
      %v1874 = vmul.f32 %v1618, 0.044715
      %v1875 = vmul.f32 %v1619, 0.044715
      %v1876 = vmul.f32 %v1620, 0.044715
      %v1877 = vmul.f32 %v1621, 0.044715
      %v1878 = vmul.f32 %v1622, 0.044715
      %v1879 = vmul.f32 %v1623, 0.044715
      %v1880 = vmul.f32 %v1624, 0.044715
      %v1881 = vmul.f32 %v1625, 0.044715
      %v1882 = vmul.f32 %v1626, 0.044715
      %v1883 = vmul.f32 %v1627, 0.044715
      %v1884 = vmul.f32 %v1628, 0.044715
      %v1885 = vmul.f32 %v1629, 0.044715
      %v1886 = vmul.f32 %v1630, 0.044715
      %v1887 = vmul.f32 %v1631, 0.044715
      %v1888 = vmul.f32 %v1632, 0.044715
      %v1889 = vmul.f32 %v1633, 0.044715
      %v1890 = vmul.f32 %v1634, 0.044715
      %v1891 = vmul.f32 %v1635, 0.044715
      %v1892 = vmul.f32 %v1636, 0.044715
      %v1893 = vmul.f32 %v1637, 0.044715
      %v1894 = vmul.f32 %v1638, 0.044715
      %v1895 = vmul.f32 %v1639, 0.044715
      %v1896 = vmul.f32 %v1640, 0.044715
      %v1897 = vmul.f32 %v1641, 0.044715
      %v1898 = vmul.f32 %v1642, 0.044715
      %v1899 = vmul.f32 %v1643, 0.044715
      %v1900 = vmul.f32 %v1644, 0.044715
      %v1901 = vmul.f32 %v1645, 0.044715
      %v1902 = vmul.f32 %v1646, 0.044715
      %v1903 = vmul.f32 %v1647, 0.044715
      %v1904 = vmul.f32 %v1648, 0.044715
      %v1905 = vmul.f32 %v1649, 0.044715
      %v1906 = vmul.f32 %v1650, 0.044715
      %v1907 = vmul.f32 %v1651, 0.044715
      %v1908 = vmul.f32 %v1652, 0.044715
      %v1909 = vmul.f32 %v1653, 0.044715
      %v1910 = vmul.f32 %v1654, 0.044715
      %v1911 = vmul.f32 %v1655, 0.044715
      %v1912 = vmul.f32 %v1656, 0.044715
      %v1913 = vmul.f32 %v1657, 0.044715
      %v1914 = vmul.f32 %v1658, 0.044715
      %v1915 = vmul.f32 %v1659, 0.044715
      %v1916 = vmul.f32 %v1660, 0.044715
      %v1917 = vmul.f32 %v1661, 0.044715
      %v1918 = vmul.f32 %v1662, 0.044715
      %v1919 = vmul.f32 %v1663, 0.044715
      %v1920 = vmul.f32 %v1664, 0.044715
      %v1921 = vmul.f32 %v1665, 0.044715
      %v1922 = vmul.f32 %v1666, 0.044715
      %v1923 = vmul.f32 %v1667, 0.044715
      %v1924 = vmul.f32 %v1668, 0.044715
      %v1925 = vmul.f32 %v1669, 0.044715
      %v1926 = vmul.f32 %v1670, 0.044715
      %v1927 = vmul.f32 %v1671, 0.044715
      %v1928 = vmul.f32 %v1672, 0.044715
      %v1929 = vmul.f32 %v1673, 0.044715
      %v1930 = vmul.f32 %v1674, 0.044715
      %v1931 = vmul.f32 %v1675, 0.044715
      %v1932 = vmul.f32 %v1676, 0.044715
      %v1933 = vmul.f32 %v1677, 0.044715
      %v1934 = vmul.f32 %v1678, 0.044715
      %v1935 = vmul.f32 %v1679, 0.044715
      %v1936 = vmul.f32 %v1680, 0.044715
      %v1937 = vmul.f32 %v1681, 0.044715
      %v1938 = vmul.f32 %v1682, 0.044715
      %v1939 = vmul.f32 %v1683, 0.044715
      %v1940 = vmul.f32 %v1684, 0.044715
      %v1941 = vmul.f32 %v1685, 0.044715
      %v1942 = vmul.f32 %v1686, 0.044715
      %v1943 = vmul.f32 %v1687, 0.044715
      %v1944 = vmul.f32 %v1688, 0.044715
      %v1945 = vmul.f32 %v1689, 0.044715
      %v1946 = vmul.f32 %v1690, 0.044715
      %v1947 = vmul.f32 %v1691, 0.044715
      %v1948 = vmul.f32 %v1692, 0.044715
      %v1949 = vmul.f32 %v1693, 0.044715
      %v1950 = vmul.f32 %v1694, 0.044715
      %v1951 = vmul.f32 %v1695, 0.044715
      %v1952 = vmul.f32 %v1696, 0.044715
      %v1953 = vmul.f32 %v1697, 0.044715
      %v1954 = vmul.f32 %v1698, 0.044715
      %v1955 = vmul.f32 %v1699, 0.044715
      %v1956 = vmul.f32 %v1700, 0.044715
      %v1957 = vmul.f32 %v1701, 0.044715
      %v1958 = vmul.f32 %v1702, 0.044715
      %v1959 = vmul.f32 %v1703, 0.044715
      %v1960 = vmul.f32 %v1704, 0.044715
      %v1961 = vmul.f32 %v1705, 0.044715
      %v1962 = vmul.f32 %v1706, 0.044715
      %v1963 = vmul.f32 %v1707, 0.044715
      %v1964 = vmul.f32 %v1708, 0.044715
      %v1965 = vmul.f32 %v1709, 0.044715
      %v1966 = vmul.f32 %v1710, 0.044715
      %v1967 = vmul.f32 %v1711, 0.044715
      %v1968 = vmul.f32 %v1712, 0.044715
      %v1969 = vmul.f32 %v1713, 0.044715
      %v1970 = vmul.f32 %v1714, 0.044715
      %v1971 = vmul.f32 %v1715, 0.044715
      %v1972 = vmul.f32 %v1716, 0.044715
      %v1973 = vmul.f32 %v1717, 0.044715
      %v1974 = vmul.f32 %v1718, 0.044715
      %v1975 = vmul.f32 %v1719, 0.044715
      %v1976 = vmul.f32 %v1720, 0.044715
      %v1977 = vmul.f32 %v1721, 0.044715
      %v1978 = vmul.f32 %v1722, 0.044715
      %v1979 = vmul.f32 %v1723, 0.044715
      %v1980 = vmul.f32 %v1724, 0.044715
      %v1981 = vmul.f32 %v1725, 0.044715
      %v1982 = vmul.f32 %v1726, 0.044715
      %v1983 = vmul.f32 %v1727, 0.044715
      %v1984 = vmul.f32 %v1728, 0.044715
      %v1985 = vmul.f32 %v1729, 0.044715
      %v1986 = vmul.f32 %v1730, 0.044715
      %v1987 = vmul.f32 %v1731, 0.044715
      %v1988 = vmul.f32 %v1732, 0.044715
      %v1989 = vmul.f32 %v1733, 0.044715
      %v1990 = vmul.f32 %v1734, 0.044715
      %v1991 = vmul.f32 %v1735, 0.044715
      %v1992 = vmul.f32 %v1736, 0.044715
      %v1993 = vmul.f32 %v1737, 0.044715
      %v1994 = vmul.f32 %v1738, 0.044715
      %v1995 = vmul.f32 %v1739, 0.044715
      %v1996 = vmul.f32 %v1740, 0.044715
      %v1997 = vmul.f32 %v1741, 0.044715
      %v1998 = vmul.f32 %v1742, 0.044715
      %v1999 = vmul.f32 %v1743, 0.044715
      %v2000 = vmul.f32 %v1744, 0.044715
      %v2001 = vmul.f32 %v1873, %v1617
      %v2002 = vmul.f32 %v1874, %v1618
      %v2003 = vmul.f32 %v1875, %v1619
      %v2004 = vmul.f32 %v1876, %v1620
      %v2005 = vmul.f32 %v1877, %v1621
      %v2006 = vmul.f32 %v1878, %v1622
      %v2007 = vmul.f32 %v1879, %v1623
      %v2008 = vmul.f32 %v1880, %v1624
      %v2009 = vmul.f32 %v1881, %v1625
      %v2010 = vmul.f32 %v1882, %v1626
      %v2011 = vmul.f32 %v1883, %v1627
      %v2012 = vmul.f32 %v1884, %v1628
      %v2013 = vmul.f32 %v1885, %v1629
      %v2014 = vmul.f32 %v1886, %v1630
      %v2015 = vmul.f32 %v1887, %v1631
      %v2016 = vmul.f32 %v1888, %v1632
      %v2017 = vmul.f32 %v1889, %v1633
      %v2018 = vmul.f32 %v1890, %v1634
      %v2019 = vmul.f32 %v1891, %v1635
      %v2020 = vmul.f32 %v1892, %v1636
      %v2021 = vmul.f32 %v1893, %v1637
      %v2022 = vmul.f32 %v1894, %v1638
      %v2023 = vmul.f32 %v1895, %v1639
      %v2024 = vmul.f32 %v1896, %v1640
      %v2025 = vmul.f32 %v1897, %v1641
      %v2026 = vmul.f32 %v1898, %v1642
      %v2027 = vmul.f32 %v1899, %v1643
      %v2028 = vmul.f32 %v1900, %v1644
      %v2029 = vmul.f32 %v1901, %v1645
      %v2030 = vmul.f32 %v1902, %v1646
      %v2031 = vmul.f32 %v1903, %v1647
      %v2032 = vmul.f32 %v1904, %v1648
      %v2033 = vmul.f32 %v1905, %v1649
      %v2034 = vmul.f32 %v1906, %v1650
      %v2035 = vmul.f32 %v1907, %v1651
      %v2036 = vmul.f32 %v1908, %v1652
      %v2037 = vmul.f32 %v1909, %v1653
      %v2038 = vmul.f32 %v1910, %v1654
      %v2039 = vmul.f32 %v1911, %v1655
      %v2040 = vmul.f32 %v1912, %v1656
      %v2041 = vmul.f32 %v1913, %v1657
      %v2042 = vmul.f32 %v1914, %v1658
      %v2043 = vmul.f32 %v1915, %v1659
      %v2044 = vmul.f32 %v1916, %v1660
      %v2045 = vmul.f32 %v1917, %v1661
      %v2046 = vmul.f32 %v1918, %v1662
      %v2047 = vmul.f32 %v1919, %v1663
      %v2048 = vmul.f32 %v1920, %v1664
      %v2049 = vmul.f32 %v1921, %v1665
      %v2050 = vmul.f32 %v1922, %v1666
      %v2051 = vmul.f32 %v1923, %v1667
      %v2052 = vmul.f32 %v1924, %v1668
      %v2053 = vmul.f32 %v1925, %v1669
      %v2054 = vmul.f32 %v1926, %v1670
      %v2055 = vmul.f32 %v1927, %v1671
      %v2056 = vmul.f32 %v1928, %v1672
      %v2057 = vmul.f32 %v1929, %v1673
      %v2058 = vmul.f32 %v1930, %v1674
      %v2059 = vmul.f32 %v1931, %v1675
      %v2060 = vmul.f32 %v1932, %v1676
      %v2061 = vmul.f32 %v1933, %v1677
      %v2062 = vmul.f32 %v1934, %v1678
      %v2063 = vmul.f32 %v1935, %v1679
      %v2064 = vmul.f32 %v1936, %v1680
      %v2065 = vmul.f32 %v1937, %v1681
      %v2066 = vmul.f32 %v1938, %v1682
      %v2067 = vmul.f32 %v1939, %v1683
      %v2068 = vmul.f32 %v1940, %v1684
      %v2069 = vmul.f32 %v1941, %v1685
      %v2070 = vmul.f32 %v1942, %v1686
      %v2071 = vmul.f32 %v1943, %v1687
      %v2072 = vmul.f32 %v1944, %v1688
      %v2073 = vmul.f32 %v1945, %v1689
      %v2074 = vmul.f32 %v1946, %v1690
      %v2075 = vmul.f32 %v1947, %v1691
      %v2076 = vmul.f32 %v1948, %v1692
      %v2077 = vmul.f32 %v1949, %v1693
      %v2078 = vmul.f32 %v1950, %v1694
      %v2079 = vmul.f32 %v1951, %v1695
      %v2080 = vmul.f32 %v1952, %v1696
      %v2081 = vmul.f32 %v1953, %v1697
      %v2082 = vmul.f32 %v1954, %v1698
      %v2083 = vmul.f32 %v1955, %v1699
      %v2084 = vmul.f32 %v1956, %v1700
      %v2085 = vmul.f32 %v1957, %v1701
      %v2086 = vmul.f32 %v1958, %v1702
      %v2087 = vmul.f32 %v1959, %v1703
      %v2088 = vmul.f32 %v1960, %v1704
      %v2089 = vmul.f32 %v1961, %v1705
      %v2090 = vmul.f32 %v1962, %v1706
      %v2091 = vmul.f32 %v1963, %v1707
      %v2092 = vmul.f32 %v1964, %v1708
      %v2093 = vmul.f32 %v1965, %v1709
      %v2094 = vmul.f32 %v1966, %v1710
      %v2095 = vmul.f32 %v1967, %v1711
      %v2096 = vmul.f32 %v1968, %v1712
      %v2097 = vmul.f32 %v1969, %v1713
      %v2098 = vmul.f32 %v1970, %v1714
      %v2099 = vmul.f32 %v1971, %v1715
      %v2100 = vmul.f32 %v1972, %v1716
      %v2101 = vmul.f32 %v1973, %v1717
      %v2102 = vmul.f32 %v1974, %v1718
      %v2103 = vmul.f32 %v1975, %v1719
      %v2104 = vmul.f32 %v1976, %v1720
      %v2105 = vmul.f32 %v1977, %v1721
      %v2106 = vmul.f32 %v1978, %v1722
      %v2107 = vmul.f32 %v1979, %v1723
      %v2108 = vmul.f32 %v1980, %v1724
      %v2109 = vmul.f32 %v1981, %v1725
      %v2110 = vmul.f32 %v1982, %v1726
      %v2111 = vmul.f32 %v1983, %v1727
      %v2112 = vmul.f32 %v1984, %v1728
      %v2113 = vmul.f32 %v1985, %v1729
      %v2114 = vmul.f32 %v1986, %v1730
      %v2115 = vmul.f32 %v1987, %v1731
      %v2116 = vmul.f32 %v1988, %v1732
      %v2117 = vmul.f32 %v1989, %v1733
      %v2118 = vmul.f32 %v1990, %v1734
      %v2119 = vmul.f32 %v1991, %v1735
      %v2120 = vmul.f32 %v1992, %v1736
      %v2121 = vmul.f32 %v1993, %v1737
      %v2122 = vmul.f32 %v1994, %v1738
      %v2123 = vmul.f32 %v1995, %v1739
      %v2124 = vmul.f32 %v1996, %v1740
      %v2125 = vmul.f32 %v1997, %v1741
      %v2126 = vmul.f32 %v1998, %v1742
      %v2127 = vmul.f32 %v1999, %v1743
      %v2128 = vmul.f32 %v2000, %v1744
      %v2129 = vmul.f32 %v2001, %v1617
      %v2130 = vmul.f32 %v2002, %v1618
      %v2131 = vmul.f32 %v2003, %v1619
      %v2132 = vmul.f32 %v2004, %v1620
      %v2133 = vmul.f32 %v2005, %v1621
      %v2134 = vmul.f32 %v2006, %v1622
      %v2135 = vmul.f32 %v2007, %v1623
      %v2136 = vmul.f32 %v2008, %v1624
      %v2137 = vmul.f32 %v2009, %v1625
      %v2138 = vmul.f32 %v2010, %v1626
      %v2139 = vmul.f32 %v2011, %v1627
      %v2140 = vmul.f32 %v2012, %v1628
      %v2141 = vmul.f32 %v2013, %v1629
      %v2142 = vmul.f32 %v2014, %v1630
      %v2143 = vmul.f32 %v2015, %v1631
      %v2144 = vmul.f32 %v2016, %v1632
      %v2145 = vmul.f32 %v2017, %v1633
      %v2146 = vmul.f32 %v2018, %v1634
      %v2147 = vmul.f32 %v2019, %v1635
      %v2148 = vmul.f32 %v2020, %v1636
      %v2149 = vmul.f32 %v2021, %v1637
      %v2150 = vmul.f32 %v2022, %v1638
      %v2151 = vmul.f32 %v2023, %v1639
      %v2152 = vmul.f32 %v2024, %v1640
      %v2153 = vmul.f32 %v2025, %v1641
      %v2154 = vmul.f32 %v2026, %v1642
      %v2155 = vmul.f32 %v2027, %v1643
      %v2156 = vmul.f32 %v2028, %v1644
      %v2157 = vmul.f32 %v2029, %v1645
      %v2158 = vmul.f32 %v2030, %v1646
      %v2159 = vmul.f32 %v2031, %v1647
      %v2160 = vmul.f32 %v2032, %v1648
      %v2161 = vmul.f32 %v2033, %v1649
      %v2162 = vmul.f32 %v2034, %v1650
      %v2163 = vmul.f32 %v2035, %v1651
      %v2164 = vmul.f32 %v2036, %v1652
      %v2165 = vmul.f32 %v2037, %v1653
      %v2166 = vmul.f32 %v2038, %v1654
      %v2167 = vmul.f32 %v2039, %v1655
      %v2168 = vmul.f32 %v2040, %v1656
      %v2169 = vmul.f32 %v2041, %v1657
      %v2170 = vmul.f32 %v2042, %v1658
      %v2171 = vmul.f32 %v2043, %v1659
      %v2172 = vmul.f32 %v2044, %v1660
      %v2173 = vmul.f32 %v2045, %v1661
      %v2174 = vmul.f32 %v2046, %v1662
      %v2175 = vmul.f32 %v2047, %v1663
      %v2176 = vmul.f32 %v2048, %v1664
      %v2177 = vmul.f32 %v2049, %v1665
      %v2178 = vmul.f32 %v2050, %v1666
      %v2179 = vmul.f32 %v2051, %v1667
      %v2180 = vmul.f32 %v2052, %v1668
      %v2181 = vmul.f32 %v2053, %v1669
      %v2182 = vmul.f32 %v2054, %v1670
      %v2183 = vmul.f32 %v2055, %v1671
      %v2184 = vmul.f32 %v2056, %v1672
      %v2185 = vmul.f32 %v2057, %v1673
      %v2186 = vmul.f32 %v2058, %v1674
      %v2187 = vmul.f32 %v2059, %v1675
      %v2188 = vmul.f32 %v2060, %v1676
      %v2189 = vmul.f32 %v2061, %v1677
      %v2190 = vmul.f32 %v2062, %v1678
      %v2191 = vmul.f32 %v2063, %v1679
      %v2192 = vmul.f32 %v2064, %v1680
      %v2193 = vmul.f32 %v2065, %v1681
      %v2194 = vmul.f32 %v2066, %v1682
      %v2195 = vmul.f32 %v2067, %v1683
      %v2196 = vmul.f32 %v2068, %v1684
      %v2197 = vmul.f32 %v2069, %v1685
      %v2198 = vmul.f32 %v2070, %v1686
      %v2199 = vmul.f32 %v2071, %v1687
      %v2200 = vmul.f32 %v2072, %v1688
      %v2201 = vmul.f32 %v2073, %v1689
      %v2202 = vmul.f32 %v2074, %v1690
      %v2203 = vmul.f32 %v2075, %v1691
      %v2204 = vmul.f32 %v2076, %v1692
      %v2205 = vmul.f32 %v2077, %v1693
      %v2206 = vmul.f32 %v2078, %v1694
      %v2207 = vmul.f32 %v2079, %v1695
      %v2208 = vmul.f32 %v2080, %v1696
      %v2209 = vmul.f32 %v2081, %v1697
      %v2210 = vmul.f32 %v2082, %v1698
      %v2211 = vmul.f32 %v2083, %v1699
      %v2212 = vmul.f32 %v2084, %v1700
      %v2213 = vmul.f32 %v2085, %v1701
      %v2214 = vmul.f32 %v2086, %v1702
      %v2215 = vmul.f32 %v2087, %v1703
      %v2216 = vmul.f32 %v2088, %v1704
      %v2217 = vmul.f32 %v2089, %v1705
      %v2218 = vmul.f32 %v2090, %v1706
      %v2219 = vmul.f32 %v2091, %v1707
      %v2220 = vmul.f32 %v2092, %v1708
      %v2221 = vmul.f32 %v2093, %v1709
      %v2222 = vmul.f32 %v2094, %v1710
      %v2223 = vmul.f32 %v2095, %v1711
      %v2224 = vmul.f32 %v2096, %v1712
      %v2225 = vmul.f32 %v2097, %v1713
      %v2226 = vmul.f32 %v2098, %v1714
      %v2227 = vmul.f32 %v2099, %v1715
      %v2228 = vmul.f32 %v2100, %v1716
      %v2229 = vmul.f32 %v2101, %v1717
      %v2230 = vmul.f32 %v2102, %v1718
      %v2231 = vmul.f32 %v2103, %v1719
      %v2232 = vmul.f32 %v2104, %v1720
      %v2233 = vmul.f32 %v2105, %v1721
      %v2234 = vmul.f32 %v2106, %v1722
      %v2235 = vmul.f32 %v2107, %v1723
      %v2236 = vmul.f32 %v2108, %v1724
      %v2237 = vmul.f32 %v2109, %v1725
      %v2238 = vmul.f32 %v2110, %v1726
      %v2239 = vmul.f32 %v2111, %v1727
      %v2240 = vmul.f32 %v2112, %v1728
      %v2241 = vmul.f32 %v2113, %v1729
      %v2242 = vmul.f32 %v2114, %v1730
      %v2243 = vmul.f32 %v2115, %v1731
      %v2244 = vmul.f32 %v2116, %v1732
      %v2245 = vmul.f32 %v2117, %v1733
      %v2246 = vmul.f32 %v2118, %v1734
      %v2247 = vmul.f32 %v2119, %v1735
      %v2248 = vmul.f32 %v2120, %v1736
      %v2249 = vmul.f32 %v2121, %v1737
      %v2250 = vmul.f32 %v2122, %v1738
      %v2251 = vmul.f32 %v2123, %v1739
      %v2252 = vmul.f32 %v2124, %v1740
      %v2253 = vmul.f32 %v2125, %v1741
      %v2254 = vmul.f32 %v2126, %v1742
      %v2255 = vmul.f32 %v2127, %v1743
      %v2256 = vmul.f32 %v2128, %v1744
      %v2257 = vadd.f32 %v1617, %v2129
      %v2258 = vadd.f32 %v1618, %v2130
      %v2259 = vadd.f32 %v1619, %v2131
      %v2260 = vadd.f32 %v1620, %v2132
      %v2261 = vadd.f32 %v1621, %v2133
      %v2262 = vadd.f32 %v1622, %v2134
      %v2263 = vadd.f32 %v1623, %v2135
      %v2264 = vadd.f32 %v1624, %v2136
      %v2265 = vadd.f32 %v1625, %v2137
      %v2266 = vadd.f32 %v1626, %v2138
      %v2267 = vadd.f32 %v1627, %v2139
      %v2268 = vadd.f32 %v1628, %v2140
      %v2269 = vadd.f32 %v1629, %v2141
      %v2270 = vadd.f32 %v1630, %v2142
      %v2271 = vadd.f32 %v1631, %v2143
      %v2272 = vadd.f32 %v1632, %v2144
      %v2273 = vadd.f32 %v1633, %v2145
      %v2274 = vadd.f32 %v1634, %v2146
      %v2275 = vadd.f32 %v1635, %v2147
      %v2276 = vadd.f32 %v1636, %v2148
      %v2277 = vadd.f32 %v1637, %v2149
      %v2278 = vadd.f32 %v1638, %v2150
      %v2279 = vadd.f32 %v1639, %v2151
      %v2280 = vadd.f32 %v1640, %v2152
      %v2281 = vadd.f32 %v1641, %v2153
      %v2282 = vadd.f32 %v1642, %v2154
      %v2283 = vadd.f32 %v1643, %v2155
      %v2284 = vadd.f32 %v1644, %v2156
      %v2285 = vadd.f32 %v1645, %v2157
      %v2286 = vadd.f32 %v1646, %v2158
      %v2287 = vadd.f32 %v1647, %v2159
      %v2288 = vadd.f32 %v1648, %v2160
      %v2289 = vadd.f32 %v1649, %v2161
      %v2290 = vadd.f32 %v1650, %v2162
      %v2291 = vadd.f32 %v1651, %v2163
      %v2292 = vadd.f32 %v1652, %v2164
      %v2293 = vadd.f32 %v1653, %v2165
      %v2294 = vadd.f32 %v1654, %v2166
      %v2295 = vadd.f32 %v1655, %v2167
      %v2296 = vadd.f32 %v1656, %v2168
      %v2297 = vadd.f32 %v1657, %v2169
      %v2298 = vadd.f32 %v1658, %v2170
      %v2299 = vadd.f32 %v1659, %v2171
      %v2300 = vadd.f32 %v1660, %v2172
      %v2301 = vadd.f32 %v1661, %v2173
      %v2302 = vadd.f32 %v1662, %v2174
      %v2303 = vadd.f32 %v1663, %v2175
      %v2304 = vadd.f32 %v1664, %v2176
      %v2305 = vadd.f32 %v1665, %v2177
      %v2306 = vadd.f32 %v1666, %v2178
      %v2307 = vadd.f32 %v1667, %v2179
      %v2308 = vadd.f32 %v1668, %v2180
      %v2309 = vadd.f32 %v1669, %v2181
      %v2310 = vadd.f32 %v1670, %v2182
      %v2311 = vadd.f32 %v1671, %v2183
      %v2312 = vadd.f32 %v1672, %v2184
      %v2313 = vadd.f32 %v1673, %v2185
      %v2314 = vadd.f32 %v1674, %v2186
      %v2315 = vadd.f32 %v1675, %v2187
      %v2316 = vadd.f32 %v1676, %v2188
      %v2317 = vadd.f32 %v1677, %v2189
      %v2318 = vadd.f32 %v1678, %v2190
      %v2319 = vadd.f32 %v1679, %v2191
      %v2320 = vadd.f32 %v1680, %v2192
      %v2321 = vadd.f32 %v1681, %v2193
      %v2322 = vadd.f32 %v1682, %v2194
      %v2323 = vadd.f32 %v1683, %v2195
      %v2324 = vadd.f32 %v1684, %v2196
      %v2325 = vadd.f32 %v1685, %v2197
      %v2326 = vadd.f32 %v1686, %v2198
      %v2327 = vadd.f32 %v1687, %v2199
      %v2328 = vadd.f32 %v1688, %v2200
      %v2329 = vadd.f32 %v1689, %v2201
      %v2330 = vadd.f32 %v1690, %v2202
      %v2331 = vadd.f32 %v1691, %v2203
      %v2332 = vadd.f32 %v1692, %v2204
      %v2333 = vadd.f32 %v1693, %v2205
      %v2334 = vadd.f32 %v1694, %v2206
      %v2335 = vadd.f32 %v1695, %v2207
      %v2336 = vadd.f32 %v1696, %v2208
      %v2337 = vadd.f32 %v1697, %v2209
      %v2338 = vadd.f32 %v1698, %v2210
      %v2339 = vadd.f32 %v1699, %v2211
      %v2340 = vadd.f32 %v1700, %v2212
      %v2341 = vadd.f32 %v1701, %v2213
      %v2342 = vadd.f32 %v1702, %v2214
      %v2343 = vadd.f32 %v1703, %v2215
      %v2344 = vadd.f32 %v1704, %v2216
      %v2345 = vadd.f32 %v1705, %v2217
      %v2346 = vadd.f32 %v1706, %v2218
      %v2347 = vadd.f32 %v1707, %v2219
      %v2348 = vadd.f32 %v1708, %v2220
      %v2349 = vadd.f32 %v1709, %v2221
      %v2350 = vadd.f32 %v1710, %v2222
      %v2351 = vadd.f32 %v1711, %v2223
      %v2352 = vadd.f32 %v1712, %v2224
      %v2353 = vadd.f32 %v1713, %v2225
      %v2354 = vadd.f32 %v1714, %v2226
      %v2355 = vadd.f32 %v1715, %v2227
      %v2356 = vadd.f32 %v1716, %v2228
      %v2357 = vadd.f32 %v1717, %v2229
      %v2358 = vadd.f32 %v1718, %v2230
      %v2359 = vadd.f32 %v1719, %v2231
      %v2360 = vadd.f32 %v1720, %v2232
      %v2361 = vadd.f32 %v1721, %v2233
      %v2362 = vadd.f32 %v1722, %v2234
      %v2363 = vadd.f32 %v1723, %v2235
      %v2364 = vadd.f32 %v1724, %v2236
      %v2365 = vadd.f32 %v1725, %v2237
      %v2366 = vadd.f32 %v1726, %v2238
      %v2367 = vadd.f32 %v1727, %v2239
      %v2368 = vadd.f32 %v1728, %v2240
      %v2369 = vadd.f32 %v1729, %v2241
      %v2370 = vadd.f32 %v1730, %v2242
      %v2371 = vadd.f32 %v1731, %v2243
      %v2372 = vadd.f32 %v1732, %v2244
      %v2373 = vadd.f32 %v1733, %v2245
      %v2374 = vadd.f32 %v1734, %v2246
      %v2375 = vadd.f32 %v1735, %v2247
      %v2376 = vadd.f32 %v1736, %v2248
      %v2377 = vadd.f32 %v1737, %v2249
      %v2378 = vadd.f32 %v1738, %v2250
      %v2379 = vadd.f32 %v1739, %v2251
      %v2380 = vadd.f32 %v1740, %v2252
      %v2381 = vadd.f32 %v1741, %v2253
      %v2382 = vadd.f32 %v1742, %v2254
      %v2383 = vadd.f32 %v1743, %v2255
      %v2384 = vadd.f32 %v1744, %v2256
      %v2385 = vmul.f32 %v2257, 0.7978846
      %v2386 = vmul.f32 %v2258, 0.7978846
      %v2387 = vmul.f32 %v2259, 0.7978846
      %v2388 = vmul.f32 %v2260, 0.7978846
      %v2389 = vmul.f32 %v2261, 0.7978846
      %v2390 = vmul.f32 %v2262, 0.7978846
      %v2391 = vmul.f32 %v2263, 0.7978846
      %v2392 = vmul.f32 %v2264, 0.7978846
      %v2393 = vmul.f32 %v2265, 0.7978846
      %v2394 = vmul.f32 %v2266, 0.7978846
      %v2395 = vmul.f32 %v2267, 0.7978846
      %v2396 = vmul.f32 %v2268, 0.7978846
      %v2397 = vmul.f32 %v2269, 0.7978846
      %v2398 = vmul.f32 %v2270, 0.7978846
      %v2399 = vmul.f32 %v2271, 0.7978846
      %v2400 = vmul.f32 %v2272, 0.7978846
      %v2401 = vmul.f32 %v2273, 0.7978846
      %v2402 = vmul.f32 %v2274, 0.7978846
      %v2403 = vmul.f32 %v2275, 0.7978846
      %v2404 = vmul.f32 %v2276, 0.7978846
      %v2405 = vmul.f32 %v2277, 0.7978846
      %v2406 = vmul.f32 %v2278, 0.7978846
      %v2407 = vmul.f32 %v2279, 0.7978846
      %v2408 = vmul.f32 %v2280, 0.7978846
      %v2409 = vmul.f32 %v2281, 0.7978846
      %v2410 = vmul.f32 %v2282, 0.7978846
      %v2411 = vmul.f32 %v2283, 0.7978846
      %v2412 = vmul.f32 %v2284, 0.7978846
      %v2413 = vmul.f32 %v2285, 0.7978846
      %v2414 = vmul.f32 %v2286, 0.7978846
      %v2415 = vmul.f32 %v2287, 0.7978846
      %v2416 = vmul.f32 %v2288, 0.7978846
      %v2417 = vmul.f32 %v2289, 0.7978846
      %v2418 = vmul.f32 %v2290, 0.7978846
      %v2419 = vmul.f32 %v2291, 0.7978846
      %v2420 = vmul.f32 %v2292, 0.7978846
      %v2421 = vmul.f32 %v2293, 0.7978846
      %v2422 = vmul.f32 %v2294, 0.7978846
      %v2423 = vmul.f32 %v2295, 0.7978846
      %v2424 = vmul.f32 %v2296, 0.7978846
      %v2425 = vmul.f32 %v2297, 0.7978846
      %v2426 = vmul.f32 %v2298, 0.7978846
      %v2427 = vmul.f32 %v2299, 0.7978846
      %v2428 = vmul.f32 %v2300, 0.7978846
      %v2429 = vmul.f32 %v2301, 0.7978846
      %v2430 = vmul.f32 %v2302, 0.7978846
      %v2431 = vmul.f32 %v2303, 0.7978846
      %v2432 = vmul.f32 %v2304, 0.7978846
      %v2433 = vmul.f32 %v2305, 0.7978846
      %v2434 = vmul.f32 %v2306, 0.7978846
      %v2435 = vmul.f32 %v2307, 0.7978846
      %v2436 = vmul.f32 %v2308, 0.7978846
      %v2437 = vmul.f32 %v2309, 0.7978846
      %v2438 = vmul.f32 %v2310, 0.7978846
      %v2439 = vmul.f32 %v2311, 0.7978846
      %v2440 = vmul.f32 %v2312, 0.7978846
      %v2441 = vmul.f32 %v2313, 0.7978846
      %v2442 = vmul.f32 %v2314, 0.7978846
      %v2443 = vmul.f32 %v2315, 0.7978846
      %v2444 = vmul.f32 %v2316, 0.7978846
      %v2445 = vmul.f32 %v2317, 0.7978846
      %v2446 = vmul.f32 %v2318, 0.7978846
      %v2447 = vmul.f32 %v2319, 0.7978846
      %v2448 = vmul.f32 %v2320, 0.7978846
      %v2449 = vmul.f32 %v2321, 0.7978846
      %v2450 = vmul.f32 %v2322, 0.7978846
      %v2451 = vmul.f32 %v2323, 0.7978846
      %v2452 = vmul.f32 %v2324, 0.7978846
      %v2453 = vmul.f32 %v2325, 0.7978846
      %v2454 = vmul.f32 %v2326, 0.7978846
      %v2455 = vmul.f32 %v2327, 0.7978846
      %v2456 = vmul.f32 %v2328, 0.7978846
      %v2457 = vmul.f32 %v2329, 0.7978846
      %v2458 = vmul.f32 %v2330, 0.7978846
      %v2459 = vmul.f32 %v2331, 0.7978846
      %v2460 = vmul.f32 %v2332, 0.7978846
      %v2461 = vmul.f32 %v2333, 0.7978846
      %v2462 = vmul.f32 %v2334, 0.7978846
      %v2463 = vmul.f32 %v2335, 0.7978846
      %v2464 = vmul.f32 %v2336, 0.7978846
      %v2465 = vmul.f32 %v2337, 0.7978846
      %v2466 = vmul.f32 %v2338, 0.7978846
      %v2467 = vmul.f32 %v2339, 0.7978846
      %v2468 = vmul.f32 %v2340, 0.7978846
      %v2469 = vmul.f32 %v2341, 0.7978846
      %v2470 = vmul.f32 %v2342, 0.7978846
      %v2471 = vmul.f32 %v2343, 0.7978846
      %v2472 = vmul.f32 %v2344, 0.7978846
      %v2473 = vmul.f32 %v2345, 0.7978846
      %v2474 = vmul.f32 %v2346, 0.7978846
      %v2475 = vmul.f32 %v2347, 0.7978846
      %v2476 = vmul.f32 %v2348, 0.7978846
      %v2477 = vmul.f32 %v2349, 0.7978846
      %v2478 = vmul.f32 %v2350, 0.7978846
      %v2479 = vmul.f32 %v2351, 0.7978846
      %v2480 = vmul.f32 %v2352, 0.7978846
      %v2481 = vmul.f32 %v2353, 0.7978846
      %v2482 = vmul.f32 %v2354, 0.7978846
      %v2483 = vmul.f32 %v2355, 0.7978846
      %v2484 = vmul.f32 %v2356, 0.7978846
      %v2485 = vmul.f32 %v2357, 0.7978846
      %v2486 = vmul.f32 %v2358, 0.7978846
      %v2487 = vmul.f32 %v2359, 0.7978846
      %v2488 = vmul.f32 %v2360, 0.7978846
      %v2489 = vmul.f32 %v2361, 0.7978846
      %v2490 = vmul.f32 %v2362, 0.7978846
      %v2491 = vmul.f32 %v2363, 0.7978846
      %v2492 = vmul.f32 %v2364, 0.7978846
      %v2493 = vmul.f32 %v2365, 0.7978846
      %v2494 = vmul.f32 %v2366, 0.7978846
      %v2495 = vmul.f32 %v2367, 0.7978846
      %v2496 = vmul.f32 %v2368, 0.7978846
      %v2497 = vmul.f32 %v2369, 0.7978846
      %v2498 = vmul.f32 %v2370, 0.7978846
      %v2499 = vmul.f32 %v2371, 0.7978846
      %v2500 = vmul.f32 %v2372, 0.7978846
      %v2501 = vmul.f32 %v2373, 0.7978846
      %v2502 = vmul.f32 %v2374, 0.7978846
      %v2503 = vmul.f32 %v2375, 0.7978846
      %v2504 = vmul.f32 %v2376, 0.7978846
      %v2505 = vmul.f32 %v2377, 0.7978846
      %v2506 = vmul.f32 %v2378, 0.7978846
      %v2507 = vmul.f32 %v2379, 0.7978846
      %v2508 = vmul.f32 %v2380, 0.7978846
      %v2509 = vmul.f32 %v2381, 0.7978846
      %v2510 = vmul.f32 %v2382, 0.7978846
      %v2511 = vmul.f32 %v2383, 0.7978846
      %v2512 = vmul.f32 %v2384, 0.7978846
      %v2513 = vtanh.pop %v2385
      %v2514 = vtanh.pop %v2386
      %v2515 = vtanh.pop %v2387
      %v2516 = vtanh.pop %v2388
      %v2517 = vtanh.pop %v2389
      %v2518 = vtanh.pop %v2390
      %v2519 = vtanh.pop %v2391
      %v2520 = vtanh.pop %v2392
      %v2521 = vtanh.pop %v2393
      %v2522 = vtanh.pop %v2394
      %v2523 = vtanh.pop %v2395
      %v2524 = vtanh.pop %v2396
      %v2525 = vtanh.pop %v2397
      %v2526 = vtanh.pop %v2398
      %v2527 = vtanh.pop %v2399
      %v2528 = vtanh.pop %v2400
      %v2529 = vtanh.pop %v2401
      %v2530 = vtanh.pop %v2402
      %v2531 = vtanh.pop %v2403
      %v2532 = vtanh.pop %v2404
      %v2533 = vtanh.pop %v2405
      %v2534 = vtanh.pop %v2406
      %v2535 = vtanh.pop %v2407
      %v2536 = vtanh.pop %v2408
      %v2537 = vtanh.pop %v2409
      %v2538 = vtanh.pop %v2410
      %v2539 = vtanh.pop %v2411
      %v2540 = vtanh.pop %v2412
      %v2541 = vtanh.pop %v2413
      %v2542 = vtanh.pop %v2414
      %v2543 = vtanh.pop %v2415
      %v2544 = vtanh.pop %v2416
      %v2545 = vtanh.pop %v2417
      %v2546 = vtanh.pop %v2418
      %v2547 = vtanh.pop %v2419
      %v2548 = vtanh.pop %v2420
      %v2549 = vtanh.pop %v2421
      %v2550 = vtanh.pop %v2422
      %v2551 = vtanh.pop %v2423
      %v2552 = vtanh.pop %v2424
      %v2553 = vtanh.pop %v2425
      %v2554 = vtanh.pop %v2426
      %v2555 = vtanh.pop %v2427
      %v2556 = vtanh.pop %v2428
      %v2557 = vtanh.pop %v2429
      %v2558 = vtanh.pop %v2430
      %v2559 = vtanh.pop %v2431
      %v2560 = vtanh.pop %v2432
      %v2561 = vtanh.pop %v2433
      %v2562 = vtanh.pop %v2434
      %v2563 = vtanh.pop %v2435
      %v2564 = vtanh.pop %v2436
      %v2565 = vtanh.pop %v2437
      %v2566 = vtanh.pop %v2438
      %v2567 = vtanh.pop %v2439
      %v2568 = vtanh.pop %v2440
      %v2569 = vtanh.pop %v2441
      %v2570 = vtanh.pop %v2442
      %v2571 = vtanh.pop %v2443
      %v2572 = vtanh.pop %v2444
      %v2573 = vtanh.pop %v2445
      %v2574 = vtanh.pop %v2446
      %v2575 = vtanh.pop %v2447
      %v2576 = vtanh.pop %v2448
      %v2577 = vtanh.pop %v2449
      %v2578 = vtanh.pop %v2450
      %v2579 = vtanh.pop %v2451
      %v2580 = vtanh.pop %v2452
      %v2581 = vtanh.pop %v2453
      %v2582 = vtanh.pop %v2454
      %v2583 = vtanh.pop %v2455
      %v2584 = vtanh.pop %v2456
      %v2585 = vtanh.pop %v2457
      %v2586 = vtanh.pop %v2458
      %v2587 = vtanh.pop %v2459
      %v2588 = vtanh.pop %v2460
      %v2589 = vtanh.pop %v2461
      %v2590 = vtanh.pop %v2462
      %v2591 = vtanh.pop %v2463
      %v2592 = vtanh.pop %v2464
      %v2593 = vtanh.pop %v2465
      %v2594 = vtanh.pop %v2466
      %v2595 = vtanh.pop %v2467
      %v2596 = vtanh.pop %v2468
      %v2597 = vtanh.pop %v2469
      %v2598 = vtanh.pop %v2470
      %v2599 = vtanh.pop %v2471
      %v2600 = vtanh.pop %v2472
      %v2601 = vtanh.pop %v2473
      %v2602 = vtanh.pop %v2474
      %v2603 = vtanh.pop %v2475
      %v2604 = vtanh.pop %v2476
      %v2605 = vtanh.pop %v2477
      %v2606 = vtanh.pop %v2478
      %v2607 = vtanh.pop %v2479
      %v2608 = vtanh.pop %v2480
      %v2609 = vtanh.pop %v2481
      %v2610 = vtanh.pop %v2482
      %v2611 = vtanh.pop %v2483
      %v2612 = vtanh.pop %v2484
      %v2613 = vtanh.pop %v2485
      %v2614 = vtanh.pop %v2486
      %v2615 = vtanh.pop %v2487
      %v2616 = vtanh.pop %v2488
      %v2617 = vtanh.pop %v2489
      %v2618 = vtanh.pop %v2490
      %v2619 = vtanh.pop %v2491
      %v2620 = vtanh.pop %v2492
      %v2621 = vtanh.pop %v2493
      %v2622 = vtanh.pop %v2494
      %v2623 = vtanh.pop %v2495
      %v2624 = vtanh.pop %v2496
      %v2625 = vtanh.pop %v2497
      %v2626 = vtanh.pop %v2498
      %v2627 = vtanh.pop %v2499
      %v2628 = vtanh.pop %v2500
      %v2629 = vtanh.pop %v2501
      %v2630 = vtanh.pop %v2502
      %v2631 = vtanh.pop %v2503
      %v2632 = vtanh.pop %v2504
      %v2633 = vtanh.pop %v2505
      %v2634 = vtanh.pop %v2506
      %v2635 = vtanh.pop %v2507
      %v2636 = vtanh.pop %v2508
      %v2637 = vtanh.pop %v2509
      %v2638 = vtanh.pop %v2510
      %v2639 = vtanh.pop %v2511
      %v2640 = vtanh.pop %v2512
      %v2641 = vadd.f32 %v2513, 1.0
      %v2642 = vadd.f32 %v2514, 1.0
      %v2643 = vadd.f32 %v2515, 1.0
      %v2644 = vadd.f32 %v2516, 1.0
      %v2645 = vadd.f32 %v2517, 1.0
      %v2646 = vadd.f32 %v2518, 1.0
      %v2647 = vadd.f32 %v2519, 1.0
      %v2648 = vadd.f32 %v2520, 1.0
      %v2649 = vadd.f32 %v2521, 1.0
      %v2650 = vadd.f32 %v2522, 1.0
      %v2651 = vadd.f32 %v2523, 1.0
      %v2652 = vadd.f32 %v2524, 1.0
      %v2653 = vadd.f32 %v2525, 1.0
      %v2654 = vadd.f32 %v2526, 1.0
      %v2655 = vadd.f32 %v2527, 1.0
      %v2656 = vadd.f32 %v2528, 1.0
      %v2657 = vadd.f32 %v2529, 1.0
      %v2658 = vadd.f32 %v2530, 1.0
      %v2659 = vadd.f32 %v2531, 1.0
      %v2660 = vadd.f32 %v2532, 1.0
      %v2661 = vadd.f32 %v2533, 1.0
      %v2662 = vadd.f32 %v2534, 1.0
      %v2663 = vadd.f32 %v2535, 1.0
      %v2664 = vadd.f32 %v2536, 1.0
      %v2665 = vadd.f32 %v2537, 1.0
      %v2666 = vadd.f32 %v2538, 1.0
      %v2667 = vadd.f32 %v2539, 1.0
      %v2668 = vadd.f32 %v2540, 1.0
      %v2669 = vadd.f32 %v2541, 1.0
      %v2670 = vadd.f32 %v2542, 1.0
      %v2671 = vadd.f32 %v2543, 1.0
      %v2672 = vadd.f32 %v2544, 1.0
      %v2673 = vadd.f32 %v2545, 1.0
      %v2674 = vadd.f32 %v2546, 1.0
      %v2675 = vadd.f32 %v2547, 1.0
      %v2676 = vadd.f32 %v2548, 1.0
      %v2677 = vadd.f32 %v2549, 1.0
      %v2678 = vadd.f32 %v2550, 1.0
      %v2679 = vadd.f32 %v2551, 1.0
      %v2680 = vadd.f32 %v2552, 1.0
      %v2681 = vadd.f32 %v2553, 1.0
      %v2682 = vadd.f32 %v2554, 1.0
      %v2683 = vadd.f32 %v2555, 1.0
      %v2684 = vadd.f32 %v2556, 1.0
      %v2685 = vadd.f32 %v2557, 1.0
      %v2686 = vadd.f32 %v2558, 1.0
      %v2687 = vadd.f32 %v2559, 1.0
      %v2688 = vadd.f32 %v2560, 1.0
      %v2689 = vadd.f32 %v2561, 1.0
      %v2690 = vadd.f32 %v2562, 1.0
      %v2691 = vadd.f32 %v2563, 1.0
      %v2692 = vadd.f32 %v2564, 1.0
      %v2693 = vadd.f32 %v2565, 1.0
      %v2694 = vadd.f32 %v2566, 1.0
      %v2695 = vadd.f32 %v2567, 1.0
      %v2696 = vadd.f32 %v2568, 1.0
      %v2697 = vadd.f32 %v2569, 1.0
      %v2698 = vadd.f32 %v2570, 1.0
      %v2699 = vadd.f32 %v2571, 1.0
      %v2700 = vadd.f32 %v2572, 1.0
      %v2701 = vadd.f32 %v2573, 1.0
      %v2702 = vadd.f32 %v2574, 1.0
      %v2703 = vadd.f32 %v2575, 1.0
      %v2704 = vadd.f32 %v2576, 1.0
      %v2705 = vadd.f32 %v2577, 1.0
      %v2706 = vadd.f32 %v2578, 1.0
      %v2707 = vadd.f32 %v2579, 1.0
      %v2708 = vadd.f32 %v2580, 1.0
      %v2709 = vadd.f32 %v2581, 1.0
      %v2710 = vadd.f32 %v2582, 1.0
      %v2711 = vadd.f32 %v2583, 1.0
      %v2712 = vadd.f32 %v2584, 1.0
      %v2713 = vadd.f32 %v2585, 1.0
      %v2714 = vadd.f32 %v2586, 1.0
      %v2715 = vadd.f32 %v2587, 1.0
      %v2716 = vadd.f32 %v2588, 1.0
      %v2717 = vadd.f32 %v2589, 1.0
      %v2718 = vadd.f32 %v2590, 1.0
      %v2719 = vadd.f32 %v2591, 1.0
      %v2720 = vadd.f32 %v2592, 1.0
      %v2721 = vadd.f32 %v2593, 1.0
      %v2722 = vadd.f32 %v2594, 1.0
      %v2723 = vadd.f32 %v2595, 1.0
      %v2724 = vadd.f32 %v2596, 1.0
      %v2725 = vadd.f32 %v2597, 1.0
      %v2726 = vadd.f32 %v2598, 1.0
      %v2727 = vadd.f32 %v2599, 1.0
      %v2728 = vadd.f32 %v2600, 1.0
      %v2729 = vadd.f32 %v2601, 1.0
      %v2730 = vadd.f32 %v2602, 1.0
      %v2731 = vadd.f32 %v2603, 1.0
      %v2732 = vadd.f32 %v2604, 1.0
      %v2733 = vadd.f32 %v2605, 1.0
      %v2734 = vadd.f32 %v2606, 1.0
      %v2735 = vadd.f32 %v2607, 1.0
      %v2736 = vadd.f32 %v2608, 1.0
      %v2737 = vadd.f32 %v2609, 1.0
      %v2738 = vadd.f32 %v2610, 1.0
      %v2739 = vadd.f32 %v2611, 1.0
      %v2740 = vadd.f32 %v2612, 1.0
      %v2741 = vadd.f32 %v2613, 1.0
      %v2742 = vadd.f32 %v2614, 1.0
      %v2743 = vadd.f32 %v2615, 1.0
      %v2744 = vadd.f32 %v2616, 1.0
      %v2745 = vadd.f32 %v2617, 1.0
      %v2746 = vadd.f32 %v2618, 1.0
      %v2747 = vadd.f32 %v2619, 1.0
      %v2748 = vadd.f32 %v2620, 1.0
      %v2749 = vadd.f32 %v2621, 1.0
      %v2750 = vadd.f32 %v2622, 1.0
      %v2751 = vadd.f32 %v2623, 1.0
      %v2752 = vadd.f32 %v2624, 1.0
      %v2753 = vadd.f32 %v2625, 1.0
      %v2754 = vadd.f32 %v2626, 1.0
      %v2755 = vadd.f32 %v2627, 1.0
      %v2756 = vadd.f32 %v2628, 1.0
      %v2757 = vadd.f32 %v2629, 1.0
      %v2758 = vadd.f32 %v2630, 1.0
      %v2759 = vadd.f32 %v2631, 1.0
      %v2760 = vadd.f32 %v2632, 1.0
      %v2761 = vadd.f32 %v2633, 1.0
      %v2762 = vadd.f32 %v2634, 1.0
      %v2763 = vadd.f32 %v2635, 1.0
      %v2764 = vadd.f32 %v2636, 1.0
      %v2765 = vadd.f32 %v2637, 1.0
      %v2766 = vadd.f32 %v2638, 1.0
      %v2767 = vadd.f32 %v2639, 1.0
      %v2768 = vadd.f32 %v2640, 1.0
      %v2769 = vmul.f32 %v1745, %v2641
      %v2770 = vmul.f32 %v1746, %v2642
      %v2771 = vmul.f32 %v1747, %v2643
      %v2772 = vmul.f32 %v1748, %v2644
      %v2773 = vmul.f32 %v1749, %v2645
      %v2774 = vmul.f32 %v1750, %v2646
      %v2775 = vmul.f32 %v1751, %v2647
      %v2776 = vmul.f32 %v1752, %v2648
      %v2777 = vmul.f32 %v1753, %v2649
      %v2778 = vmul.f32 %v1754, %v2650
      %v2779 = vmul.f32 %v1755, %v2651
      %v2780 = vmul.f32 %v1756, %v2652
      %v2781 = vmul.f32 %v1757, %v2653
      %v2782 = vmul.f32 %v1758, %v2654
      %v2783 = vmul.f32 %v1759, %v2655
      %v2784 = vmul.f32 %v1760, %v2656
      %v2785 = vmul.f32 %v1761, %v2657
      %v2786 = vmul.f32 %v1762, %v2658
      %v2787 = vmul.f32 %v1763, %v2659
      %v2788 = vmul.f32 %v1764, %v2660
      %v2789 = vmul.f32 %v1765, %v2661
      %v2790 = vmul.f32 %v1766, %v2662
      %v2791 = vmul.f32 %v1767, %v2663
      %v2792 = vmul.f32 %v1768, %v2664
      %v2793 = vmul.f32 %v1769, %v2665
      %v2794 = vmul.f32 %v1770, %v2666
      %v2795 = vmul.f32 %v1771, %v2667
      %v2796 = vmul.f32 %v1772, %v2668
      %v2797 = vmul.f32 %v1773, %v2669
      %v2798 = vmul.f32 %v1774, %v2670
      %v2799 = vmul.f32 %v1775, %v2671
      %v2800 = vmul.f32 %v1776, %v2672
      %v2801 = vmul.f32 %v1777, %v2673
      %v2802 = vmul.f32 %v1778, %v2674
      %v2803 = vmul.f32 %v1779, %v2675
      %v2804 = vmul.f32 %v1780, %v2676
      %v2805 = vmul.f32 %v1781, %v2677
      %v2806 = vmul.f32 %v1782, %v2678
      %v2807 = vmul.f32 %v1783, %v2679
      %v2808 = vmul.f32 %v1784, %v2680
      %v2809 = vmul.f32 %v1785, %v2681
      %v2810 = vmul.f32 %v1786, %v2682
      %v2811 = vmul.f32 %v1787, %v2683
      %v2812 = vmul.f32 %v1788, %v2684
      %v2813 = vmul.f32 %v1789, %v2685
      %v2814 = vmul.f32 %v1790, %v2686
      %v2815 = vmul.f32 %v1791, %v2687
      %v2816 = vmul.f32 %v1792, %v2688
      %v2817 = vmul.f32 %v1793, %v2689
      %v2818 = vmul.f32 %v1794, %v2690
      %v2819 = vmul.f32 %v1795, %v2691
      %v2820 = vmul.f32 %v1796, %v2692
      %v2821 = vmul.f32 %v1797, %v2693
      %v2822 = vmul.f32 %v1798, %v2694
      %v2823 = vmul.f32 %v1799, %v2695
      %v2824 = vmul.f32 %v1800, %v2696
      %v2825 = vmul.f32 %v1801, %v2697
      %v2826 = vmul.f32 %v1802, %v2698
      %v2827 = vmul.f32 %v1803, %v2699
      %v2828 = vmul.f32 %v1804, %v2700
      %v2829 = vmul.f32 %v1805, %v2701
      %v2830 = vmul.f32 %v1806, %v2702
      %v2831 = vmul.f32 %v1807, %v2703
      %v2832 = vmul.f32 %v1808, %v2704
      %v2833 = vmul.f32 %v1809, %v2705
      %v2834 = vmul.f32 %v1810, %v2706
      %v2835 = vmul.f32 %v1811, %v2707
      %v2836 = vmul.f32 %v1812, %v2708
      %v2837 = vmul.f32 %v1813, %v2709
      %v2838 = vmul.f32 %v1814, %v2710
      %v2839 = vmul.f32 %v1815, %v2711
      %v2840 = vmul.f32 %v1816, %v2712
      %v2841 = vmul.f32 %v1817, %v2713
      %v2842 = vmul.f32 %v1818, %v2714
      %v2843 = vmul.f32 %v1819, %v2715
      %v2844 = vmul.f32 %v1820, %v2716
      %v2845 = vmul.f32 %v1821, %v2717
      %v2846 = vmul.f32 %v1822, %v2718
      %v2847 = vmul.f32 %v1823, %v2719
      %v2848 = vmul.f32 %v1824, %v2720
      %v2849 = vmul.f32 %v1825, %v2721
      %v2850 = vmul.f32 %v1826, %v2722
      %v2851 = vmul.f32 %v1827, %v2723
      %v2852 = vmul.f32 %v1828, %v2724
      %v2853 = vmul.f32 %v1829, %v2725
      %v2854 = vmul.f32 %v1830, %v2726
      %v2855 = vmul.f32 %v1831, %v2727
      %v2856 = vmul.f32 %v1832, %v2728
      %v2857 = vmul.f32 %v1833, %v2729
      %v2858 = vmul.f32 %v1834, %v2730
      %v2859 = vmul.f32 %v1835, %v2731
      %v2860 = vmul.f32 %v1836, %v2732
      %v2861 = vmul.f32 %v1837, %v2733
      %v2862 = vmul.f32 %v1838, %v2734
      %v2863 = vmul.f32 %v1839, %v2735
      %v2864 = vmul.f32 %v1840, %v2736
      %v2865 = vmul.f32 %v1841, %v2737
      %v2866 = vmul.f32 %v1842, %v2738
      %v2867 = vmul.f32 %v1843, %v2739
      %v2868 = vmul.f32 %v1844, %v2740
      %v2869 = vmul.f32 %v1845, %v2741
      %v2870 = vmul.f32 %v1846, %v2742
      %v2871 = vmul.f32 %v1847, %v2743
      %v2872 = vmul.f32 %v1848, %v2744
      %v2873 = vmul.f32 %v1849, %v2745
      %v2874 = vmul.f32 %v1850, %v2746
      %v2875 = vmul.f32 %v1851, %v2747
      %v2876 = vmul.f32 %v1852, %v2748
      %v2877 = vmul.f32 %v1853, %v2749
      %v2878 = vmul.f32 %v1854, %v2750
      %v2879 = vmul.f32 %v1855, %v2751
      %v2880 = vmul.f32 %v1856, %v2752
      %v2881 = vmul.f32 %v1857, %v2753
      %v2882 = vmul.f32 %v1858, %v2754
      %v2883 = vmul.f32 %v1859, %v2755
      %v2884 = vmul.f32 %v1860, %v2756
      %v2885 = vmul.f32 %v1861, %v2757
      %v2886 = vmul.f32 %v1862, %v2758
      %v2887 = vmul.f32 %v1863, %v2759
      %v2888 = vmul.f32 %v1864, %v2760
      %v2889 = vmul.f32 %v1865, %v2761
      %v2890 = vmul.f32 %v1866, %v2762
      %v2891 = vmul.f32 %v1867, %v2763
      %v2892 = vmul.f32 %v1868, %v2764
      %v2893 = vmul.f32 %v1869, %v2765
      %v2894 = vmul.f32 %v1870, %v2766
      %v2895 = vmul.f32 %v1871, %v2767
      %v2896 = vmul.f32 %v1872, %v2768
      %v2897 = vpack.c.bf16 %v2770, %v2769
      %v2898 = vpack.c.bf16 %v2772, %v2771
      %v2899 = vpack.c.bf16 %v2774, %v2773
      %v2900 = vpack.c.bf16 %v2776, %v2775
      %v2901 = vpack.c.bf16 %v2778, %v2777
      %v2902 = vpack.c.bf16 %v2780, %v2779
      %v2903 = vpack.c.bf16 %v2782, %v2781
      %v2904 = vpack.c.bf16 %v2784, %v2783
      %v2905 = vpack.c.bf16 %v2786, %v2785
      %v2906 = vpack.c.bf16 %v2788, %v2787
      %v2907 = vpack.c.bf16 %v2790, %v2789
      %v2908 = vpack.c.bf16 %v2792, %v2791
      %v2909 = vpack.c.bf16 %v2794, %v2793
      %v2910 = vpack.c.bf16 %v2796, %v2795
      %v2911 = vpack.c.bf16 %v2798, %v2797
      %v2912 = vpack.c.bf16 %v2800, %v2799
      %v2913 = vpack.c.bf16 %v2802, %v2801
      %v2914 = vpack.c.bf16 %v2804, %v2803
      %v2915 = vpack.c.bf16 %v2806, %v2805
      %v2916 = vpack.c.bf16 %v2808, %v2807
      %v2917 = vpack.c.bf16 %v2810, %v2809
      %v2918 = vpack.c.bf16 %v2812, %v2811
      %v2919 = vpack.c.bf16 %v2814, %v2813
      %v2920 = vpack.c.bf16 %v2816, %v2815
      %v2921 = vpack.c.bf16 %v2818, %v2817
      %v2922 = vpack.c.bf16 %v2820, %v2819
      %v2923 = vpack.c.bf16 %v2822, %v2821
      %v2924 = vpack.c.bf16 %v2824, %v2823
      %v2925 = vpack.c.bf16 %v2826, %v2825
      %v2926 = vpack.c.bf16 %v2828, %v2827
      %v2927 = vpack.c.bf16 %v2830, %v2829
      %v2928 = vpack.c.bf16 %v2832, %v2831
      %v2929 = vpack.c.bf16 %v2834, %v2833
      %v2930 = vpack.c.bf16 %v2836, %v2835
      %v2931 = vpack.c.bf16 %v2838, %v2837
      %v2932 = vpack.c.bf16 %v2840, %v2839
      %v2933 = vpack.c.bf16 %v2842, %v2841
      %v2934 = vpack.c.bf16 %v2844, %v2843
      %v2935 = vpack.c.bf16 %v2846, %v2845
      %v2936 = vpack.c.bf16 %v2848, %v2847
      %v2937 = vpack.c.bf16 %v2850, %v2849
      %v2938 = vpack.c.bf16 %v2852, %v2851
      %v2939 = vpack.c.bf16 %v2854, %v2853
      %v2940 = vpack.c.bf16 %v2856, %v2855
      %v2941 = vpack.c.bf16 %v2858, %v2857
      %v2942 = vpack.c.bf16 %v2860, %v2859
      %v2943 = vpack.c.bf16 %v2862, %v2861
      %v2944 = vpack.c.bf16 %v2864, %v2863
      %v2945 = vpack.c.bf16 %v2866, %v2865
      %v2946 = vpack.c.bf16 %v2868, %v2867
      %v2947 = vpack.c.bf16 %v2870, %v2869
      %v2948 = vpack.c.bf16 %v2872, %v2871
      %v2949 = vpack.c.bf16 %v2874, %v2873
      %v2950 = vpack.c.bf16 %v2876, %v2875
      %v2951 = vpack.c.bf16 %v2878, %v2877
      %v2952 = vpack.c.bf16 %v2880, %v2879
      %v2953 = vpack.c.bf16 %v2882, %v2881
      %v2954 = vpack.c.bf16 %v2884, %v2883
      %v2955 = vpack.c.bf16 %v2886, %v2885
      %v2956 = vpack.c.bf16 %v2888, %v2887
      %v2957 = vpack.c.bf16 %v2890, %v2889
      %v2958 = vpack.c.bf16 %v2892, %v2891
      %v2959 = vpack.c.bf16 %v2894, %v2893
      %v2960 = vpack.c.bf16 %v2896, %v2895
      %v3025 = vunpack.c.l.b16 %v2897
      %v3026 = vunpack.c.h.b16 %v2897
      %v3027 = vunpack.c.l.b16 %v2898
      %v3028 = vunpack.c.h.b16 %v2898
      %v3029 = vunpack.c.l.b16 %v2899
      %v3030 = vunpack.c.h.b16 %v2899
      %v3031 = vunpack.c.l.b16 %v2900
      %v3032 = vunpack.c.h.b16 %v2900
      %v3033 = vunpack.c.l.b16 %v2901
      %v3034 = vunpack.c.h.b16 %v2901
      %v3035 = vunpack.c.l.b16 %v2902
      %v3036 = vunpack.c.h.b16 %v2902
      %v3037 = vunpack.c.l.b16 %v2903
      %v3038 = vunpack.c.h.b16 %v2903
      %v3039 = vunpack.c.l.b16 %v2904
      %v3040 = vunpack.c.h.b16 %v2904
      %v3041 = vunpack.c.l.b16 %v2905
      %v3042 = vunpack.c.h.b16 %v2905
      %v3043 = vunpack.c.l.b16 %v2906
      %v3044 = vunpack.c.h.b16 %v2906
      %v3045 = vunpack.c.l.b16 %v2907
      %v3046 = vunpack.c.h.b16 %v2907
      %v3047 = vunpack.c.l.b16 %v2908
      %v3048 = vunpack.c.h.b16 %v2908
      %v3049 = vunpack.c.l.b16 %v2909
      %v3050 = vunpack.c.h.b16 %v2909
      %v3051 = vunpack.c.l.b16 %v2910
      %v3052 = vunpack.c.h.b16 %v2910
      %v3053 = vunpack.c.l.b16 %v2911
      %v3054 = vunpack.c.h.b16 %v2911
      %v3055 = vunpack.c.l.b16 %v2912
      %v3056 = vunpack.c.h.b16 %v2912
      %v3057 = vunpack.c.l.b16 %v2913
      %v3058 = vunpack.c.h.b16 %v2913
      %v3059 = vunpack.c.l.b16 %v2914
      %v3060 = vunpack.c.h.b16 %v2914
      %v3061 = vunpack.c.l.b16 %v2915
      %v3062 = vunpack.c.h.b16 %v2915
      %v3063 = vunpack.c.l.b16 %v2916
      %v3064 = vunpack.c.h.b16 %v2916
      %v3065 = vunpack.c.l.b16 %v2917
      %v3066 = vunpack.c.h.b16 %v2917
      %v3067 = vunpack.c.l.b16 %v2918
      %v3068 = vunpack.c.h.b16 %v2918
      %v3069 = vunpack.c.l.b16 %v2919
      %v3070 = vunpack.c.h.b16 %v2919
      %v3071 = vunpack.c.l.b16 %v2920
      %v3072 = vunpack.c.h.b16 %v2920
      %v3073 = vunpack.c.l.b16 %v2921
      %v3074 = vunpack.c.h.b16 %v2921
      %v3075 = vunpack.c.l.b16 %v2922
      %v3076 = vunpack.c.h.b16 %v2922
      %v3077 = vunpack.c.l.b16 %v2923
      %v3078 = vunpack.c.h.b16 %v2923
      %v3079 = vunpack.c.l.b16 %v2924
      %v3080 = vunpack.c.h.b16 %v2924
      %v3081 = vunpack.c.l.b16 %v2925
      %v3082 = vunpack.c.h.b16 %v2925
      %v3083 = vunpack.c.l.b16 %v2926
      %v3084 = vunpack.c.h.b16 %v2926
      %v3085 = vunpack.c.l.b16 %v2927
      %v3086 = vunpack.c.h.b16 %v2927
      %v3087 = vunpack.c.l.b16 %v2928
      %v3088 = vunpack.c.h.b16 %v2928
      %v3089 = vunpack.c.l.b16 %v2929
      %v3090 = vunpack.c.h.b16 %v2929
      %v3091 = vunpack.c.l.b16 %v2930
      %v3092 = vunpack.c.h.b16 %v2930
      %v3093 = vunpack.c.l.b16 %v2931
      %v3094 = vunpack.c.h.b16 %v2931
      %v3095 = vunpack.c.l.b16 %v2932
      %v3096 = vunpack.c.h.b16 %v2932
      %v3097 = vunpack.c.l.b16 %v2933
      %v3098 = vunpack.c.h.b16 %v2933
      %v3099 = vunpack.c.l.b16 %v2934
      %v3100 = vunpack.c.h.b16 %v2934
      %v3101 = vunpack.c.l.b16 %v2935
      %v3102 = vunpack.c.h.b16 %v2935
      %v3103 = vunpack.c.l.b16 %v2936
      %v3104 = vunpack.c.h.b16 %v2936
      %v3105 = vunpack.c.l.b16 %v2937
      %v3106 = vunpack.c.h.b16 %v2937
      %v3107 = vunpack.c.l.b16 %v2938
      %v3108 = vunpack.c.h.b16 %v2938
      %v3109 = vunpack.c.l.b16 %v2939
      %v3110 = vunpack.c.h.b16 %v2939
      %v3111 = vunpack.c.l.b16 %v2940
      %v3112 = vunpack.c.h.b16 %v2940
      %v3113 = vunpack.c.l.b16 %v2941
      %v3114 = vunpack.c.h.b16 %v2941
      %v3115 = vunpack.c.l.b16 %v2942
      %v3116 = vunpack.c.h.b16 %v2942
      %v3117 = vunpack.c.l.b16 %v2943
      %v3118 = vunpack.c.h.b16 %v2943
      %v3119 = vunpack.c.l.b16 %v2944
      %v3120 = vunpack.c.h.b16 %v2944
      %v3121 = vunpack.c.l.b16 %v2945
      %v3122 = vunpack.c.h.b16 %v2945
      %v3123 = vunpack.c.l.b16 %v2946
      %v3124 = vunpack.c.h.b16 %v2946
      %v3125 = vunpack.c.l.b16 %v2947
      %v3126 = vunpack.c.h.b16 %v2947
      %v3127 = vunpack.c.l.b16 %v2948
      %v3128 = vunpack.c.h.b16 %v2948
      %v3129 = vunpack.c.l.b16 %v2949
      %v3130 = vunpack.c.h.b16 %v2949
      %v3131 = vunpack.c.l.b16 %v2950
      %v3132 = vunpack.c.h.b16 %v2950
      %v3133 = vunpack.c.l.b16 %v2951
      %v3134 = vunpack.c.h.b16 %v2951
      %v3135 = vunpack.c.l.b16 %v2952
      %v3136 = vunpack.c.h.b16 %v2952
      %v3137 = vunpack.c.l.b16 %v2953
      %v3138 = vunpack.c.h.b16 %v2953
      %v3139 = vunpack.c.l.b16 %v2954
      %v3140 = vunpack.c.h.b16 %v2954
      %v3141 = vunpack.c.l.b16 %v2955
      %v3142 = vunpack.c.h.b16 %v2955
      %v3143 = vunpack.c.l.b16 %v2956
      %v3144 = vunpack.c.h.b16 %v2956
      %v3145 = vunpack.c.l.b16 %v2957
      %v3146 = vunpack.c.h.b16 %v2957
      %v3147 = vunpack.c.l.b16 %v2958
      %v3148 = vunpack.c.h.b16 %v2958
      %v3149 = vunpack.c.l.b16 %v2959
      %v3150 = vunpack.c.h.b16 %v2959
      %v3151 = vunpack.c.l.b16 %v2960
      %v3152 = vunpack.c.h.b16 %v2960
      %v3153 = vpack.c.b16 %v3025, %v3025
      %v3154 = vpack.c.b16 %v3026, %v3026
      %v3155 = vpack.c.b16 %v3027, %v3027
      %v3156 = vpack.c.b16 %v3028, %v3028
      %v3157 = vpack.c.b16 %v3029, %v3029
      %v3158 = vpack.c.b16 %v3030, %v3030
      %v3159 = vpack.c.b16 %v3031, %v3031
      %v3160 = vpack.c.b16 %v3032, %v3032
      %v3161 = vpack.c.b16 %v3033, %v3033
      %v3162 = vpack.c.b16 %v3034, %v3034
      %v3163 = vpack.c.b16 %v3035, %v3035
      %v3164 = vpack.c.b16 %v3036, %v3036
      %v3165 = vpack.c.b16 %v3037, %v3037
      %v3166 = vpack.c.b16 %v3038, %v3038
      %v3167 = vpack.c.b16 %v3039, %v3039
      %v3168 = vpack.c.b16 %v3040, %v3040
      %v3169 = vpack.c.b16 %v3041, %v3041
      %v3170 = vpack.c.b16 %v3042, %v3042
      %v3171 = vpack.c.b16 %v3043, %v3043
      %v3172 = vpack.c.b16 %v3044, %v3044
      %v3173 = vpack.c.b16 %v3045, %v3045
      %v3174 = vpack.c.b16 %v3046, %v3046
      %v3175 = vpack.c.b16 %v3047, %v3047
      %v3176 = vpack.c.b16 %v3048, %v3048
      %v3177 = vpack.c.b16 %v3049, %v3049
      %v3178 = vpack.c.b16 %v3050, %v3050
      %v3179 = vpack.c.b16 %v3051, %v3051
      %v3180 = vpack.c.b16 %v3052, %v3052
      %v3181 = vpack.c.b16 %v3053, %v3053
      %v3182 = vpack.c.b16 %v3054, %v3054
      %v3183 = vpack.c.b16 %v3055, %v3055
      %v3184 = vpack.c.b16 %v3056, %v3056
      %v3185 = vpack.c.b16 %v3057, %v3057
      %v3186 = vpack.c.b16 %v3058, %v3058
      %v3187 = vpack.c.b16 %v3059, %v3059
      %v3188 = vpack.c.b16 %v3060, %v3060
      %v3189 = vpack.c.b16 %v3061, %v3061
      %v3190 = vpack.c.b16 %v3062, %v3062
      %v3191 = vpack.c.b16 %v3063, %v3063
      %v3192 = vpack.c.b16 %v3064, %v3064
      %v3193 = vpack.c.b16 %v3065, %v3065
      %v3194 = vpack.c.b16 %v3066, %v3066
      %v3195 = vpack.c.b16 %v3067, %v3067
      %v3196 = vpack.c.b16 %v3068, %v3068
      %v3197 = vpack.c.b16 %v3069, %v3069
      %v3198 = vpack.c.b16 %v3070, %v3070
      %v3199 = vpack.c.b16 %v3071, %v3071
      %v3200 = vpack.c.b16 %v3072, %v3072
      %v3201 = vpack.c.b16 %v3073, %v3073
      %v3202 = vpack.c.b16 %v3074, %v3074
      %v3203 = vpack.c.b16 %v3075, %v3075
      %v3204 = vpack.c.b16 %v3076, %v3076
      %v3205 = vpack.c.b16 %v3077, %v3077
      %v3206 = vpack.c.b16 %v3078, %v3078
      %v3207 = vpack.c.b16 %v3079, %v3079
      %v3208 = vpack.c.b16 %v3080, %v3080
      %v3209 = vpack.c.b16 %v3081, %v3081
      %v3210 = vpack.c.b16 %v3082, %v3082
      %v3211 = vpack.c.b16 %v3083, %v3083
      %v3212 = vpack.c.b16 %v3084, %v3084
      %v3213 = vpack.c.b16 %v3085, %v3085
      %v3214 = vpack.c.b16 %v3086, %v3086
      %v3215 = vpack.c.b16 %v3087, %v3087
      %v3216 = vpack.c.b16 %v3088, %v3088
      %v3217 = vpack.c.b16 %v3089, %v3089
      %v3218 = vpack.c.b16 %v3090, %v3090
      %v3219 = vpack.c.b16 %v3091, %v3091
      %v3220 = vpack.c.b16 %v3092, %v3092
      %v3221 = vpack.c.b16 %v3093, %v3093
      %v3222 = vpack.c.b16 %v3094, %v3094
      %v3223 = vpack.c.b16 %v3095, %v3095
      %v3224 = vpack.c.b16 %v3096, %v3096
      %v3225 = vpack.c.b16 %v3097, %v3097
      %v3226 = vpack.c.b16 %v3098, %v3098
      %v3227 = vpack.c.b16 %v3099, %v3099
      %v3228 = vpack.c.b16 %v3100, %v3100
      %v3229 = vpack.c.b16 %v3101, %v3101
      %v3230 = vpack.c.b16 %v3102, %v3102
      %v3231 = vpack.c.b16 %v3103, %v3103
      %v3232 = vpack.c.b16 %v3104, %v3104
      %v3233 = vpack.c.b16 %v3105, %v3105
      %v3234 = vpack.c.b16 %v3106, %v3106
      %v3235 = vpack.c.b16 %v3107, %v3107
      %v3236 = vpack.c.b16 %v3108, %v3108
      %v3237 = vpack.c.b16 %v3109, %v3109
      %v3238 = vpack.c.b16 %v3110, %v3110
      %v3239 = vpack.c.b16 %v3111, %v3111
      %v3240 = vpack.c.b16 %v3112, %v3112
      %v3241 = vpack.c.b16 %v3113, %v3113
      %v3242 = vpack.c.b16 %v3114, %v3114
      %v3243 = vpack.c.b16 %v3115, %v3115
      %v3244 = vpack.c.b16 %v3116, %v3116
      %v3245 = vpack.c.b16 %v3117, %v3117
      %v3246 = vpack.c.b16 %v3118, %v3118
      %v3247 = vpack.c.b16 %v3119, %v3119
      %v3248 = vpack.c.b16 %v3120, %v3120
      %v3249 = vpack.c.b16 %v3121, %v3121
      %v3250 = vpack.c.b16 %v3122, %v3122
      %v3251 = vpack.c.b16 %v3123, %v3123
      %v3252 = vpack.c.b16 %v3124, %v3124
      %v3253 = vpack.c.b16 %v3125, %v3125
      %v3254 = vpack.c.b16 %v3126, %v3126
      %v3255 = vpack.c.b16 %v3127, %v3127
      %v3256 = vpack.c.b16 %v3128, %v3128
      %v3257 = vpack.c.b16 %v3129, %v3129
      %v3258 = vpack.c.b16 %v3130, %v3130
      %v3259 = vpack.c.b16 %v3131, %v3131
      %v3260 = vpack.c.b16 %v3132, %v3132
      %v3261 = vpack.c.b16 %v3133, %v3133
      %v3262 = vpack.c.b16 %v3134, %v3134
      %v3263 = vpack.c.b16 %v3135, %v3135
      %v3264 = vpack.c.b16 %v3136, %v3136
      %v3265 = vpack.c.b16 %v3137, %v3137
      %v3266 = vpack.c.b16 %v3138, %v3138
      %v3267 = vpack.c.b16 %v3139, %v3139
      %v3268 = vpack.c.b16 %v3140, %v3140
      %v3269 = vpack.c.b16 %v3141, %v3141
      %v3270 = vpack.c.b16 %v3142, %v3142
      %v3271 = vpack.c.b16 %v3143, %v3143
      %v3272 = vpack.c.b16 %v3144, %v3144
      %v3273 = vpack.c.b16 %v3145, %v3145
      %v3274 = vpack.c.b16 %v3146, %v3146
      %v3275 = vpack.c.b16 %v3147, %v3147
      %v3276 = vpack.c.b16 %v3148, %v3148
      %v3277 = vpack.c.b16 %v3149, %v3149
      %v3278 = vpack.c.b16 %v3150, %v3150
      %v3279 = vpack.c.b16 %v3151, %v3151
      %v3280 = vpack.c.b16 %v3152, %v3152
      %vm3409 = vcmask 60416
      %3410 = vst.msk [vmem:[%s264] sm:$0xf] %vm3409, %v3153
      %3411 = vst.msk [vmem:[%s264 + $0x4] sm:$0xf] %vm3409, %v3154
      %3412 = vst.msk [vmem:[%s264 + $0x8] sm:$0xf] %vm3409, %v3155
      %3413 = vst.msk [vmem:[%s264 + $0xc] sm:$0xf] %vm3409, %v3156
      %3414 = vst.msk [vmem:[%s264 + $0x10] sm:$0xf] %vm3409, %v3157
      %3415 = vst.msk [vmem:[%s264 + $0x14] sm:$0xf] %vm3409, %v3158
      %3416 = vst.msk [vmem:[%s264 + $0x18] sm:$0xf] %vm3409, %v3159
      %3417 = vst.msk [vmem:[%s264 + $0x1c] sm:$0xf] %vm3409, %v3160
      %3418 = vst.msk [vmem:[%s264 + $0x20] sm:$0xf] %vm3409, %v3161
      %3419 = vst.msk [vmem:[%s264 + $0x24] sm:$0xf] %vm3409, %v3162
      %3420 = vst.msk [vmem:[%s264 + $0x28] sm:$0xf] %vm3409, %v3163
      %3421 = vst.msk [vmem:[%s264 + $0x2c] sm:$0xf] %vm3409, %v3164
      %3422 = vst.msk [vmem:[%s264 + $0x30] sm:$0xf] %vm3409, %v3165
      %3423 = vst.msk [vmem:[%s264 + $0x34] sm:$0xf] %vm3409, %v3166
      %3424 = vst.msk [vmem:[%s264 + $0x38] sm:$0xf] %vm3409, %v3167
      %3425 = vst.msk [vmem:[%s264 + $0x3c] sm:$0xf] %vm3409, %v3168
      %3426 = vst.msk [vmem:[%s264 + $0x40] sm:$0xf] %vm3409, %v3169
      %3427 = vst.msk [vmem:[%s264 + $0x44] sm:$0xf] %vm3409, %v3170
      %3428 = vst.msk [vmem:[%s264 + $0x48] sm:$0xf] %vm3409, %v3171
      %3429 = vst.msk [vmem:[%s264 + $0x4c] sm:$0xf] %vm3409, %v3172
      %3430 = vst.msk [vmem:[%s264 + $0x50] sm:$0xf] %vm3409, %v3173
      %3431 = vst.msk [vmem:[%s264 + $0x54] sm:$0xf] %vm3409, %v3174
      %3432 = vst.msk [vmem:[%s264 + $0x58] sm:$0xf] %vm3409, %v3175
      %3433 = vst.msk [vmem:[%s264 + $0x5c] sm:$0xf] %vm3409, %v3176
      %3434 = vst.msk [vmem:[%s264 + $0x60] sm:$0xf] %vm3409, %v3177
      %3435 = vst.msk [vmem:[%s264 + $0x64] sm:$0xf] %vm3409, %v3178
      %3436 = vst.msk [vmem:[%s264 + $0x68] sm:$0xf] %vm3409, %v3179
      %3437 = vst.msk [vmem:[%s264 + $0x6c] sm:$0xf] %vm3409, %v3180
      %3438 = vst.msk [vmem:[%s264 + $0x70] sm:$0xf] %vm3409, %v3181
      %3439 = vst.msk [vmem:[%s264 + $0x74] sm:$0xf] %vm3409, %v3182
      %3440 = vst.msk [vmem:[%s264 + $0x78] sm:$0xf] %vm3409, %v3183
      %3441 = vst.msk [vmem:[%s264 + $0x7c] sm:$0xf] %vm3409, %v3184
      %3442 = vst.msk [vmem:[%s264 + $0x80] sm:$0xf] %vm3409, %v3185
      %3443 = vst.msk [vmem:[%s264 + $0x84] sm:$0xf] %vm3409, %v3186
      %3444 = vst.msk [vmem:[%s264 + $0x88] sm:$0xf] %vm3409, %v3187
      %3445 = vst.msk [vmem:[%s264 + $0x8c] sm:$0xf] %vm3409, %v3188
      %3446 = vst.msk [vmem:[%s264 + $0x90] sm:$0xf] %vm3409, %v3189
      %3447 = vst.msk [vmem:[%s264 + $0x94] sm:$0xf] %vm3409, %v3190
      %3448 = vst.msk [vmem:[%s264 + $0x98] sm:$0xf] %vm3409, %v3191
      %3449 = vst.msk [vmem:[%s264 + $0x9c] sm:$0xf] %vm3409, %v3192
      %3450 = vst.msk [vmem:[%s264 + $0xa0] sm:$0xf] %vm3409, %v3193
      %3451 = vst.msk [vmem:[%s264 + $0xa4] sm:$0xf] %vm3409, %v3194
      %3452 = vst.msk [vmem:[%s264 + $0xa8] sm:$0xf] %vm3409, %v3195
      %3453 = vst.msk [vmem:[%s264 + $0xac] sm:$0xf] %vm3409, %v3196
      %3454 = vst.msk [vmem:[%s264 + $0xb0] sm:$0xf] %vm3409, %v3197
      %3455 = vst.msk [vmem:[%s264 + $0xb4] sm:$0xf] %vm3409, %v3198
      %3456 = vst.msk [vmem:[%s264 + $0xb8] sm:$0xf] %vm3409, %v3199
      %3457 = vst.msk [vmem:[%s264 + $0xbc] sm:$0xf] %vm3409, %v3200
      %3458 = vst.msk [vmem:[%s264 + $0xc0] sm:$0xf] %vm3409, %v3201
      %3459 = vst.msk [vmem:[%s264 + $0xc4] sm:$0xf] %vm3409, %v3202
      %3460 = vst.msk [vmem:[%s264 + $0xc8] sm:$0xf] %vm3409, %v3203
      %3461 = vst.msk [vmem:[%s264 + $0xcc] sm:$0xf] %vm3409, %v3204
      %3462 = vst.msk [vmem:[%s264 + $0xd0] sm:$0xf] %vm3409, %v3205
      %3463 = vst.msk [vmem:[%s264 + $0xd4] sm:$0xf] %vm3409, %v3206
      %3464 = vst.msk [vmem:[%s264 + $0xd8] sm:$0xf] %vm3409, %v3207
      %3465 = vst.msk [vmem:[%s264 + $0xdc] sm:$0xf] %vm3409, %v3208
      %3466 = vst.msk [vmem:[%s264 + $0xe0] sm:$0xf] %vm3409, %v3209
      %3467 = vst.msk [vmem:[%s264 + $0xe4] sm:$0xf] %vm3409, %v3210
      %3468 = vst.msk [vmem:[%s264 + $0xe8] sm:$0xf] %vm3409, %v3211
      %3469 = vst.msk [vmem:[%s264 + $0xec] sm:$0xf] %vm3409, %v3212
      %3470 = vst.msk [vmem:[%s264 + $0xf0] sm:$0xf] %vm3409, %v3213
      %3471 = vst.msk [vmem:[%s264 + $0xf4] sm:$0xf] %vm3409, %v3214
      %3472 = vst.msk [vmem:[%s264 + $0xf8] sm:$0xf] %vm3409, %v3215
      %3473 = vst.msk [vmem:[%s264 + $0xfc] sm:$0xf] %vm3409, %v3216
      %3474 = vst.msk [vmem:[%s264 + $0x100] sm:$0xf] %vm3409, %v3217
      %3475 = vst.msk [vmem:[%s264 + $0x104] sm:$0xf] %vm3409, %v3218
      %3476 = vst.msk [vmem:[%s264 + $0x108] sm:$0xf] %vm3409, %v3219
      %3477 = vst.msk [vmem:[%s264 + $0x10c] sm:$0xf] %vm3409, %v3220
      %3478 = vst.msk [vmem:[%s264 + $0x110] sm:$0xf] %vm3409, %v3221
      %3479 = vst.msk [vmem:[%s264 + $0x114] sm:$0xf] %vm3409, %v3222
      %3480 = vst.msk [vmem:[%s264 + $0x118] sm:$0xf] %vm3409, %v3223
      %3481 = vst.msk [vmem:[%s264 + $0x11c] sm:$0xf] %vm3409, %v3224
      %3482 = vst.msk [vmem:[%s264 + $0x120] sm:$0xf] %vm3409, %v3225
      %3483 = vst.msk [vmem:[%s264 + $0x124] sm:$0xf] %vm3409, %v3226
      %3484 = vst.msk [vmem:[%s264 + $0x128] sm:$0xf] %vm3409, %v3227
      %3485 = vst.msk [vmem:[%s264 + $0x12c] sm:$0xf] %vm3409, %v3228
      %3486 = vst.msk [vmem:[%s264 + $0x130] sm:$0xf] %vm3409, %v3229
      %3487 = vst.msk [vmem:[%s264 + $0x134] sm:$0xf] %vm3409, %v3230
      %3488 = vst.msk [vmem:[%s264 + $0x138] sm:$0xf] %vm3409, %v3231
      %3489 = vst.msk [vmem:[%s264 + $0x13c] sm:$0xf] %vm3409, %v3232
      %3490 = vst.msk [vmem:[%s264 + $0x140] sm:$0xf] %vm3409, %v3233
      %3491 = vst.msk [vmem:[%s264 + $0x144] sm:$0xf] %vm3409, %v3234
      %3492 = vst.msk [vmem:[%s264 + $0x148] sm:$0xf] %vm3409, %v3235
      %3493 = vst.msk [vmem:[%s264 + $0x14c] sm:$0xf] %vm3409, %v3236
      %3494 = vst.msk [vmem:[%s264 + $0x150] sm:$0xf] %vm3409, %v3237
      %3495 = vst.msk [vmem:[%s264 + $0x154] sm:$0xf] %vm3409, %v3238
      %3496 = vst.msk [vmem:[%s264 + $0x158] sm:$0xf] %vm3409, %v3239
      %3497 = vst.msk [vmem:[%s264 + $0x15c] sm:$0xf] %vm3409, %v3240
      %3498 = vst.msk [vmem:[%s264 + $0x160] sm:$0xf] %vm3409, %v3241
      %3499 = vst.msk [vmem:[%s264 + $0x164] sm:$0xf] %vm3409, %v3242
      %3500 = vst.msk [vmem:[%s264 + $0x168] sm:$0xf] %vm3409, %v3243
      %3501 = vst.msk [vmem:[%s264 + $0x16c] sm:$0xf] %vm3409, %v3244
      %3502 = vst.msk [vmem:[%s264 + $0x170] sm:$0xf] %vm3409, %v3245
      %3503 = vst.msk [vmem:[%s264 + $0x174] sm:$0xf] %vm3409, %v3246
      %3504 = vst.msk [vmem:[%s264 + $0x178] sm:$0xf] %vm3409, %v3247
      %3505 = vst.msk [vmem:[%s264 + $0x17c] sm:$0xf] %vm3409, %v3248
      %3506 = vst.msk [vmem:[%s264 + $0x180] sm:$0xf] %vm3409, %v3249
      %3507 = vst.msk [vmem:[%s264 + $0x184] sm:$0xf] %vm3409, %v3250
      %3508 = vst.msk [vmem:[%s264 + $0x188] sm:$0xf] %vm3409, %v3251
      %3509 = vst.msk [vmem:[%s264 + $0x18c] sm:$0xf] %vm3409, %v3252
      %3510 = vst.msk [vmem:[%s264 + $0x190] sm:$0xf] %vm3409, %v3253
      %3511 = vst.msk [vmem:[%s264 + $0x194] sm:$0xf] %vm3409, %v3254
      %3512 = vst.msk [vmem:[%s264 + $0x198] sm:$0xf] %vm3409, %v3255
      %3513 = vst.msk [vmem:[%s264 + $0x19c] sm:$0xf] %vm3409, %v3256
      %3514 = vst.msk [vmem:[%s264 + $0x1a0] sm:$0xf] %vm3409, %v3257
      %3515 = vst.msk [vmem:[%s264 + $0x1a4] sm:$0xf] %vm3409, %v3258
      %3516 = vst.msk [vmem:[%s264 + $0x1a8] sm:$0xf] %vm3409, %v3259
      %3517 = vst.msk [vmem:[%s264 + $0x1ac] sm:$0xf] %vm3409, %v3260
      %3518 = vst.msk [vmem:[%s264 + $0x1b0] sm:$0xf] %vm3409, %v3261
      %3519 = vst.msk [vmem:[%s264 + $0x1b4] sm:$0xf] %vm3409, %v3262
      %3520 = vst.msk [vmem:[%s264 + $0x1b8] sm:$0xf] %vm3409, %v3263
      %3521 = vst.msk [vmem:[%s264 + $0x1bc] sm:$0xf] %vm3409, %v3264
      %3522 = vst.msk [vmem:[%s264 + $0x1c0] sm:$0xf] %vm3409, %v3265
      %3523 = vst.msk [vmem:[%s264 + $0x1c4] sm:$0xf] %vm3409, %v3266
      %3524 = vst.msk [vmem:[%s264 + $0x1c8] sm:$0xf] %vm3409, %v3267
      %3525 = vst.msk [vmem:[%s264 + $0x1cc] sm:$0xf] %vm3409, %v3268
      %3526 = vst.msk [vmem:[%s264 + $0x1d0] sm:$0xf] %vm3409, %v3269
      %3527 = vst.msk [vmem:[%s264 + $0x1d4] sm:$0xf] %vm3409, %v3270
      %3528 = vst.msk [vmem:[%s264 + $0x1d8] sm:$0xf] %vm3409, %v3271
      %3529 = vst.msk [vmem:[%s264 + $0x1dc] sm:$0xf] %vm3409, %v3272
      %3530 = vst.msk [vmem:[%s264 + $0x1e0] sm:$0xf] %vm3409, %v3273
      %3531 = vst.msk [vmem:[%s264 + $0x1e4] sm:$0xf] %vm3409, %v3274
      %3532 = vst.msk [vmem:[%s264 + $0x1e8] sm:$0xf] %vm3409, %v3275
      %3533 = vst.msk [vmem:[%s264 + $0x1ec] sm:$0xf] %vm3409, %v3276
      %3534 = vst.msk [vmem:[%s264 + $0x1f0] sm:$0xf] %vm3409, %v3277
      %3535 = vst.msk [vmem:[%s264 + $0x1f4] sm:$0xf] %vm3409, %v3278
      %3536 = vst.msk [vmem:[%s264 + $0x1f8] sm:$0xf] %vm3409, %v3279
      %3537 = vst.msk [vmem:[%s264 + $0x1fc] sm:$0xf] %vm3409, %v3280
      %s3538 = smul.u32 128, %s19
      %p3539 = scmp.lt.s32.totalorder %s3538, 255
      %s3540 = scalar_select %p3539, %s3538, 255
      %p3541 = scmp.lt.s32.totalorder %s20, 0
      %s3542 = scalar_select %p3541, %s20, 0
      %s3543 = sadd.s32 %s3542, %s3540
      %s3544 = smul.addr %s3543, 4
      %s3545 = scalar_lea.vmem %s4, %s3544
      // Predicated region
      $region37: #{tpu_custom_call.1} parent=35 // pred_check
        %p3546 = pneg %p151
      $region38: #{tpu_custom_call.1} parent=35 // pred_check_branch
        %3548 = sbr.rel (%p3546) target = $region40
      $region39: #{tpu_custom_call.1} parent=35 // pred_region
        %s3549 = smul.u32 128, %s19
      $region40: #{tpu_custom_call.1} parent=35 // pred_fallthru
        _
    $region36: #{tpu_custom_call.1} parent=5 // pred_fallthru
      _
    %p3550 = scmp.le.s32.totalorder 2, %s10
    // Predicated region
    $region41: #{tpu_custom_call.1} parent=5 // pred_check
      %p3551 = pneg %p3550
    $region42: #{tpu_custom_call.1} parent=5 // pred_check_branch
      %3553 = sbr.rel (%p3551) target = $region44
    $region43: #{tpu_custom_call.1} parent=5 // pred_region
      %s3554 = ssub.s32 %s10, 2
      // Predicated region
      $region45: #{tpu_custom_call.1} parent=43 // pred_check
        %p3555 = pneg %p157
      $region46: #{tpu_custom_call.1} parent=43 // pred_check_branch
        %3557 = sbr.rel (%p3555) target = $region48
      $region47: #{tpu_custom_call.1} parent=43 // pred_region
        %s3558 = smul.u32 128, %s21
        %p3559 = scmp.lt.s32.totalorder %s3558, 255
        %s3560 = scalar_select %p3559, %s3558, 255
        %p3561 = scmp.lt.s32.totalorder %s22, 0
        %s3562 = scalar_select %p3561, %s22, 0
        %s3563 = sadd.s32 %s3562, %s3560
        %s3564 = smul.addr %s3563, 4
        %s3565 = scalar_lea.vmem %s4, %s3564
      $region48: #{tpu_custom_call.1} parent=43 // pred_fallthru
        _
    $region44: #{tpu_custom_call.1} parent=5 // pred_fallthru
      _
  $region6: #{tpu_custom_call.1} parent=0 // loop_footer
    %s14 = sadd.s32 1, %s10
  $region7: #{tpu_custom_call.1} parent=0 // loop_footer_branch
    %9 = sbr.rel target = $region3
  $region8: #{tpu_custom_call.1} parent=0 // loop_exit
    _

</llo_original>
